<compile_context>
chip_gen: v7x
topology: tpu7x:2x2x1
jax: 0.10.0
libtpu: 0.0.40
codegen_flags: <defaults>
</compile_context>

<pallas_src>
import jax
import jax.numpy as jnp
import numpy as np
from jax.experimental import pallas as pl
from jax.experimental.pallas import tpu as pltpu


def _fold_bn(p, eps):
    """Fold inference-mode BN into the conv weight; return (w_folded, bias)."""
    s = p["gamma"] / jnp.sqrt(p["var"] + eps)
    w = (p["w"] * s[:, None, None, None]).astype(jnp.float32)
    b = (p["beta"] - p["mean"] * s).astype(jnp.float32)
    return w, b


def elan_forward(x_nchw, p1, p2, p3, p4, p5, eps=1e-5):
    """ELAN.forward (stride=1, groups=1, act=SiLU, BN in inference mode)."""
    N, Cin, H, W = x_nchw.shape
    L = H * W
    hidc = p1["w"].shape[0]
    ouc = p5["w"].shape[0]
    PAD = 128  # halo width in the flattened scratch; must be >= W + 1

    # ---- parameter prep (plain JAX, runs once per call) ----
    w1, b1 = _fold_bn(p1, eps)
    w2, b2 = _fold_bn(p2, eps)
    w3, b3 = _fold_bn(p3, eps)
    w4, b4 = _fold_bn(p4, eps)
    w5, b5 = _fold_bn(p5, eps)

    w1 = w1[:, :, 0, 0]                                   # (hidc, Cin)
    w2 = w2[:, :, 0, 0]                                   # (hidc, Cin)
    w3 = jnp.transpose(w3, (2, 3, 0, 1))                  # (3, 3, hidc, hidc)
    w4 = jnp.transpose(w4, (2, 3, 0, 1))                  # (3, 3, hidc, hidc)
    w5 = jnp.transpose(w5[:, :, 0, 0].reshape(ouc, 4, hidc), (1, 0, 2))  # (4, ouc, hidc)

    b1 = b1[:, None]; b2 = b2[:, None]; b3 = b3[:, None]
    b4 = b4[:, None]; b5 = b5[:, None]                    # (C, 1) — lane-broadcast

    x = x_nchw.reshape(N, Cin, L).astype(jnp.float32)     # NCHW, spatial flattened (free)

    def kernel(x_ref, w1_ref, b1_ref, w2_ref, b2_ref, w3_ref, b3_ref,
               w4_ref, b4_ref, w5_ref, b5_ref, o_ref, pad_ref):
        xf = x_ref[...]                                   # (Cin, L)

        def silu(v):
            return v * jax.nn.sigmoid(v)

        # ---- 1x1 branches: (hidc, Cin) @ (Cin, L) ----
        x1 = silu(jnp.dot(w1_ref[...], xf, preferred_element_type=jnp.float32)
                  + b1_ref[...])
        x2 = silu(jnp.dot(w2_ref[...], xf, preferred_element_type=jnp.float32)
                  + b2_ref[...])

        # Column-validity masks for the +/-1 lane shift of 3x3 taps (row wrap).
        col = jax.lax.broadcasted_iota(jnp.int32, (1, L), 1) % W
        mask_l = (col >= 1).astype(jnp.float32)           # valid when ox == -1
        mask_r = (col <= W - 2).astype(jnp.float32)       # valid when ox == +1

        # Zero the scratch once; only the interior is overwritten afterwards,
        # so the +/-PAD borders stay zero (they supply the H-direction halo).
        pad_ref[...] = jnp.zeros_like(pad_ref)

        def conv3x3(w_ref, b_ref, inp):
            pad_ref[:, PAD:PAD + L] = inp                 # aligned interior store
            acc = jnp.zeros((hidc, L), jnp.float32)
            for ox in (-1, 0, 1):
                part = jnp.zeros((hidc, L), jnp.float32)
                for oy in (-1, 0, 1):
                    start = PAD + oy * W + ox             # static lane window
                    patch = pad_ref[:, start:start + L]   # (hidc, L)
                    part = part + jnp.dot(w_ref[oy + 1, ox + 1], patch,
                                          preferred_element_type=jnp.float32)
                if ox == -1:
                    part = part * mask_l
                elif ox == 1:
                    part = part * mask_r
                acc = acc + part
            return silu(acc + b_ref[...])

        x3 = conv3x3(w3_ref, b3_ref, x2)
        x4 = conv3x3(w4_ref, b4_ref, x3)

        # ---- conv5 over concat([x1,x2,x3,x4]) == sum of 4 block matmuls ----
        y = (jnp.dot(w5_ref[0], x1, preferred_element_type=jnp.float32)
             + jnp.dot(w5_ref[1], x2, preferred_element_type=jnp.float32)
             + jnp.dot(w5_ref[2], x3, preferred_element_type=jnp.float32)
             + jnp.dot(w5_ref[3], x4, preferred_element_type=jnp.float32))
        o_ref[...] = silu(y + b5_ref[...]).astype(o_ref.dtype)

    out = pl.pallas_call(
        kernel,
        out_shape=jax.ShapeDtypeStruct((N, ouc, L), x.dtype),
        grid=(N,),
        in_specs=[
            pl.BlockSpec((None, Cin, L), lambda n: (n, 0, 0)),      # x (batch squeezed)
            pl.BlockSpec((hidc, Cin), lambda n: (0, 0)),            # w1
            pl.BlockSpec((hidc, 1), lambda n: (0, 0)),              # b1
            pl.BlockSpec((hidc, Cin), lambda n: (0, 0)),            # w2
            pl.BlockSpec((hidc, 1), lambda n: (0, 0)),              # b2
            pl.BlockSpec((3, 3, hidc, hidc), lambda n: (0, 0, 0, 0)),  # w3
            pl.BlockSpec((hidc, 1), lambda n: (0, 0)),              # b3
            pl.BlockSpec((3, 3, hidc, hidc), lambda n: (0, 0, 0, 0)),  # w4
            pl.BlockSpec((hidc, 1), lambda n: (0, 0)),              # b4
            pl.BlockSpec((4, ouc, hidc), lambda n: (0, 0, 0)),      # w5 (split)
            pl.BlockSpec((ouc, 1), lambda n: (0, 0)),               # b5
        ],
        out_specs=pl.BlockSpec((None, ouc, L), lambda n: (n, 0, 0)),
        scratch_shapes=[pltpu.VMEM((hidc, L + 2 * PAD), jnp.float32)],
        compiler_params=pltpu.CompilerParams(
            dimension_semantics=("parallel",)),
    )(x, w1, b1, w2, b2, w3, b3, w4, b4, w5, b5)

    return out.reshape(N, ouc, H, W)                      # still NCHW, free reshape


# ------------------------- pure-JAX reference -------------------------

def _conv_bn_silu_ref(x, p, pad, eps=1e-5):
    dn = jax.lax.conv_dimension_numbers(x.shape, p["w"].shape,
                                        ("NCHW", "OIHW", "NCHW"))
    y = jax.lax.conv_general_dilated(x, p["w"], (1, 1), ((pad, pad), (pad, pad)),
                                     dimension_numbers=dn)
    s = p["gamma"] / jnp.sqrt(p["var"] + eps)
    y = y * s[None, :, None, None] + (p["beta"] - p["mean"] * s)[None, :, None, None]
    return y * jax.nn.sigmoid(y)


def elan_reference(x, p1, p2, p3, p4, p5, eps=1e-5):
    x1 = _conv_bn_silu_ref(x, p1, 0, eps)
    x2 = _conv_bn_silu_ref(x, p2, 0, eps)
    x3 = _conv_bn_silu_ref(x2, p3, 1, eps)
    x4 = _conv_bn_silu_ref(x3, p4, 1, eps)
    xc = jnp.concatenate([x1, x2, x3, x4], axis=1)
    return _conv_bn_silu_ref(xc, p5, 0, eps)


def _make_conv_bn(key, co, ci, k):
    kw, kg, kb, km, kv = jax.random.split(key, 5)
    return dict(
        w=jax.random.normal(kw, (co, ci, k, k), jnp.float32) / np.sqrt(ci * k * k),
        gamma=1.0 + 0.1 * jax.random.normal(kg, (co,), jnp.float32),
        beta=0.1 * jax.random.normal(kb, (co,), jnp.float32),
        mean=0.1 * jax.random.normal(km, (co,), jnp.float32),
        var=jnp.abs(jax.random.normal(kv, (co,), jnp.float32)) + 0.5,
    )


if __name__ == "__main__":
    N, inc, hidc, ouc, H, W = 2, 4, 8, 16, 16, 16

    key = jax.random.PRNGKey(0)
    kx, k1, k2, k3, k4, k5 = jax.random.split(key, 6)
    x = jax.random.normal(kx, (N, inc, H, W), jnp.float32)

    p1 = _make_conv_bn(k1, hidc, inc, 1)
    p2 = _make_conv_bn(k2, hidc, inc, 1)
    p3 = _make_conv_bn(k3, hidc, hidc, 3)
    p4 = _make_conv_bn(k4, hidc, hidc, 3)
    p5 = _make_conv_bn(k5, ouc, 4 * hidc, 1)

    out = elan_forward(x, p1, p2, p3, p4, p5)
    out = jax.block_until_ready(out)

    ref = elan_reference(x, p1, p2, p3, p4, p5)
    np.testing.assert_allclose(np.asarray(out), np.asarray(ref),
                               rtol=1e-4, atol=1e-4)

    print("KERNEL_OK")
</pallas_src>

<mosaic_0001>
module attributes {stable_mosaic.version = 11 : i64} {
  func.func @kernel(%arg0: i32, %arg1: memref<1x4x256xf32, #tpu.memory_space<vmem>>, %arg2: memref<8x4xf32, #tpu.memory_space<vmem>>, %arg3: memref<8x1xf32, #tpu.memory_space<vmem>>, %arg4: memref<8x4xf32, #tpu.memory_space<vmem>>, %arg5: memref<8x1xf32, #tpu.memory_space<vmem>>, %arg6: memref<3x3x8x8xf32, #tpu.memory_space<vmem>>, %arg7: memref<8x1xf32, #tpu.memory_space<vmem>>, %arg8: memref<3x3x8x8xf32, #tpu.memory_space<vmem>>, %arg9: memref<8x1xf32, #tpu.memory_space<vmem>>, %arg10: memref<4x16x8xf32, #tpu.memory_space<vmem>>, %arg11: memref<16x1xf32, #tpu.memory_space<vmem>>, %arg12: memref<1x16x256xf32, #tpu.memory_space<vmem>>, %arg13: memref<8x512xf32, #tpu.memory_space<vmem>>) attributes {dimension_semantics = [#tpu.dimension_semantics<parallel>], iteration_bounds = array<i64: 2>, scalar_prefetch = 0 : i64, scratch_operands = 1 : i64, tpu.core_type = #tpu.core_type<tc>, window_params = [{transform_indices = @transform_0, window_bounds = array<i64: 1, 4, 256>}, {pipeline_mode = #tpu.pipeline_mode<synchronous>, transform_indices = @transform_1, window_bounds = array<i64: 8, 4>}, {pipeline_mode = #tpu.pipeline_mode<synchronous>, transform_indices = @transform_2, window_bounds = array<i64: 8, 1>}, {pipeline_mode = #tpu.pipeline_mode<synchronous>, transform_indices = @transform_3, window_bounds = array<i64: 8, 4>}, {pipeline_mode = #tpu.pipeline_mode<synchronous>, transform_indices = @transform_4, window_bounds = array<i64: 8, 1>}, {pipeline_mode = #tpu.pipeline_mode<synchronous>, transform_indices = @transform_5, window_bounds = array<i64: 3, 3, 8, 8>}, {pipeline_mode = #tpu.pipeline_mode<synchronous>, transform_indices = @transform_6, window_bounds = array<i64: 8, 1>}, {pipeline_mode = #tpu.pipeline_mode<synchronous>, transform_indices = @transform_7, window_bounds = array<i64: 3, 3, 8, 8>}, {pipeline_mode = #tpu.pipeline_mode<synchronous>, transform_indices = @transform_8, window_bounds = array<i64: 8, 1>}, {pipeline_mode = #tpu.pipeline_mode<synchronous>, transform_indices = @transform_9, window_bounds = array<i64: 4, 16, 8>}, {pipeline_mode = #tpu.pipeline_mode<synchronous>, transform_indices = @transform_10, window_bounds = array<i64: 16, 1>}, {transform_indices = @transform_11, window_bounds = array<i64: 1, 16, 256>}]} {
    %c0 = arith.constant 0 : index
    %c0_0 = arith.constant 0 : index
    %c0_1 = arith.constant 0 : index
    %0 = vector.load %arg1[%c0, %c0_0, %c0_1] : memref<1x4x256xf32, #tpu.memory_space<vmem>>, vector<1x4x256xf32>
    %1 = vector.shape_cast %0 : vector<1x4x256xf32> to vector<4x256xf32>
    %c0_2 = arith.constant 0 : index
    %c0_3 = arith.constant 0 : index
    %2 = vector.load %arg2[%c0_2, %c0_3] : memref<8x4xf32, #tpu.memory_space<vmem>>, vector<8x4xf32>
    %cst = arith.constant dense<0.000000e+00> : vector<8x256xf32>
    %3 = tpu.matmul %2, %1, %cst {dimension_numbers = #tpu.dot_dimension_numbers<[1], [0], [0], [1], [0, 0, 1, 1], [], []>} : vector<8x4xf32>, vector<4x256xf32>, vector<8x256xf32> -> vector<8x256xf32>
    %c0_4 = arith.constant 0 : index
    %c0_5 = arith.constant 0 : index
    %4 = vector.load %arg3[%c0_4, %c0_5] : memref<8x1xf32, #tpu.memory_space<vmem>>, vector<8x1xf32>
    %5 = vector.broadcast %4 : vector<8x1xf32> to vector<8x256xf32>
    %6 = arith.addf %3, %5 : vector<8x256xf32>
    %7 = arith.negf %6 : vector<8x256xf32>
    %8 = math.exp %7 : vector<8x256xf32>
    %cst_6 = arith.constant 1.000000e+00 : f32
    %9 = vector.broadcast %cst_6 : f32 to vector<8x256xf32>
    %10 = arith.addf %9, %8 : vector<8x256xf32>
    %11 = arith.divf %9, %10 : vector<8x256xf32>
    %12 = arith.mulf %6, %11 : vector<8x256xf32>
    %c0_7 = arith.constant 0 : index
    %c0_8 = arith.constant 0 : index
    %13 = vector.load %arg4[%c0_7, %c0_8] : memref<8x4xf32, #tpu.memory_space<vmem>>, vector<8x4xf32>
    %cst_9 = arith.constant dense<0.000000e+00> : vector<8x256xf32>
    %14 = tpu.matmul %13, %1, %cst_9 {dimension_numbers = #tpu.dot_dimension_numbers<[1], [0], [0], [1], [0, 0, 1, 1], [], []>} : vector<8x4xf32>, vector<4x256xf32>, vector<8x256xf32> -> vector<8x256xf32>
    %c0_10 = arith.constant 0 : index
    %c0_11 = arith.constant 0 : index
    %15 = vector.load %arg5[%c0_10, %c0_11] : memref<8x1xf32, #tpu.memory_space<vmem>>, vector<8x1xf32>
    %16 = vector.broadcast %15 : vector<8x1xf32> to vector<8x256xf32>
    %17 = arith.addf %14, %16 : vector<8x256xf32>
    %18 = arith.negf %17 : vector<8x256xf32>
    %19 = math.exp %18 : vector<8x256xf32>
    %cst_12 = arith.constant 1.000000e+00 : f32
    %20 = vector.broadcast %cst_12 : f32 to vector<8x256xf32>
    %21 = arith.addf %20, %19 : vector<8x256xf32>
    %22 = arith.divf %20, %21 : vector<8x256xf32>
    %23 = arith.mulf %17, %22 : vector<8x256xf32>
    %24 = tpu.iota {dimensions = array<i32: 1>} : vector<1x256xi32>
    %c16_i32 = arith.constant 16 : i32
    %c0_i32 = arith.constant 0 : i32
    %25 = arith.cmpi eq, %c16_i32, %c0_i32 : i32
    %c1_i32 = arith.constant 1 : i32
    %26 = arith.select %25, %c1_i32, %c16_i32 : i32
    %27 = vector.broadcast %26 : i32 to vector<1x256xi32>
    %28 = arith.remsi %24, %27 : vector<1x256xi32>
    %c0_i32_13 = arith.constant 0 : i32
    %29 = vector.broadcast %c0_i32_13 : i32 to vector<1x256xi32>
    %30 = arith.cmpi ne, %28, %29 : vector<1x256xi32>
    %c0_i32_14 = arith.constant 0 : i32
    %31 = vector.broadcast %c0_i32_14 : i32 to vector<1x256xi32>
    %32 = arith.cmpi slt, %28, %31 : vector<1x256xi32>
    %c0_i32_15 = arith.constant 0 : i32
    %33 = arith.cmpi slt, %26, %c0_i32_15 : i32
    %34 = vector.broadcast %33 : i1 to vector<1x256xi1>
    %35 = vector.broadcast %34 : vector<1x256xi1> to vector<1x256xi1>
    %36 = arith.xori %32, %35 : vector<1x256xi1>
    %37 = arith.andi %36, %30 : vector<1x256xi1>
    %38 = vector.broadcast %26 : i32 to vector<1x256xi32>
    %39 = arith.addi %28, %38 : vector<1x256xi32>
    %40 = arith.select %37, %39, %28 : vector<1x256xi1>, vector<1x256xi32>
    %c1_i32_16 = arith.constant 1 : i32
    %41 = vector.broadcast %c1_i32_16 : i32 to vector<1x256xi32>
    %42 = arith.cmpi sge, %40, %41 : vector<1x256xi32>
    %43 = arith.extui %42 : vector<1x256xi1> to vector<1x256xi32>
    %44 = arith.sitofp %43 : vector<1x256xi32> to vector<1x256xf32>
    %c14_i32 = arith.constant 14 : i32
    %45 = vector.broadcast %c14_i32 : i32 to vector<1x256xi32>
    %46 = arith.cmpi sle, %40, %45 : vector<1x256xi32>
    %47 = arith.extui %46 : vector<1x256xi1> to vector<1x256xi32>
    %48 = arith.sitofp %47 : vector<1x256xi32> to vector<1x256xf32>
    %cst_17 = arith.constant 0.000000e+00 : f32
    %49 = vector.broadcast %cst_17 : f32 to vector<8x512xf32>
    %c0_18 = arith.constant 0 : index
    %c0_19 = arith.constant 0 : index
    %50 = vector.load %arg13[%c0_18, %c0_19] : memref<8x512xf32, #tpu.memory_space<vmem>>, vector<8x512xf32>
    tpu.vector_store %arg13[%c0_18, %c0_19], %49 {strides = array<i32>} : memref<8x512xf32, #tpu.memory_space<vmem>>, vector<8x512xf32>,
    %c0_20 = arith.constant 0 : index
    %c128 = arith.constant 128 : index
    %51 = vector.load %arg13[%c0_20, %c128] : memref<8x512xf32, #tpu.memory_space<vmem>>, vector<8x256xf32>
    tpu.vector_store %arg13[%c0_20, %c128], %23 {strides = array<i32>} : memref<8x512xf32, #tpu.memory_space<vmem>>, vector<8x256xf32>,
    %cst_21 = arith.constant 0.000000e+00 : f32
    %52 = vector.broadcast %cst_21 : f32 to vector<8x256xf32>
    %cst_22 = arith.constant 0.000000e+00 : f32
    %53 = vector.broadcast %cst_22 : f32 to vector<8x256xf32>
    %c0_23 = arith.constant 0 : index
    %c111 = arith.constant 111 : index
    %54 = vector.load %arg13[%c0_23, %c111] : memref<8x512xf32, #tpu.memory_space<vmem>>, vector<8x256xf32>
    %c0_24 = arith.constant 0 : index
    %c0_25 = arith.constant 0 : index
    %c0_26 = arith.constant 0 : index
    %c0_27 = arith.constant 0 : index
    %55 = vector.load %arg6[%c0_24, %c0_25, %c0_26, %c0_27] : memref<3x3x8x8xf32, #tpu.memory_space<vmem>>, vector<1x1x8x8xf32>
    %56 = vector.shape_cast %55 : vector<1x1x8x8xf32> to vector<8x8xf32>
    %cst_28 = arith.constant dense<0.000000e+00> : vector<8x256xf32>
    %57 = tpu.matmul %56, %54, %cst_28 {dimension_numbers = #tpu.dot_dimension_numbers<[1], [0], [0], [1], [0, 0, 1, 1], [], []>} : vector<8x8xf32>, vector<8x256xf32>, vector<8x256xf32> -> vector<8x256xf32>
    %58 = arith.addf %53, %57 : vector<8x256xf32>
    %c0_29 = arith.constant 0 : index
    %c127 = arith.constant 127 : index
    %59 = vector.load %arg13[%c0_29, %c127] : memref<8x512xf32, #tpu.memory_space<vmem>>, vector<8x256xf32>
    %c1 = arith.constant 1 : index
    %c0_30 = arith.constant 0 : index
    %c0_31 = arith.constant 0 : index
    %c0_32 = arith.constant 0 : index
    %60 = vector.load %arg6[%c1, %c0_30, %c0_31, %c0_32] : memref<3x3x8x8xf32, #tpu.memory_space<vmem>>, vector<1x1x8x8xf32>
    %61 = vector.shape_cast %60 : vector<1x1x8x8xf32> to vector<8x8xf32>
    %cst_33 = arith.constant dense<0.000000e+00> : vector<8x256xf32>
    %62 = tpu.matmul %61, %59, %cst_33 {dimension_numbers = #tpu.dot_dimension_numbers<[1], [0], [0], [1], [0, 0, 1, 1], [], []>} : vector<8x8xf32>, vector<8x256xf32>, vector<8x256xf32> -> vector<8x256xf32>
    %63 = arith.addf %58, %62 : vector<8x256xf32>
    %c0_34 = arith.constant 0 : index
    %c143 = arith.constant 143 : index
    %64 = vector.load %arg13[%c0_34, %c143] : memref<8x512xf32, #tpu.memory_space<vmem>>, vector<8x256xf32>
    %c2 = arith.constant 2 : index
    %c0_35 = arith.constant 0 : index
    %c0_36 = arith.constant 0 : index
    %c0_37 = arith.constant 0 : index
    %65 = vector.load %arg6[%c2, %c0_35, %c0_36, %c0_37] : memref<3x3x8x8xf32, #tpu.memory_space<vmem>>, vector<1x1x8x8xf32>
    %66 = vector.shape_cast %65 : vector<1x1x8x8xf32> to vector<8x8xf32>
    %cst_38 = arith.constant dense<0.000000e+00> : vector<8x256xf32>
    %67 = tpu.matmul %66, %64, %cst_38 {dimension_numbers = #tpu.dot_dimension_numbers<[1], [0], [0], [1], [0, 0, 1, 1], [], []>} : vector<8x8xf32>, vector<8x256xf32>, vector<8x256xf32> -> vector<8x256xf32>
    %68 = arith.addf %63, %67 : vector<8x256xf32>
    %69 = vector.broadcast %44 : vector<1x256xf32> to vector<8x256xf32>
    %70 = arith.mulf %68, %69 : vector<8x256xf32>
    %71 = arith.addf %52, %70 : vector<8x256xf32>
    %cst_39 = arith.constant 0.000000e+00 : f32
    %72 = vector.broadcast %cst_39 : f32 to vector<8x256xf32>
    %c0_40 = arith.constant 0 : index
    %c112 = arith.constant 112 : index
    %73 = vector.load %arg13[%c0_40, %c112] : memref<8x512xf32, #tpu.memory_space<vmem>>, vector<8x256xf32>
    %c0_41 = arith.constant 0 : index
    %c1_42 = arith.constant 1 : index
    %c0_43 = arith.constant 0 : index
    %c0_44 = arith.constant 0 : index
    %74 = vector.load %arg6[%c0_41, %c1_42, %c0_43, %c0_44] : memref<3x3x8x8xf32, #tpu.memory_space<vmem>>, vector<1x1x8x8xf32>
    %75 = vector.shape_cast %74 : vector<1x1x8x8xf32> to vector<8x8xf32>
    %cst_45 = arith.constant dense<0.000000e+00> : vector<8x256xf32>
    %76 = tpu.matmul %75, %73, %cst_45 {dimension_numbers = #tpu.dot_dimension_numbers<[1], [0], [0], [1], [0, 0, 1, 1], [], []>} : vector<8x8xf32>, vector<8x256xf32>, vector<8x256xf32> -> vector<8x256xf32>
    %77 = arith.addf %72, %76 : vector<8x256xf32>
    %c0_46 = arith.constant 0 : index
    %c128_47 = arith.constant 128 : index
    %78 = vector.load %arg13[%c0_46, %c128_47] : memref<8x512xf32, #tpu.memory_space<vmem>>, vector<8x256xf32>
    %c1_48 = arith.constant 1 : index
    %c1_49 = arith.constant 1 : index
    %c0_50 = arith.constant 0 : index
    %c0_51 = arith.constant 0 : index
    %79 = vector.load %arg6[%c1_48, %c1_49, %c0_50, %c0_51] : memref<3x3x8x8xf32, #tpu.memory_space<vmem>>, vector<1x1x8x8xf32>
    %80 = vector.shape_cast %79 : vector<1x1x8x8xf32> to vector<8x8xf32>
    %cst_52 = arith.constant dense<0.000000e+00> : vector<8x256xf32>
    %81 = tpu.matmul %80, %78, %cst_52 {dimension_numbers = #tpu.dot_dimension_numbers<[1], [0], [0], [1], [0, 0, 1, 1], [], []>} : vector<8x8xf32>, vector<8x256xf32>, vector<8x256xf32> -> vector<8x256xf32>
    %82 = arith.addf %77, %81 : vector<8x256xf32>
    %c0_53 = arith.constant 0 : index
    %c144 = arith.constant 144 : index
    %83 = vector.load %arg13[%c0_53, %c144] : memref<8x512xf32, #tpu.memory_space<vmem>>, vector<8x256xf32>
    %c2_54 = arith.constant 2 : index
    %c1_55 = arith.constant 1 : index
    %c0_56 = arith.constant 0 : index
    %c0_57 = arith.constant 0 : index
    %84 = vector.load %arg6[%c2_54, %c1_55, %c0_56, %c0_57] : memref<3x3x8x8xf32, #tpu.memory_space<vmem>>, vector<1x1x8x8xf32>
    %85 = vector.shape_cast %84 : vector<1x1x8x8xf32> to vector<8x8xf32>
    %cst_58 = arith.constant dense<0.000000e+00> : vector<8x256xf32>
    %86 = tpu.matmul %85, %83, %cst_58 {dimension_numbers = #tpu.dot_dimension_numbers<[1], [0], [0], [1], [0, 0, 1, 1], [], []>} : vector<8x8xf32>, vector<8x256xf32>, vector<8x256xf32> -> vector<8x256xf32>
    %87 = arith.addf %82, %86 : vector<8x256xf32>
    %88 = arith.addf %71, %87 : vector<8x256xf32>
    %cst_59 = arith.constant 0.000000e+00 : f32
    %89 = vector.broadcast %cst_59 : f32 to vector<8x256xf32>
    %c0_60 = arith.constant 0 : index
    %c113 = arith.constant 113 : index
    %90 = vector.load %arg13[%c0_60, %c113] : memref<8x512xf32, #tpu.memory_space<vmem>>, vector<8x256xf32>
    %c0_61 = arith.constant 0 : index
    %c2_62 = arith.constant 2 : index
    %c0_63 = arith.constant 0 : index
    %c0_64 = arith.constant 0 : index
    %91 = vector.load %arg6[%c0_61, %c2_62, %c0_63, %c0_64] : memref<3x3x8x8xf32, #tpu.memory_space<vmem>>, vector<1x1x8x8xf32>
    %92 = vector.shape_cast %91 : vector<1x1x8x8xf32> to vector<8x8xf32>
    %cst_65 = arith.constant dense<0.000000e+00> : vector<8x256xf32>
    %93 = tpu.matmul %92, %90, %cst_65 {dimension_numbers = #tpu.dot_dimension_numbers<[1], [0], [0], [1], [0, 0, 1, 1], [], []>} : vector<8x8xf32>, vector<8x256xf32>, vector<8x256xf32> -> vector<8x256xf32>
    %94 = arith.addf %89, %93 : vector<8x256xf32>
    %c0_66 = arith.constant 0 : index
    %c129 = arith.constant 129 : index
    %95 = vector.load %arg13[%c0_66, %c129] : memref<8x512xf32, #tpu.memory_space<vmem>>, vector<8x256xf32>
    %c1_67 = arith.constant 1 : index
    %c2_68 = arith.constant 2 : index
    %c0_69 = arith.constant 0 : index
    %c0_70 = arith.constant 0 : index
    %96 = vector.load %arg6[%c1_67, %c2_68, %c0_69, %c0_70] : memref<3x3x8x8xf32, #tpu.memory_space<vmem>>, vector<1x1x8x8xf32>
    %97 = vector.shape_cast %96 : vector<1x1x8x8xf32> to vector<8x8xf32>
    %cst_71 = arith.constant dense<0.000000e+00> : vector<8x256xf32>
    %98 = tpu.matmul %97, %95, %cst_71 {dimension_numbers = #tpu.dot_dimension_numbers<[1], [0], [0], [1], [0, 0, 1, 1], [], []>} : vector<8x8xf32>, vector<8x256xf32>, vector<8x256xf32> -> vector<8x256xf32>
    %99 = arith.addf %94, %98 : vector<8x256xf32>
    %c0_72 = arith.constant 0 : index
    %c145 = arith.constant 145 : index
    %100 = vector.load %arg13[%c0_72, %c145] : memref<8x512xf32, #tpu.memory_space<vmem>>, vector<8x256xf32>
    %c2_73 = arith.constant 2 : index
    %c2_74 = arith.constant 2 : index
    %c0_75 = arith.constant 0 : index
    %c0_76 = arith.constant 0 : index
    %101 = vector.load %arg6[%c2_73, %c2_74, %c0_75, %c0_76] : memref<3x3x8x8xf32, #tpu.memory_space<vmem>>, vector<1x1x8x8xf32>
    %102 = vector.shape_cast %101 : vector<1x1x8x8xf32> to vector<8x8xf32>
    %cst_77 = arith.constant dense<0.000000e+00> : vector<8x256xf32>
    %103 = tpu.matmul %102, %100, %cst_77 {dimension_numbers = #tpu.dot_dimension_numbers<[1], [0], [0], [1], [0, 0, 1, 1], [], []>} : vector<8x8xf32>, vector<8x256xf32>, vector<8x256xf32> -> vector<8x256xf32>
    %104 = arith.addf %99, %103 : vector<8x256xf32>
    %105 = vector.broadcast %48 : vector<1x256xf32> to vector<8x256xf32>
    %106 = arith.mulf %104, %105 : vector<8x256xf32>
    %107 = arith.addf %88, %106 : vector<8x256xf32>
    %c0_78 = arith.constant 0 : index
    %c0_79 = arith.constant 0 : index
    %108 = vector.load %arg7[%c0_78, %c0_79] : memref<8x1xf32, #tpu.memory_space<vmem>>, vector<8x1xf32>
    %109 = vector.broadcast %108 : vector<8x1xf32> to vector<8x256xf32>
    %110 = arith.addf %107, %109 : vector<8x256xf32>
    %111 = arith.negf %110 : vector<8x256xf32>
    %112 = math.exp %111 : vector<8x256xf32>
    %cst_80 = arith.constant 1.000000e+00 : f32
    %113 = vector.broadcast %cst_80 : f32 to vector<8x256xf32>
    %114 = arith.addf %113, %112 : vector<8x256xf32>
    %115 = arith.divf %113, %114 : vector<8x256xf32>
    %116 = arith.mulf %110, %115 : vector<8x256xf32>
    %c0_81 = arith.constant 0 : index
    %c128_82 = arith.constant 128 : index
    %117 = vector.load %arg13[%c0_81, %c128_82] : memref<8x512xf32, #tpu.memory_space<vmem>>, vector<8x256xf32>
    tpu.vector_store %arg13[%c0_81, %c128_82], %116 {strides = array<i32>} : memref<8x512xf32, #tpu.memory_space<vmem>>, vector<8x256xf32>,
    %cst_83 = arith.constant 0.000000e+00 : f32
    %118 = vector.broadcast %cst_83 : f32 to vector<8x256xf32>
    %cst_84 = arith.constant 0.000000e+00 : f32
    %119 = vector.broadcast %cst_84 : f32 to vector<8x256xf32>
    %c0_85 = arith.constant 0 : index
    %c111_86 = arith.constant 111 : index
    %120 = vector.load %arg13[%c0_85, %c111_86] : memref<8x512xf32, #tpu.memory_space<vmem>>, vector<8x256xf32>
    %c0_87 = arith.constant 0 : index
    %c0_88 = arith.constant 0 : index
    %c0_89 = arith.constant 0 : index
    %c0_90 = arith.constant 0 : index
    %121 = vector.load %arg8[%c0_87, %c0_88, %c0_89, %c0_90] : memref<3x3x8x8xf32, #tpu.memory_space<vmem>>, vector<1x1x8x8xf32>
    %122 = vector.shape_cast %121 : vector<1x1x8x8xf32> to vector<8x8xf32>
    %cst_91 = arith.constant dense<0.000000e+00> : vector<8x256xf32>
    %123 = tpu.matmul %122, %120, %cst_91 {dimension_numbers = #tpu.dot_dimension_numbers<[1], [0], [0], [1], [0, 0, 1, 1], [], []>} : vector<8x8xf32>, vector<8x256xf32>, vector<8x256xf32> -> vector<8x256xf32>
    %124 = arith.addf %119, %123 : vector<8x256xf32>
    %c0_92 = arith.constant 0 : index
    %c127_93 = arith.constant 127 : index
    %125 = vector.load %arg13[%c0_92, %c127_93] : memref<8x512xf32, #tpu.memory_space<vmem>>, vector<8x256xf32>
    %c1_94 = arith.constant 1 : index
    %c0_95 = arith.constant 0 : index
    %c0_96 = arith.constant 0 : index
    %c0_97 = arith.constant 0 : index
    %126 = vector.load %arg8[%c1_94, %c0_95, %c0_96, %c0_97] : memref<3x3x8x8xf32, #tpu.memory_space<vmem>>, vector<1x1x8x8xf32>
    %127 = vector.shape_cast %126 : vector<1x1x8x8xf32> to vector<8x8xf32>
    %cst_98 = arith.constant dense<0.000000e+00> : vector<8x256xf32>
    %128 = tpu.matmul %127, %125, %cst_98 {dimension_numbers = #tpu.dot_dimension_numbers<[1], [0], [0], [1], [0, 0, 1, 1], [], []>} : vector<8x8xf32>, vector<8x256xf32>, vector<8x256xf32> -> vector<8x256xf32>
    %129 = arith.addf %124, %128 : vector<8x256xf32>
    %c0_99 = arith.constant 0 : index
    %c143_100 = arith.constant 143 : index
    %130 = vector.load %arg13[%c0_99, %c143_100] : memref<8x512xf32, #tpu.memory_space<vmem>>, vector<8x256xf32>
    %c2_101 = arith.constant 2 : index
    %c0_102 = arith.constant 0 : index
    %c0_103 = arith.constant 0 : index
    %c0_104 = arith.constant 0 : index
    %131 = vector.load %arg8[%c2_101, %c0_102, %c0_103, %c0_104] : memref<3x3x8x8xf32, #tpu.memory_space<vmem>>, vector<1x1x8x8xf32>
    %132 = vector.shape_cast %131 : vector<1x1x8x8xf32> to vector<8x8xf32>
    %cst_105 = arith.constant dense<0.000000e+00> : vector<8x256xf32>
    %133 = tpu.matmul %132, %130, %cst_105 {dimension_numbers = #tpu.dot_dimension_numbers<[1], [0], [0], [1], [0, 0, 1, 1], [], []>} : vector<8x8xf32>, vector<8x256xf32>, vector<8x256xf32> -> vector<8x256xf32>
    %134 = arith.addf %129, %133 : vector<8x256xf32>
    %135 = vector.broadcast %44 : vector<1x256xf32> to vector<8x256xf32>
    %136 = arith.mulf %134, %135 : vector<8x256xf32>
    %137 = arith.addf %118, %136 : vector<8x256xf32>
    %cst_106 = arith.constant 0.000000e+00 : f32
    %138 = vector.broadcast %cst_106 : f32 to vector<8x256xf32>
    %c0_107 = arith.constant 0 : index
    %c112_108 = arith.constant 112 : index
    %139 = vector.load %arg13[%c0_107, %c112_108] : memref<8x512xf32, #tpu.memory_space<vmem>>, vector<8x256xf32>
    %c0_109 = arith.constant 0 : index
    %c1_110 = arith.constant 1 : index
    %c0_111 = arith.constant 0 : index
    %c0_112 = arith.constant 0 : index
    %140 = vector.load %arg8[%c0_109, %c1_110, %c0_111, %c0_112] : memref<3x3x8x8xf32, #tpu.memory_space<vmem>>, vector<1x1x8x8xf32>
    %141 = vector.shape_cast %140 : vector<1x1x8x8xf32> to vector<8x8xf32>
    %cst_113 = arith.constant dense<0.000000e+00> : vector<8x256xf32>
    %142 = tpu.matmul %141, %139, %cst_113 {dimension_numbers = #tpu.dot_dimension_numbers<[1], [0], [0], [1], [0, 0, 1, 1], [], []>} : vector<8x8xf32>, vector<8x256xf32>, vector<8x256xf32> -> vector<8x256xf32>
    %143 = arith.addf %138, %142 : vector<8x256xf32>
    %c0_114 = arith.constant 0 : index
    %c128_115 = arith.constant 128 : index
    %144 = vector.load %arg13[%c0_114, %c128_115] : memref<8x512xf32, #tpu.memory_space<vmem>>, vector<8x256xf32>
    %c1_116 = arith.constant 1 : index
    %c1_117 = arith.constant 1 : index
    %c0_118 = arith.constant 0 : index
    %c0_119 = arith.constant 0 : index
    %145 = vector.load %arg8[%c1_116, %c1_117, %c0_118, %c0_119] : memref<3x3x8x8xf32, #tpu.memory_space<vmem>>, vector<1x1x8x8xf32>
    %146 = vector.shape_cast %145 : vector<1x1x8x8xf32> to vector<8x8xf32>
    %cst_120 = arith.constant dense<0.000000e+00> : vector<8x256xf32>
    %147 = tpu.matmul %146, %144, %cst_120 {dimension_numbers = #tpu.dot_dimension_numbers<[1], [0], [0], [1], [0, 0, 1, 1], [], []>} : vector<8x8xf32>, vector<8x256xf32>, vector<8x256xf32> -> vector<8x256xf32>
    %148 = arith.addf %143, %147 : vector<8x256xf32>
    %c0_121 = arith.constant 0 : index
    %c144_122 = arith.constant 144 : index
    %149 = vector.load %arg13[%c0_121, %c144_122] : memref<8x512xf32, #tpu.memory_space<vmem>>, vector<8x256xf32>
    %c2_123 = arith.constant 2 : index
    %c1_124 = arith.constant 1 : index
    %c0_125 = arith.constant 0 : index
    %c0_126 = arith.constant 0 : index
    %150 = vector.load %arg8[%c2_123, %c1_124, %c0_125, %c0_126] : memref<3x3x8x8xf32, #tpu.memory_space<vmem>>, vector<1x1x8x8xf32>
    %151 = vector.shape_cast %150 : vector<1x1x8x8xf32> to vector<8x8xf32>
    %cst_127 = arith.constant dense<0.000000e+00> : vector<8x256xf32>
    %152 = tpu.matmul %151, %149, %cst_127 {dimension_numbers = #tpu.dot_dimension_numbers<[1], [0], [0], [1], [0, 0, 1, 1], [], []>} : vector<8x8xf32>, vector<8x256xf32>, vector<8x256xf32> -> vector<8x256xf32>
    %153 = arith.addf %148, %152 : vector<8x256xf32>
    %154 = arith.addf %137, %153 : vector<8x256xf32>
    %cst_128 = arith.constant 0.000000e+00 : f32
    %155 = vector.broadcast %cst_128 : f32 to vector<8x256xf32>
    %c0_129 = arith.constant 0 : index
    %c113_130 = arith.constant 113 : index
    %156 = vector.load %arg13[%c0_129, %c113_130] : memref<8x512xf32, #tpu.memory_space<vmem>>, vector<8x256xf32>
    %c0_131 = arith.constant 0 : index
    %c2_132 = arith.constant 2 : index
    %c0_133 = arith.constant 0 : index
    %c0_134 = arith.constant 0 : index
    %157 = vector.load %arg8[%c0_131, %c2_132, %c0_133, %c0_134] : memref<3x3x8x8xf32, #tpu.memory_space<vmem>>, vector<1x1x8x8xf32>
    %158 = vector.shape_cast %157 : vector<1x1x8x8xf32> to vector<8x8xf32>
    %cst_135 = arith.constant dense<0.000000e+00> : vector<8x256xf32>
    %159 = tpu.matmul %158, %156, %cst_135 {dimension_numbers = #tpu.dot_dimension_numbers<[1], [0], [0], [1], [0, 0, 1, 1], [], []>} : vector<8x8xf32>, vector<8x256xf32>, vector<8x256xf32> -> vector<8x256xf32>
    %160 = arith.addf %155, %159 : vector<8x256xf32>
    %c0_136 = arith.constant 0 : index
    %c129_137 = arith.constant 129 : index
    %161 = vector.load %arg13[%c0_136, %c129_137] : memref<8x512xf32, #tpu.memory_space<vmem>>, vector<8x256xf32>
    %c1_138 = arith.constant 1 : index
    %c2_139 = arith.constant 2 : index
    %c0_140 = arith.constant 0 : index
    %c0_141 = arith.constant 0 : index
    %162 = vector.load %arg8[%c1_138, %c2_139, %c0_140, %c0_141] : memref<3x3x8x8xf32, #tpu.memory_space<vmem>>, vector<1x1x8x8xf32>
    %163 = vector.shape_cast %162 : vector<1x1x8x8xf32> to vector<8x8xf32>
    %cst_142 = arith.constant dense<0.000000e+00> : vector<8x256xf32>
    %164 = tpu.matmul %163, %161, %cst_142 {dimension_numbers = #tpu.dot_dimension_numbers<[1], [0], [0], [1], [0, 0, 1, 1], [], []>} : vector<8x8xf32>, vector<8x256xf32>, vector<8x256xf32> -> vector<8x256xf32>
    %165 = arith.addf %160, %164 : vector<8x256xf32>
    %c0_143 = arith.constant 0 : index
    %c145_144 = arith.constant 145 : index
    %166 = vector.load %arg13[%c0_143, %c145_144] : memref<8x512xf32, #tpu.memory_space<vmem>>, vector<8x256xf32>
    %c2_145 = arith.constant 2 : index
    %c2_146 = arith.constant 2 : index
    %c0_147 = arith.constant 0 : index
    %c0_148 = arith.constant 0 : index
    %167 = vector.load %arg8[%c2_145, %c2_146, %c0_147, %c0_148] : memref<3x3x8x8xf32, #tpu.memory_space<vmem>>, vector<1x1x8x8xf32>
    %168 = vector.shape_cast %167 : vector<1x1x8x8xf32> to vector<8x8xf32>
    %cst_149 = arith.constant dense<0.000000e+00> : vector<8x256xf32>
    %169 = tpu.matmul %168, %166, %cst_149 {dimension_numbers = #tpu.dot_dimension_numbers<[1], [0], [0], [1], [0, 0, 1, 1], [], []>} : vector<8x8xf32>, vector<8x256xf32>, vector<8x256xf32> -> vector<8x256xf32>
    %170 = arith.addf %165, %169 : vector<8x256xf32>
    %171 = vector.broadcast %48 : vector<1x256xf32> to vector<8x256xf32>
    %172 = arith.mulf %170, %171 : vector<8x256xf32>
    %173 = arith.addf %154, %172 : vector<8x256xf32>
    %c0_150 = arith.constant 0 : index
    %c0_151 = arith.constant 0 : index
    %174 = vector.load %arg9[%c0_150, %c0_151] : memref<8x1xf32, #tpu.memory_space<vmem>>, vector<8x1xf32>
    %175 = vector.broadcast %174 : vector<8x1xf32> to vector<8x256xf32>
    %176 = arith.addf %173, %175 : vector<8x256xf32>
    %177 = arith.negf %176 : vector<8x256xf32>
    %178 = math.exp %177 : vector<8x256xf32>
    %cst_152 = arith.constant 1.000000e+00 : f32
    %179 = vector.broadcast %cst_152 : f32 to vector<8x256xf32>
    %180 = arith.addf %179, %178 : vector<8x256xf32>
    %181 = arith.divf %179, %180 : vector<8x256xf32>
    %182 = arith.mulf %176, %181 : vector<8x256xf32>
    %c0_153 = arith.constant 0 : index
    %c0_154 = arith.constant 0 : index
    %c0_155 = arith.constant 0 : index
    %183 = vector.load %arg10[%c0_153, %c0_154, %c0_155] : memref<4x16x8xf32, #tpu.memory_space<vmem>>, vector<1x16x8xf32>
    %184 = vector.shape_cast %183 : vector<1x16x8xf32> to vector<16x8xf32>
    %cst_156 = arith.constant dense<0.000000e+00> : vector<16x256xf32>
    %185 = tpu.matmul %184, %12, %cst_156 {dimension_numbers = #tpu.dot_dimension_numbers<[1], [0], [0], [1], [0, 0, 1, 1], [], []>} : vector<16x8xf32>, vector<8x256xf32>, vector<16x256xf32> -> vector<16x256xf32>
    %c1_157 = arith.constant 1 : index
    %c0_158 = arith.constant 0 : index
    %c0_159 = arith.constant 0 : index
    %186 = vector.load %arg10[%c1_157, %c0_158, %c0_159] : memref<4x16x8xf32, #tpu.memory_space<vmem>>, vector<1x16x8xf32>
    %187 = vector.shape_cast %186 : vector<1x16x8xf32> to vector<16x8xf32>
    %cst_160 = arith.constant dense<0.000000e+00> : vector<16x256xf32>
    %188 = tpu.matmul %187, %23, %cst_160 {dimension_numbers = #tpu.dot_dimension_numbers<[1], [0], [0], [1], [0, 0, 1, 1], [], []>} : vector<16x8xf32>, vector<8x256xf32>, vector<16x256xf32> -> vector<16x256xf32>
    %189 = arith.addf %185, %188 : vector<16x256xf32>
    %c2_161 = arith.constant 2 : index
    %c0_162 = arith.constant 0 : index
    %c0_163 = arith.constant 0 : index
    %190 = vector.load %arg10[%c2_161, %c0_162, %c0_163] : memref<4x16x8xf32, #tpu.memory_space<vmem>>, vector<1x16x8xf32>
    %191 = vector.shape_cast %190 : vector<1x16x8xf32> to vector<16x8xf32>
    %cst_164 = arith.constant dense<0.000000e+00> : vector<16x256xf32>
    %192 = tpu.matmul %191, %116, %cst_164 {dimension_numbers = #tpu.dot_dimension_numbers<[1], [0], [0], [1], [0, 0, 1, 1], [], []>} : vector<16x8xf32>, vector<8x256xf32>, vector<16x256xf32> -> vector<16x256xf32>
    %193 = arith.addf %189, %192 : vector<16x256xf32>
    %c3 = arith.constant 3 : index
    %c0_165 = arith.constant 0 : index
    %c0_166 = arith.constant 0 : index
    %194 = vector.load %arg10[%c3, %c0_165, %c0_166] : memref<4x16x8xf32, #tpu.memory_space<vmem>>, vector<1x16x8xf32>
    %195 = vector.shape_cast %194 : vector<1x16x8xf32> to vector<16x8xf32>
    %cst_167 = arith.constant dense<0.000000e+00> : vector<16x256xf32>
    %196 = tpu.matmul %195, %182, %cst_167 {dimension_numbers = #tpu.dot_dimension_numbers<[1], [0], [0], [1], [0, 0, 1, 1], [], []>} : vector<16x8xf32>, vector<8x256xf32>, vector<16x256xf32> -> vector<16x256xf32>
    %197 = arith.addf %193, %196 : vector<16x256xf32>
    %c0_168 = arith.constant 0 : index
    %c0_169 = arith.constant 0 : index
    %198 = vector.load %arg11[%c0_168, %c0_169] : memref<16x1xf32, #tpu.memory_space<vmem>>, vector<16x1xf32>
    %199 = vector.broadcast %198 : vector<16x1xf32> to vector<16x256xf32>
    %200 = arith.addf %197, %199 : vector<16x256xf32>
    %201 = arith.negf %200 : vector<16x256xf32>
    %202 = math.exp %201 : vector<16x256xf32>
    %cst_170 = arith.constant 1.000000e+00 : f32
    %203 = vector.broadcast %cst_170 : f32 to vector<16x256xf32>
    %204 = arith.addf %203, %202 : vector<16x256xf32>
    %205 = arith.divf %203, %204 : vector<16x256xf32>
    %206 = arith.mulf %200, %205 : vector<16x256xf32>
    %c0_171 = arith.constant 0 : index
    %c0_172 = arith.constant 0 : index
    %c0_173 = arith.constant 0 : index
    %207 = vector.load %arg12[%c0_171, %c0_172, %c0_173] : memref<1x16x256xf32, #tpu.memory_space<vmem>>, vector<1x16x256xf32>
    %208 = vector.shape_cast %207 : vector<1x16x256xf32> to vector<16x256xf32>
    %209 = vector.shape_cast %206 : vector<16x256xf32> to vector<1x16x256xf32>
    tpu.vector_store %arg12[%c0_171, %c0_172, %c0_173], %209 {strides = array<i32>} : memref<1x16x256xf32, #tpu.memory_space<vmem>>, vector<1x16x256xf32>,
    return
  }
  func.func @transform_0(%arg0: i32) -> (i32, i32, i32) {
    %c0_i32 = arith.constant 0 : i32
    %c0_i32_0 = arith.constant 0 : i32
    %c0_i32_1 = arith.constant 0 : i32
    return %arg0, %c0_i32, %c0_i32_0 : i32, i32, i32
  }
  func.func @transform_1(%arg0: i32) -> (i32, i32) {
    %c0_i32 = arith.constant 0 : i32
    %c0_i32_0 = arith.constant 0 : i32
    %c0_i32_1 = arith.constant 0 : i32
    return %c0_i32, %c0_i32_0 : i32, i32
  }
  func.func @transform_2(%arg0: i32) -> (i32, i32) {
    %c0_i32 = arith.constant 0 : i32
    %c0_i32_0 = arith.constant 0 : i32
    %c0_i32_1 = arith.constant 0 : i32
    return %c0_i32, %c0_i32_0 : i32, i32
  }
  func.func @transform_3(%arg0: i32) -> (i32, i32) {
    %c0_i32 = arith.constant 0 : i32
    %c0_i32_0 = arith.constant 0 : i32
    %c0_i32_1 = arith.constant 0 : i32
    return %c0_i32, %c0_i32_0 : i32, i32
  }
  func.func @transform_4(%arg0: i32) -> (i32, i32) {
    %c0_i32 = arith.constant 0 : i32
    %c0_i32_0 = arith.constant 0 : i32
    %c0_i32_1 = arith.constant 0 : i32
    return %c0_i32, %c0_i32_0 : i32, i32
  }
  func.func @transform_5(%arg0: i32) -> (i32, i32, i32, i32) {
    %c0_i32 = arith.constant 0 : i32
    %c0_i32_0 = arith.constant 0 : i32
    %c0_i32_1 = arith.constant 0 : i32
    %c0_i32_2 = arith.constant 0 : i32
    %c0_i32_3 = arith.constant 0 : i32
    return %c0_i32, %c0_i32_0, %c0_i32_1, %c0_i32_2 : i32, i32, i32, i32
  }
  func.func @transform_6(%arg0: i32) -> (i32, i32) {
    %c0_i32 = arith.constant 0 : i32
    %c0_i32_0 = arith.constant 0 : i32
    %c0_i32_1 = arith.constant 0 : i32
    return %c0_i32, %c0_i32_0 : i32, i32
  }
  func.func @transform_7(%arg0: i32) -> (i32, i32, i32, i32) {
    %c0_i32 = arith.constant 0 : i32
    %c0_i32_0 = arith.constant 0 : i32
    %c0_i32_1 = arith.constant 0 : i32
    %c0_i32_2 = arith.constant 0 : i32
    %c0_i32_3 = arith.constant 0 : i32
    return %c0_i32, %c0_i32_0, %c0_i32_1, %c0_i32_2 : i32, i32, i32, i32
  }
  func.func @transform_8(%arg0: i32) -> (i32, i32) {
    %c0_i32 = arith.constant 0 : i32
    %c0_i32_0 = arith.constant 0 : i32
    %c0_i32_1 = arith.constant 0 : i32
    return %c0_i32, %c0_i32_0 : i32, i32
  }
  func.func @transform_9(%arg0: i32) -> (i32, i32, i32) {
    %c0_i32 = arith.constant 0 : i32
    %c0_i32_0 = arith.constant 0 : i32
    %c0_i32_1 = arith.constant 0 : i32
    %c0_i32_2 = arith.constant 0 : i32
    return %c0_i32, %c0_i32_0, %c0_i32_1 : i32, i32, i32
  }
  func.func @transform_10(%arg0: i32) -> (i32, i32) {
    %c0_i32 = arith.constant 0 : i32
    %c0_i32_0 = arith.constant 0 : i32
    %c0_i32_1 = arith.constant 0 : i32
    return %c0_i32, %c0_i32_0 : i32, i32
  }
  func.func @transform_11(%arg0: i32) -> (i32, i32, i32) {
    %c0_i32 = arith.constant 0 : i32
    %c0_i32_0 = arith.constant 0 : i32
    %c0_i32_1 = arith.constant 0 : i32
    return %arg0, %c0_i32, %c0_i32_0 : i32, i32, i32
  }
}

</mosaic_0001>

<llo_original>
// kernel: tpu_custom_call.1
$region0: #{tpu_custom_call.1}
  #allocation0 [shape = 'u32[]', space=smem, size = 0x4, offset = 0x4, fixed_abs, tag = 'smem constant byte address 0x4 - core index']
  #allocation1 [shape = 'u32[144,128]{1,0:T(1,128)}', space=vmem, size = 0x12000, scoped, tag = 'internal scratch']
  #allocation2 [shape = 'f32[8,512]{1,0:T(8,128)}', space=vmem, size = 0x4000, scoped, tag = 'scratch operand']
  %s0 = inlined_call_operand.hbm [shape: f32[2,4,256], index: 0, kind: input, shape index: {}]
  %s1 = inlined_call_operand.vmem [shape: f32[8,4], index: 1, kind: input, shape index: {}]
  %s2 = inlined_call_operand.vmem [shape: f32[8,1], index: 2, kind: input, shape index: {}]
  %s3 = inlined_call_operand.vmem [shape: f32[8,4], index: 3, kind: input, shape index: {}]
  %s4 = inlined_call_operand.vmem [shape: f32[8,1], index: 4, kind: input, shape index: {}]
  %s5 = inlined_call_operand.vmem [shape: f32[3,3,8,8], index: 5, kind: input, shape index: {}]
  %s6 = inlined_call_operand.vmem [shape: f32[8,1], index: 6, kind: input, shape index: {}]
  %s7 = inlined_call_operand.vmem [shape: f32[3,3,8,8], index: 7, kind: input, shape index: {}]
  %s8 = inlined_call_operand.vmem [shape: f32[8,1], index: 8, kind: input, shape index: {}]
  %s9 = inlined_call_operand.vmem [shape: f32[4,16,8], index: 9, kind: input, shape index: {}]
  %s10 = inlined_call_operand.vmem [shape: f32[16,1], index: 10, kind: input, shape index: {}]
  %s11 = inlined_call_operand.hbm [shape: f32[2,16,256], index: 11, kind: output, shape index: {}]
  %s12 = sld [smem:[#allocation0]]
  $region81: #{tpu_custom_call.1} parent=0
    _
  %s14 = ssub.s32 1, %s12
  %s15 = scalar_select 0, %s14, %s12
  $region1: #{tpu_custom_call.1} parent=0
    #allocation3 [shape = 'u8[8192]{0}', space=vmem, size = 0x2000, scoped, tag = 'input window, operand 0']
    #allocation4 [shape = 's32[2]{0}', space=sflag, size = 0x8, scoped, tag = 'scoped memory for tpu_custom_call.1']
    #allocation5 [shape = 's32[2]{0}', space=sflag, size = 0x8, scoped, tag = 'scoped memory for tpu_custom_call.1']
    #allocation6 [shape = 'u8[32768]{0}', space=vmem, size = 0x8000, scoped, tag = 'output window, operand 0']
    %16 = vsyncpa [#allocation4], 0
    %s17 = scalar_lea.sflag [#allocation4], 1
    %18 = vsyncpa %s17, 0
    %19 = vsyncpa [#allocation5], 0
    %s20 = scalar_lea.sflag [#allocation5], 1
    %21 = vsyncpa %s20, 0
    loop: start=0, step=1, limit=4
    $region2: #{tpu_custom_call.1} parent=1 // loop_pre_header
      _
    $region3: #{tpu_custom_call.1} parent=1 // loop_header
      %s23 = sphi 0, %s27
      %p24 = scmp.ge.s32.totalorder %s23, 4
      %s33 = sphi 0, %s35
      %s36 = sphi 0, %s33
      %s37 = sphi 0, %s36
      %s53 = sphi 0, %s37
      %s57 = sphi 0, %s57
      %s59 = sphi 0, %s57
      %s60 = sphi 0, %s59
      %s74 = sphi 0, %s60
      %s78 = sphi 0, %s78
      %s80 = sphi 0, %s78
      %s81 = sphi 0, %s80
      %s95 = sphi 0, %s81
      %s99 = sphi 0, %s99
      %s101 = sphi 0, %s99
      %s102 = sphi 0, %s101
      %s116 = sphi 0, %s102
      %s120 = sphi 0, %s120
      %s122 = sphi 0, %s120
      %s123 = sphi 0, %s122
      %s137 = sphi 0, %s123
      %s141 = sphi 0, %s141
      %s143 = sphi 0, %s141
      %s144 = sphi 0, %s143
      %s158 = sphi 0, %s144
      %s162 = sphi 0, %s162
      %s164 = sphi 0, %s162
      %s165 = sphi 0, %s164
      %s179 = sphi 0, %s165
      %s183 = sphi 0, %s183
      %s185 = sphi 0, %s183
      %s186 = sphi 0, %s185
      %s200 = sphi 0, %s186
      %s204 = sphi 0, %s204
      %s206 = sphi 0, %s204
      %s207 = sphi 0, %s206
      %s221 = sphi 0, %s207
      %s225 = sphi 0, %s225
      %s227 = sphi 0, %s225
      %s228 = sphi 0, %s227
      %s242 = sphi 0, %s228
      %s246 = sphi 0, %s246
      %s248 = sphi 0, %s246
      %s249 = sphi 0, %s248
      %s263 = sphi 0, %s249
      %s269 = sphi 0, %s271
      %s272 = sphi 0, %s269
      %s273 = sphi 0, %s272
      %s289 = sphi 0, %s273
    $region4: #{tpu_custom_call.1} parent=1 // loop_header_branch
      %26 = sbr.rel (%p24) target = $region8
    $region5: #{tpu_custom_call.1} parent=1 // loop_body
      %s28 = ssub.s32 %s23, 1
      %s29 = ssub.s32 %s23, 2
      %s30 = sadd.s32 %s23, 1
      %s31 = ssub.s32 %s23, %s30
      %p32 = scmp.eq.s32.totalorder %s31, 0
      %s34 = sadd.s32 %s33, 1
      %s35 = scalar_select %p32, %s33, %s34
      %p38 = pneg %p32
      %p39 = scmp.eq.s32.totalorder %s23, 1
      %p40 = por %p38, %p39
      %p41 = scmp.ne.s32.totalorder %s33, %s36
      %p42 = scmp.eq.s32.totalorder %s23, 0
      %p43 = por %p41, %p42
      %p44 = scmp.ne.s32.totalorder %s33, %s36
      %p45 = scmp.eq.s32.totalorder %s28, 1
      %p46 = por %p44, %p45
      %p47 = scmp.ne.s32.totalorder %s36, %s37
      %p48 = scmp.eq.s32.totalorder %s28, 0
      %p49 = por %p47, %p48
      %p50 = scmp.ne.s32.totalorder %s36, %s37
      %p51 = scmp.eq.s32.totalorder %s29, 1
      %p52 = por %p50, %p51
      %p54 = scmp.ne.s32.totalorder %s37, %s53
      %p55 = scmp.eq.s32.totalorder %s29, 0
      %p56 = por %p54, %p55
      %s58 = sadd.s32 %s57, 1
      %p61 = scmp.eq.s32.totalorder %s23, 1
      %p62 = scmp.ne.s32.totalorder %s57, %s59
      %p63 = scmp.eq.s32.totalorder %s23, 0
      %p64 = por %p62, %p63
      %p65 = scmp.ne.s32.totalorder %s57, %s59
      %p66 = scmp.eq.s32.totalorder %s28, 1
      %p67 = por %p65, %p66
      %p68 = scmp.ne.s32.totalorder %s59, %s60
      %p69 = scmp.eq.s32.totalorder %s28, 0
      %p70 = por %p68, %p69
      %p71 = scmp.ne.s32.totalorder %s59, %s60
      %p72 = scmp.eq.s32.totalorder %s29, 1
      %p73 = por %p71, %p72
      %p75 = scmp.ne.s32.totalorder %s60, %s74
      %p76 = scmp.eq.s32.totalorder %s29, 0
      %p77 = por %p75, %p76
      %s79 = sadd.s32 %s78, 1
      %p82 = scmp.eq.s32.totalorder %s23, 1
      %p83 = scmp.ne.s32.totalorder %s78, %s80
      %p84 = scmp.eq.s32.totalorder %s23, 0
      %p85 = por %p83, %p84
      %p86 = scmp.ne.s32.totalorder %s78, %s80
      %p87 = scmp.eq.s32.totalorder %s28, 1
      %p88 = por %p86, %p87
      %p89 = scmp.ne.s32.totalorder %s80, %s81
      %p90 = scmp.eq.s32.totalorder %s28, 0
      %p91 = por %p89, %p90
      %p92 = scmp.ne.s32.totalorder %s80, %s81
      %p93 = scmp.eq.s32.totalorder %s29, 1
      %p94 = por %p92, %p93
      %p96 = scmp.ne.s32.totalorder %s81, %s95
      %p97 = scmp.eq.s32.totalorder %s29, 0
      %p98 = por %p96, %p97
      %s100 = sadd.s32 %s99, 1
      %p103 = scmp.eq.s32.totalorder %s23, 1
      %p104 = scmp.ne.s32.totalorder %s99, %s101
      %p105 = scmp.eq.s32.totalorder %s23, 0
      %p106 = por %p104, %p105
      %p107 = scmp.ne.s32.totalorder %s99, %s101
      %p108 = scmp.eq.s32.totalorder %s28, 1
      %p109 = por %p107, %p108
      %p110 = scmp.ne.s32.totalorder %s101, %s102
      %p111 = scmp.eq.s32.totalorder %s28, 0
      %p112 = por %p110, %p111
      %p113 = scmp.ne.s32.totalorder %s101, %s102
      %p114 = scmp.eq.s32.totalorder %s29, 1
      %p115 = por %p113, %p114
      %p117 = scmp.ne.s32.totalorder %s102, %s116
      %p118 = scmp.eq.s32.totalorder %s29, 0
      %p119 = por %p117, %p118
      %s121 = sadd.s32 %s120, 1
      %p124 = scmp.eq.s32.totalorder %s23, 1
      %p125 = scmp.ne.s32.totalorder %s120, %s122
      %p126 = scmp.eq.s32.totalorder %s23, 0
      %p127 = por %p125, %p126
      %p128 = scmp.ne.s32.totalorder %s120, %s122
      %p129 = scmp.eq.s32.totalorder %s28, 1
      %p130 = por %p128, %p129
      %p131 = scmp.ne.s32.totalorder %s122, %s123
      %p132 = scmp.eq.s32.totalorder %s28, 0
      %p133 = por %p131, %p132
      %p134 = scmp.ne.s32.totalorder %s122, %s123
      %p135 = scmp.eq.s32.totalorder %s29, 1
      %p136 = por %p134, %p135
      %p138 = scmp.ne.s32.totalorder %s123, %s137
      %p139 = scmp.eq.s32.totalorder %s29, 0
      %p140 = por %p138, %p139
      %s142 = sadd.s32 %s141, 1
      %p145 = scmp.eq.s32.totalorder %s23, 1
      %p146 = scmp.ne.s32.totalorder %s141, %s143
      %p147 = scmp.eq.s32.totalorder %s23, 0
      %p148 = por %p146, %p147
      %p149 = scmp.ne.s32.totalorder %s141, %s143
      %p150 = scmp.eq.s32.totalorder %s28, 1
      %p151 = por %p149, %p150
      %p152 = scmp.ne.s32.totalorder %s143, %s144
      %p153 = scmp.eq.s32.totalorder %s28, 0
      %p154 = por %p152, %p153
      %p155 = scmp.ne.s32.totalorder %s143, %s144
      %p156 = scmp.eq.s32.totalorder %s29, 1
      %p157 = por %p155, %p156
      %p159 = scmp.ne.s32.totalorder %s144, %s158
      %p160 = scmp.eq.s32.totalorder %s29, 0
      %p161 = por %p159, %p160
      %s163 = sadd.s32 %s162, 1
      %p166 = scmp.eq.s32.totalorder %s23, 1
      %p167 = scmp.ne.s32.totalorder %s162, %s164
      %p168 = scmp.eq.s32.totalorder %s23, 0
      %p169 = por %p167, %p168
      %p170 = scmp.ne.s32.totalorder %s162, %s164
      %p171 = scmp.eq.s32.totalorder %s28, 1
      %p172 = por %p170, %p171
      %p173 = scmp.ne.s32.totalorder %s164, %s165
      %p174 = scmp.eq.s32.totalorder %s28, 0
      %p175 = por %p173, %p174
      %p176 = scmp.ne.s32.totalorder %s164, %s165
      %p177 = scmp.eq.s32.totalorder %s29, 1
      %p178 = por %p176, %p177
      %p180 = scmp.ne.s32.totalorder %s165, %s179
      %p181 = scmp.eq.s32.totalorder %s29, 0
      %p182 = por %p180, %p181
      %s184 = sadd.s32 %s183, 1
      %p187 = scmp.eq.s32.totalorder %s23, 1
      %p188 = scmp.ne.s32.totalorder %s183, %s185
      %p189 = scmp.eq.s32.totalorder %s23, 0
      %p190 = por %p188, %p189
      %p191 = scmp.ne.s32.totalorder %s183, %s185
      %p192 = scmp.eq.s32.totalorder %s28, 1
      %p193 = por %p191, %p192
      %p194 = scmp.ne.s32.totalorder %s185, %s186
      %p195 = scmp.eq.s32.totalorder %s28, 0
      %p196 = por %p194, %p195
      %p197 = scmp.ne.s32.totalorder %s185, %s186
      %p198 = scmp.eq.s32.totalorder %s29, 1
      %p199 = por %p197, %p198
      %p201 = scmp.ne.s32.totalorder %s186, %s200
      %p202 = scmp.eq.s32.totalorder %s29, 0
      %p203 = por %p201, %p202
      %s205 = sadd.s32 %s204, 1
      %p208 = scmp.eq.s32.totalorder %s23, 1
      %p209 = scmp.ne.s32.totalorder %s204, %s206
      %p210 = scmp.eq.s32.totalorder %s23, 0
      %p211 = por %p209, %p210
      %p212 = scmp.ne.s32.totalorder %s204, %s206
      %p213 = scmp.eq.s32.totalorder %s28, 1
      %p214 = por %p212, %p213
      %p215 = scmp.ne.s32.totalorder %s206, %s207
      %p216 = scmp.eq.s32.totalorder %s28, 0
      %p217 = por %p215, %p216
      %p218 = scmp.ne.s32.totalorder %s206, %s207
      %p219 = scmp.eq.s32.totalorder %s29, 1
      %p220 = por %p218, %p219
      %p222 = scmp.ne.s32.totalorder %s207, %s221
      %p223 = scmp.eq.s32.totalorder %s29, 0
      %p224 = por %p222, %p223
      %s226 = sadd.s32 %s225, 1
      %p229 = scmp.eq.s32.totalorder %s23, 1
      %p230 = scmp.ne.s32.totalorder %s225, %s227
      %p231 = scmp.eq.s32.totalorder %s23, 0
      %p232 = por %p230, %p231
      %p233 = scmp.ne.s32.totalorder %s225, %s227
      %p234 = scmp.eq.s32.totalorder %s28, 1
      %p235 = por %p233, %p234
      %p236 = scmp.ne.s32.totalorder %s227, %s228
      %p237 = scmp.eq.s32.totalorder %s28, 0
      %p238 = por %p236, %p237
      %p239 = scmp.ne.s32.totalorder %s227, %s228
      %p240 = scmp.eq.s32.totalorder %s29, 1
      %p241 = por %p239, %p240
      %p243 = scmp.ne.s32.totalorder %s228, %s242
      %p244 = scmp.eq.s32.totalorder %s29, 0
      %p245 = por %p243, %p244
      %s247 = sadd.s32 %s246, 1
      %p250 = scmp.eq.s32.totalorder %s23, 1
      %p251 = scmp.ne.s32.totalorder %s246, %s248
      %p252 = scmp.eq.s32.totalorder %s23, 0
      %p253 = por %p251, %p252
      %p254 = scmp.ne.s32.totalorder %s246, %s248
      %p255 = scmp.eq.s32.totalorder %s28, 1
      %p256 = por %p254, %p255
      %p257 = scmp.ne.s32.totalorder %s248, %s249
      %p258 = scmp.eq.s32.totalorder %s28, 0
      %p259 = por %p257, %p258
      %p260 = scmp.ne.s32.totalorder %s248, %s249
      %p261 = scmp.eq.s32.totalorder %s29, 1
      %p262 = por %p260, %p261
      %p264 = scmp.ne.s32.totalorder %s249, %s263
      %p265 = scmp.eq.s32.totalorder %s29, 0
      %p266 = por %p264, %p265
      %s267 = ssub.s32 %s23, %s30
      %p268 = scmp.eq.s32.totalorder %s267, 0
      %s270 = sadd.s32 %s269, 1
      %s271 = scalar_select %p268, %s269, %s270
      %p274 = pneg %p268
      %p275 = scmp.eq.s32.totalorder %s23, 1
      %p276 = por %p274, %p275
      %p277 = scmp.ne.s32.totalorder %s269, %s272
      %p278 = scmp.eq.s32.totalorder %s23, 0
      %p279 = por %p277, %p278
      %p280 = scmp.ne.s32.totalorder %s269, %s272
      %p281 = scmp.eq.s32.totalorder %s28, 1
      %p282 = por %p280, %p281
      %p283 = scmp.ne.s32.totalorder %s272, %s273
      %p284 = scmp.eq.s32.totalorder %s28, 0
      %p285 = por %p283, %p284
      %p286 = scmp.ne.s32.totalorder %s272, %s273
      %p287 = scmp.eq.s32.totalorder %s29, 1
      %p288 = por %p286, %p287
      %p290 = scmp.ne.s32.totalorder %s273, %s289
      %p291 = scmp.eq.s32.totalorder %s29, 0
      %p292 = por %p290, %p291
      %p293 = scmp.le.s32.totalorder 1, %s23
      %p294 = scmp.lt.s32.totalorder %s23, 3
      %p295 = pnand %p293, %p294
      %p296 = pneg %p295
      // Predicated region
      $region9: #{tpu_custom_call.1} parent=5 // pred_check
        _
      $region10: #{tpu_custom_call.1} parent=5 // pred_check_branch
        %298 = sbr.rel (%p295) target = $region12
      $region11: #{tpu_custom_call.1} parent=5 // pred_region
        %s299 = ssub.s32 %s23, 1
        // Predicated region
        $region13: #{tpu_custom_call.1} parent=11 // pred_check
          %p300 = pneg %p70
        $region14: #{tpu_custom_call.1} parent=11 // pred_check_branch
          %302 = sbr.rel (%p300) target = $region16
        $region15: #{tpu_custom_call.1} parent=11 // pred_region
          _
        $region16: #{tpu_custom_call.1} parent=11 // pred_fallthru
          _
        // Predicated region
        $region17: #{tpu_custom_call.1} parent=11 // pred_check
          %p303 = pneg %p91
        $region18: #{tpu_custom_call.1} parent=11 // pred_check_branch
          %305 = sbr.rel (%p303) target = $region20
        $region19: #{tpu_custom_call.1} parent=11 // pred_region
          _
        $region20: #{tpu_custom_call.1} parent=11 // pred_fallthru
          _
        // Predicated region
        $region21: #{tpu_custom_call.1} parent=11 // pred_check
          %p306 = pneg %p112
        $region22: #{tpu_custom_call.1} parent=11 // pred_check_branch
          %308 = sbr.rel (%p306) target = $region24
        $region23: #{tpu_custom_call.1} parent=11 // pred_region
          _
        $region24: #{tpu_custom_call.1} parent=11 // pred_fallthru
          _
        // Predicated region
        $region25: #{tpu_custom_call.1} parent=11 // pred_check
          %p309 = pneg %p133
        $region26: #{tpu_custom_call.1} parent=11 // pred_check_branch
          %311 = sbr.rel (%p309) target = $region28
        $region27: #{tpu_custom_call.1} parent=11 // pred_region
          _
        $region28: #{tpu_custom_call.1} parent=11 // pred_fallthru
          _
        // Predicated region
        $region29: #{tpu_custom_call.1} parent=11 // pred_check
          %p312 = pneg %p154
        $region30: #{tpu_custom_call.1} parent=11 // pred_check_branch
          %314 = sbr.rel (%p312) target = $region32
        $region31: #{tpu_custom_call.1} parent=11 // pred_region
          _
        $region32: #{tpu_custom_call.1} parent=11 // pred_fallthru
          _
        // Predicated region
        $region33: #{tpu_custom_call.1} parent=11 // pred_check
          %p315 = pneg %p175
        $region34: #{tpu_custom_call.1} parent=11 // pred_check_branch
          %317 = sbr.rel (%p315) target = $region36
        $region35: #{tpu_custom_call.1} parent=11 // pred_region
          _
        $region36: #{tpu_custom_call.1} parent=11 // pred_fallthru
          _
        // Predicated region
        $region37: #{tpu_custom_call.1} parent=11 // pred_check
          %p318 = pneg %p196
        $region38: #{tpu_custom_call.1} parent=11 // pred_check_branch
          %320 = sbr.rel (%p318) target = $region40
        $region39: #{tpu_custom_call.1} parent=11 // pred_region
          _
        $region40: #{tpu_custom_call.1} parent=11 // pred_fallthru
          _
        // Predicated region
        $region41: #{tpu_custom_call.1} parent=11 // pred_check
          %p321 = pneg %p217
        $region42: #{tpu_custom_call.1} parent=11 // pred_check_branch
          %323 = sbr.rel (%p321) target = $region44
        $region43: #{tpu_custom_call.1} parent=11 // pred_region
          _
        $region44: #{tpu_custom_call.1} parent=11 // pred_fallthru
          _
        // Predicated region
        $region45: #{tpu_custom_call.1} parent=11 // pred_check
          %p324 = pneg %p238
        $region46: #{tpu_custom_call.1} parent=11 // pred_check_branch
          %326 = sbr.rel (%p324) target = $region48
        $region47: #{tpu_custom_call.1} parent=11 // pred_region
          _
        $region48: #{tpu_custom_call.1} parent=11 // pred_fallthru
          _
        // Predicated region
        $region49: #{tpu_custom_call.1} parent=11 // pred_check
          %p327 = pneg %p259
        $region50: #{tpu_custom_call.1} parent=11 // pred_check_branch
          %329 = sbr.rel (%p327) target = $region52
        $region51: #{tpu_custom_call.1} parent=11 // pred_region
          _
        $region52: #{tpu_custom_call.1} parent=11 // pred_fallthru
          _
      $region12: #{tpu_custom_call.1} parent=5 // pred_fallthru
        _
      %p330 = scmp.lt.s32.totalorder %s23, 2
      // Predicated region
      $region53: #{tpu_custom_call.1} parent=5 // pred_check
        %p331 = pneg %p330
      $region54: #{tpu_custom_call.1} parent=5 // pred_check_branch
        %333 = sbr.rel (%p331) target = $region56
      $region55: #{tpu_custom_call.1} parent=5 // pred_region
        // Predicated region
        $region57: #{tpu_custom_call.1} parent=55 // pred_check
          %p334 = pneg %p43
        $region58: #{tpu_custom_call.1} parent=55 // pred_check_branch
          %336 = sbr.rel (%p334) target = $region60
        $region59: #{tpu_custom_call.1} parent=55 // pred_region
          %s337 = sand.u32 %s33, 1
          %s338 = scalar_lea.sflag [#allocation4], %s337
          %s339 = sand.u32 %s33, 1
          %s340 = smul.addr %s339, 8
          %s341 = scalar_lea.vmem [#allocation3], %s340
          %s343 = ssub.s32 128, 128
          %344 = vsyncadd %s338, %s343
          %s345 = smul.addr %s23, 2
          %s346 = smul.addr %s345, 64
          %s347 = scalar_lea.hbm %s0, %s346
          %s349 = sshll.u32 %s341, 4
          %s350 = int_to_ptr.vmem [resolvable:$true] %s349
          %352 = dma.hbm_to_vmem [thread:$0]  %s347, 128, %s350, %s338
        $region60: #{tpu_custom_call.1} parent=55 // pred_fallthru
          _
      $region56: #{tpu_custom_call.1} parent=5 // pred_fallthru
        _
      %p353 = scmp.le.s32.totalorder 1, %s23
      %p354 = scmp.lt.s32.totalorder %s23, 3
      %p355 = pnand %p353, %p354
      %p356 = pneg %p355
      // Predicated region
      $region61: #{tpu_custom_call.1} parent=5 // pred_check
        _
      $region62: #{tpu_custom_call.1} parent=5 // pred_check_branch
        %358 = sbr.rel (%p355) target = $region64
      $region63: #{tpu_custom_call.1} parent=5 // pred_region
        %s359 = ssub.s32 %s23, 1
        %s360 = sand.u32 %s36, 1
        %s361 = scalar_lea.sflag [#allocation4], %s360
        %s362 = sand.u32 %s36, 1
        %s363 = smul.addr %s362, 8
        %s364 = scalar_lea.vmem [#allocation3], %s363
        // Predicated region
        $region65: #{tpu_custom_call.1} parent=63 // pred_check
          %p365 = pneg %p49
        $region66: #{tpu_custom_call.1} parent=63 // pred_check_branch
          %367 = sbr.rel (%p365) target = $region68
        $region67: #{tpu_custom_call.1} parent=63 // pred_region
          %368 = dma.done %s361, 128
        $region68: #{tpu_custom_call.1} parent=63 // pred_fallthru
          _
        %s369 = sand.u32 %s36, 1
        %s370 = scalar_lea.sflag [#allocation4], %s369
        %s371 = sand.u32 %s36, 1
        %s372 = smul.addr %s371, 8
        %s373 = scalar_lea.vmem [#allocation3], %s372
        %p374 = pneg %p49
        %p375 = pneg %p46
        %p376 = pneg %p70
        %p377 = pneg %p67
        %p378 = pneg %p91
        %p379 = pneg %p88
        %p380 = pneg %p112
        %p381 = pneg %p109
        %p382 = pneg %p133
        %p383 = pneg %p130
        %p384 = pneg %p154
        %p385 = pneg %p151
        %p386 = pneg %p175
        %p387 = pneg %p172
        %p388 = pneg %p196
        %p389 = pneg %p193
        %p390 = pneg %p217
        %p391 = pneg %p214
        %p392 = pneg %p238
        %p393 = pneg %p235
        %p394 = pneg %p259
        %p395 = pneg %p256
        %p396 = pneg %p285
        %p397 = pneg %p282
        %s398 = sand.u32 %s272, 1
        %s399 = scalar_lea.sflag [#allocation5], %s398
        %s400 = sand.u32 %s272, 1
        %s401 = smul.addr %s400, 32
        %s402 = scalar_lea.vmem [#allocation6], %s401
        %v403 = vld [vmem:[%s364] sm:$0xff]
        %v404 = vld [vmem:[%s1] sm:$0xff]
        %v405 = vld [vmem:[%s2] sm:$0xff]
        %407 = vset.pattern.permute.xlu0 0
        %408 = vperm.xlu0 %407, %v405
        %v409 = vpop.permute.xlu0 %408
        %v412 = vcombine.high %v403, %v403
        %vm413 = vcmask 31744
        %v415 = vsel %vm413, %v404, 0
        %vm417 = vcmask 1043456
        %v418 = vsel %vm417, %v403, 0
        %v420 = vsel %vm417, %v412, 0
        %422 = vmatprep.subr.mxu0 %v420
        %423 = vmatpush1.msra.mxu0 %v418
        %424 = vmatprep.subr.mxu0 0.0
        %425 = vmatpush1.msra.mxu0 0.0
        %426 = vmatprep.subr.mxu0 0.0
        %427 = vmatpush1.msra.mxu0 0.0
        %428 = vmatprep.subr.mxu0 0.0
        %429 = vmatpush1.msra.mxu0 0.0
        %430 = vmatprep.subr.mxu0 0.0
        %431 = vmatpush1.msra.mxu0 0.0
        %432 = vmatprep.subr.mxu0 0.0
        %433 = vmatpush1.msra.mxu0 0.0
        %434 = vmatprep.subr.mxu0 0.0
        %435 = vmatpush1.msra.mxu0 0.0
        %436 = vmatprep.subr.mxu0 0.0
        %437 = vmatpush1.msra.mxu0 0.0
        %438 = vmatprep.subr.mxu0 0.0
        %439 = vmatpush1.msra.mxu0 0.0
        %440 = vmatprep.subr.mxu0 0.0
        %441 = vmatpush1.msra.mxu0 0.0
        %442 = vmatprep.subr.mxu0 0.0
        %443 = vmatpush1.msra.mxu0 0.0
        %444 = vmatprep.subr.mxu0 0.0
        %445 = vmatpush1.msra.mxu0 0.0
        %446 = vmatprep.subr.mxu0 0.0
        %447 = vmatpush1.msra.mxu0 0.0
        %448 = vmatprep.subr.mxu0 0.0
        %449 = vmatpush1.msra.mxu0 0.0
        %450 = vmatprep.subr.mxu0 0.0
        %451 = vmatpush1.msra.mxu0 0.0
        %452 = vmatprep.subr.mxu0 0.0
        %453 = vmatpush1.msra.mxu0 0.0
        %454 = vmatprep.subr.mxu0 0.0
        %455 = vmatpush1.msra.mxu0 0.0
        %456 = vmatprep.subr.mxu0 0.0
        %457 = vmatpush1.msra.mxu0 0.0
        %458 = vmatprep.subr.mxu0 0.0
        %459 = vmatpush1.msra.mxu0 0.0
        %460 = vmatprep.subr.mxu0 0.0
        %461 = vmatpush1.msra.mxu0 0.0
        %462 = vmatprep.subr.mxu0 0.0
        %463 = vmatpush1.msra.mxu0 0.0
        %464 = vmatprep.subr.mxu0 0.0
        %465 = vmatpush1.msra.mxu0 0.0
        %466 = vmatprep.subr.mxu0 0.0
        %467 = vmatpush1.msra.mxu0 0.0
        %468 = vmatprep.subr.mxu0 0.0
        %469 = vmatpush1.msra.mxu0 0.0
        %470 = vmatprep.subr.mxu0 0.0
        %471 = vmatpush1.msra.mxu0 0.0
        %472 = vmatprep.subr.mxu0 0.0
        %473 = vmatpush1.msra.mxu0 0.0
        %474 = vmatprep.subr.mxu0 0.0
        %475 = vmatpush1.msra.mxu0 0.0
        %476 = vmatprep.subr.mxu0 0.0
        %477 = vmatpush1.msra.mxu0 0.0
        %478 = vmatprep.subr.mxu0 0.0
        %479 = vmatpush1.msra.mxu0 0.0
        %480 = vmatprep.subr.mxu0 0.0
        %481 = vmatpush1.msra.mxu0 0.0
        %482 = vmatprep.subr.mxu0 0.0
        %483 = vmatpush1.msra.mxu0 0.0
        %484 = vmatprep.subr.mxu0 0.0
        %485 = vmatpush1.msra.mxu0 0.0
        %486 = vmatprep.mubr.f32.mxu0 0.0
        %487 = vmatmul.mubr.f32.gmra.mrb[0].mxu0 %v415
        %v488 = vpop.f32.mrb[0].mxu0
        %v489 = vadd.f32 %v409, %v488
        %v490 = vpop.f32.mrb[0].mxu0
        %v491 = vadd.f32 %v409, %v490
        %492 = vdwg.mxu0
        %v493 = vxor.u32 %v489, 2147483648
        %v494 = vxor.u32 %v491, 2147483648
        %v495 = vmul.f32 %v493, 1.442695
        %v496 = vpow.pop %v495
        %v497 = vmul.f32 %v494, 1.442695
        %v498 = vpow.pop %v497
        %v499 = vadd.f32 %v496, 1.0
        %v500 = vadd.f32 %v498, 1.0
        %v501 = vrcp.pop %v499
        %v502 = vmul.f32 1.0, %v501
        %v503 = vrcp.pop %v500
        %v504 = vmul.f32 1.0, %v503
        %v505 = vmul.f32 %v489, %v502
        %v506 = vmul.f32 %v491, %v504
        %v507 = vld [vmem:[%s3] sm:$0xff]
        %v508 = vld [vmem:[%s4] sm:$0xff]
        %510 = vset.pattern.permute.xlu0 0
        %511 = vperm.xlu0 %510, %v508
        %v512 = vpop.permute.xlu0 %511
        %v515 = vsel %vm413, %v507, 0
        %517 = vmatprep.subr.mxu0 %v420
        %518 = vmatpush1.msra.mxu0 %v418
        %519 = vmatprep.subr.mxu0 0.0
        %520 = vmatpush1.msra.mxu0 0.0
        %521 = vmatprep.subr.mxu0 0.0
        %522 = vmatpush1.msra.mxu0 0.0
        %523 = vmatprep.subr.mxu0 0.0
        %524 = vmatpush1.msra.mxu0 0.0
        %525 = vmatprep.subr.mxu0 0.0
        %526 = vmatpush1.msra.mxu0 0.0
        %527 = vmatprep.subr.mxu0 0.0
        %528 = vmatpush1.msra.mxu0 0.0
        %529 = vmatprep.subr.mxu0 0.0
        %530 = vmatpush1.msra.mxu0 0.0
        %531 = vmatprep.subr.mxu0 0.0
        %532 = vmatpush1.msra.mxu0 0.0
        %533 = vmatprep.subr.mxu0 0.0
        %534 = vmatpush1.msra.mxu0 0.0
        %535 = vmatprep.subr.mxu0 0.0
        %536 = vmatpush1.msra.mxu0 0.0
        %537 = vmatprep.subr.mxu0 0.0
        %538 = vmatpush1.msra.mxu0 0.0
        %539 = vmatprep.subr.mxu0 0.0
        %540 = vmatpush1.msra.mxu0 0.0
        %541 = vmatprep.subr.mxu0 0.0
        %542 = vmatpush1.msra.mxu0 0.0
        %543 = vmatprep.subr.mxu0 0.0
        %544 = vmatpush1.msra.mxu0 0.0
        %545 = vmatprep.subr.mxu0 0.0
        %546 = vmatpush1.msra.mxu0 0.0
        %547 = vmatprep.subr.mxu0 0.0
        %548 = vmatpush1.msra.mxu0 0.0
        %549 = vmatprep.subr.mxu0 0.0
        %550 = vmatpush1.msra.mxu0 0.0
        %551 = vmatprep.subr.mxu0 0.0
        %552 = vmatpush1.msra.mxu0 0.0
        %553 = vmatprep.subr.mxu0 0.0
        %554 = vmatpush1.msra.mxu0 0.0
        %555 = vmatprep.subr.mxu0 0.0
        %556 = vmatpush1.msra.mxu0 0.0
        %557 = vmatprep.subr.mxu0 0.0
        %558 = vmatpush1.msra.mxu0 0.0
        %559 = vmatprep.subr.mxu0 0.0
        %560 = vmatpush1.msra.mxu0 0.0
        %561 = vmatprep.subr.mxu0 0.0
        %562 = vmatpush1.msra.mxu0 0.0
        %563 = vmatprep.subr.mxu0 0.0
        %564 = vmatpush1.msra.mxu0 0.0
        %565 = vmatprep.subr.mxu0 0.0
        %566 = vmatpush1.msra.mxu0 0.0
        %567 = vmatprep.subr.mxu0 0.0
        %568 = vmatpush1.msra.mxu0 0.0
        %569 = vmatprep.subr.mxu0 0.0
        %570 = vmatpush1.msra.mxu0 0.0
        %571 = vmatprep.subr.mxu0 0.0
        %572 = vmatpush1.msra.mxu0 0.0
        %573 = vmatprep.subr.mxu0 0.0
        %574 = vmatpush1.msra.mxu0 0.0
        %575 = vmatprep.subr.mxu0 0.0
        %576 = vmatpush1.msra.mxu0 0.0
        %577 = vmatprep.subr.mxu0 0.0
        %578 = vmatpush1.msra.mxu0 0.0
        %579 = vmatprep.subr.mxu0 0.0
        %580 = vmatpush1.msra.mxu0 0.0
        %581 = vmatprep.mubr.f32.mxu0 0.0
        %582 = vmatmul.mubr.f32.gmra.mrb[0].mxu0 %v515
        %v583 = vpop.f32.mrb[0].mxu0
        %v584 = vadd.f32 %v512, %v583
        %v585 = vpop.f32.mrb[0].mxu0
        %v586 = vadd.f32 %v512, %v585
        %587 = vdwg.mxu0
        %v588 = vxor.u32 %v584, 2147483648
        %v589 = vxor.u32 %v586, 2147483648
        %v590 = vmul.f32 %v588, 1.442695
        %v591 = vpow.pop %v590
        %v592 = vmul.f32 %v589, 1.442695
        %v593 = vpow.pop %v592
        %v594 = vadd.f32 %v591, 1.0
        %v595 = vadd.f32 %v593, 1.0
        %v596 = vrcp.pop %v594
        %v597 = vmul.f32 1.0, %v596
        %v598 = vrcp.pop %v595
        %v599 = vmul.f32 1.0, %v598
        %v600 = vmul.f32 %v584, %v597
        %v601 = vmul.f32 %v586, %v599
        %v602 = vlaneseq
        %v603 = vand.u32 %v602, 127
        %v604 = vadd.s32 %v603, 128
        %vm605 = vcmp.lt.s32.totalorder %v603, 0
        %v606 = vsub.s32 0, %v603
        %v607 = vsel %vm605, %v606, %v603
        %v608 = vshrl.u32 %v607, 4
        %v609 = vand.u32 %v607, 15
        %v610 = vsub.s32 0, %v609
        %v611 = vsel %vm605, %v610, %v609
        %vm612 = vcmp.lt.s32.totalorder %v604, 0
        %v613 = vsub.s32 0, %v604
        %v614 = vsel %vm612, %v613, %v604
        %v615 = vshrl.u32 %v614, 4
        %v616 = vand.u32 %v614, 15
        %v617 = vsub.s32 0, %v616
        %v618 = vsel %vm612, %v617, %v616
        %vm619 = vcmp.ne.s32.totalorder %v611, 0
        %vm620 = vcmp.ne.s32.totalorder %v618, 0
        %vm621 = vcmp.lt.s32.totalorder %v611, 0
        %vm622 = vcmp.lt.s32.totalorder %v618, 0
        %vm623 = vmand %vm621, %vm619
        %vm624 = vmand %vm622, %vm620
        %v625 = vadd.s32 %v611, 16
        %v626 = vadd.s32 %v618, 16
        %v627 = vsel %vm623, %v625, %v611
        %v628 = vsel %vm624, %v626, %v618
        %vm629 = vcmp.ge.s32.totalorder %v627, 1
        %vm630 = vcmp.ge.s32.totalorder %v628, 1
        %v631 = vsel %vm629, 1, 0
        %v632 = vsel %vm630, 1, 0
        %v633 = vcvt.s32.f32 %v631
        %v634 = vcvt.s32.f32 %v632
        %vm635 = vcmp.le.s32.totalorder %v627, 14
        %vm636 = vcmp.le.s32.totalorder %v628, 14
        %v637 = vsel %vm635, 1, 0
        %v638 = vsel %vm636, 1, 0
        %v639 = vcvt.s32.f32 %v637
        %v640 = vcvt.s32.f32 %v638
        %641 = vst [vmem:[#allocation2] sm:$0xff] 0.0
        %642 = vst [vmem:[#allocation2 + $0x8] sm:$0xff] 0.0
        %643 = vst [vmem:[#allocation2 + $0x10] sm:$0xff] 0.0
        %644 = vst [vmem:[#allocation2 + $0x18] sm:$0xff] 0.0
        %645 = vst [vmem:[#allocation2 + $0x8] sm:$0xff] %v600
        %646 = vst [vmem:[#allocation2 + $0x10] sm:$0xff] %v601
        %v647 = vld [vmem:[#allocation2] sm:$0xff]
        %v648 = vld [vmem:[#allocation2 + $0x8] sm:$0xff]
        %v649 = vld [vmem:[#allocation2 + $0x10] sm:$0xff]
        %v650 = vld [vmem:[%s5] sm:$0xff]
        %s651 = scalar_lea.vmem %s5, 24
        %v652 = vld [vmem:[%s651] sm:$0xff]
        %656 = vrot.lane.b32.xlu0 %v647, 1
        %v657 = vpop.permute.xlu0 %656
        %658 = vrot.lane.b32.xlu0 %v648, 1
        %v659 = vpop.permute.xlu0 %658
        %660 = vrot.lane.b32.xlu0 %v649, 1
        %v661 = vpop.permute.xlu0 %660
        %vm662 = vcmask 7168
        %v663 = vsel %vm662, %v657, %v659
        %v664 = vsel %vm662, %v659, %v661
        %vm667 = vcmask 64512
        %v669 = vsel %vm667, %v652, 0
        %671 = vmatprep.subr.mxu0 %v664
        %672 = vmatpush1.msra.mxu0 %v663
        %673 = vmatprep.subr.mxu0 0.0
        %674 = vmatpush1.msra.mxu0 0.0
        %675 = vmatprep.subr.mxu0 0.0
        %676 = vmatpush1.msra.mxu0 0.0
        %677 = vmatprep.subr.mxu0 0.0
        %678 = vmatpush1.msra.mxu0 0.0
        %679 = vmatprep.subr.mxu0 0.0
        %680 = vmatpush1.msra.mxu0 0.0
        %681 = vmatprep.subr.mxu0 0.0
        %682 = vmatpush1.msra.mxu0 0.0
        %683 = vmatprep.subr.mxu0 0.0
        %684 = vmatpush1.msra.mxu0 0.0
        %685 = vmatprep.subr.mxu0 0.0
        %686 = vmatpush1.msra.mxu0 0.0
        %687 = vmatprep.subr.mxu0 0.0
        %688 = vmatpush1.msra.mxu0 0.0
        %689 = vmatprep.subr.mxu0 0.0
        %690 = vmatpush1.msra.mxu0 0.0
        %691 = vmatprep.subr.mxu0 0.0
        %692 = vmatpush1.msra.mxu0 0.0
        %693 = vmatprep.subr.mxu0 0.0
        %694 = vmatpush1.msra.mxu0 0.0
        %695 = vmatprep.subr.mxu0 0.0
        %696 = vmatpush1.msra.mxu0 0.0
        %697 = vmatprep.subr.mxu0 0.0
        %698 = vmatpush1.msra.mxu0 0.0
        %699 = vmatprep.subr.mxu0 0.0
        %700 = vmatpush1.msra.mxu0 0.0
        %701 = vmatprep.subr.mxu0 0.0
        %702 = vmatpush1.msra.mxu0 0.0
        %703 = vmatprep.subr.mxu0 0.0
        %704 = vmatpush1.msra.mxu0 0.0
        %705 = vmatprep.subr.mxu0 0.0
        %706 = vmatpush1.msra.mxu0 0.0
        %707 = vmatprep.subr.mxu0 0.0
        %708 = vmatpush1.msra.mxu0 0.0
        %709 = vmatprep.subr.mxu0 0.0
        %710 = vmatpush1.msra.mxu0 0.0
        %711 = vmatprep.subr.mxu0 0.0
        %712 = vmatpush1.msra.mxu0 0.0
        %713 = vmatprep.subr.mxu0 0.0
        %714 = vmatpush1.msra.mxu0 0.0
        %715 = vmatprep.subr.mxu0 0.0
        %716 = vmatpush1.msra.mxu0 0.0
        %717 = vmatprep.subr.mxu0 0.0
        %718 = vmatpush1.msra.mxu0 0.0
        %719 = vmatprep.subr.mxu0 0.0
        %720 = vmatpush1.msra.mxu0 0.0
        %721 = vmatprep.subr.mxu0 0.0
        %722 = vmatpush1.msra.mxu0 0.0
        %723 = vmatprep.subr.mxu0 0.0
        %724 = vmatpush1.msra.mxu0 0.0
        %725 = vmatprep.subr.mxu0 0.0
        %726 = vmatpush1.msra.mxu0 0.0
        %727 = vmatprep.subr.mxu0 0.0
        %728 = vmatpush1.msra.mxu0 0.0
        %729 = vmatprep.subr.mxu0 0.0
        %730 = vmatpush1.msra.mxu0 0.0
        %731 = vmatprep.subr.mxu0 0.0
        %732 = vmatpush1.msra.mxu0 0.0
        %733 = vmatprep.subr.mxu0 0.0
        %734 = vmatpush1.msra.mxu0 0.0
        %735 = vmatprep.mubr.f32.mxu0 0.0
        %736 = vmatmul.mubr.f32.gmra.mrb[0].mxu0 %v669
        %v737 = vpop.f32.mrb[0].mxu0
        %v738 = vadd.f32 0.0, %v737
        %v739 = vpop.f32.mrb[0].mxu0
        %v740 = vadd.f32 0.0, %v739
        %741 = vdwg.mxu0
        %742 = vrot.lane.b32.xlu0 %v647, 17
        %v743 = vpop.permute.xlu0 %742
        %744 = vrot.lane.b32.xlu0 %v648, 17
        %v745 = vpop.permute.xlu0 %744
        %746 = vrot.lane.b32.xlu0 %v649, 17
        %v747 = vpop.permute.xlu0 %746
        %vm748 = vcmask 138240
        %v749 = vsel %vm748, %v743, %v745
        %v750 = vsel %vm748, %v745, %v747
        %v754 = vsel %vm667, %v650, 0
        %756 = vmatprep.subr.mxu0 %v750
        %757 = vmatpush1.msra.mxu0 %v749
        %758 = vmatprep.subr.mxu0 0.0
        %759 = vmatpush1.msra.mxu0 0.0
        %760 = vmatprep.subr.mxu0 0.0
        %761 = vmatpush1.msra.mxu0 0.0
        %762 = vmatprep.subr.mxu0 0.0
        %763 = vmatpush1.msra.mxu0 0.0
        %764 = vmatprep.subr.mxu0 0.0
        %765 = vmatpush1.msra.mxu0 0.0
        %766 = vmatprep.subr.mxu0 0.0
        %767 = vmatpush1.msra.mxu0 0.0
        %768 = vmatprep.subr.mxu0 0.0
        %769 = vmatpush1.msra.mxu0 0.0
        %770 = vmatprep.subr.mxu0 0.0
        %771 = vmatpush1.msra.mxu0 0.0
        %772 = vmatprep.subr.mxu0 0.0
        %773 = vmatpush1.msra.mxu0 0.0
        %774 = vmatprep.subr.mxu0 0.0
        %775 = vmatpush1.msra.mxu0 0.0
        %776 = vmatprep.subr.mxu0 0.0
        %777 = vmatpush1.msra.mxu0 0.0
        %778 = vmatprep.subr.mxu0 0.0
        %779 = vmatpush1.msra.mxu0 0.0
        %780 = vmatprep.subr.mxu0 0.0
        %781 = vmatpush1.msra.mxu0 0.0
        %782 = vmatprep.subr.mxu0 0.0
        %783 = vmatpush1.msra.mxu0 0.0
        %784 = vmatprep.subr.mxu0 0.0
        %785 = vmatpush1.msra.mxu0 0.0
        %786 = vmatprep.subr.mxu0 0.0
        %787 = vmatpush1.msra.mxu0 0.0
        %788 = vmatprep.subr.mxu0 0.0
        %789 = vmatpush1.msra.mxu0 0.0
        %790 = vmatprep.subr.mxu0 0.0
        %791 = vmatpush1.msra.mxu0 0.0
        %792 = vmatprep.subr.mxu0 0.0
        %793 = vmatpush1.msra.mxu0 0.0
        %794 = vmatprep.subr.mxu0 0.0
        %795 = vmatpush1.msra.mxu0 0.0
        %796 = vmatprep.subr.mxu0 0.0
        %797 = vmatpush1.msra.mxu0 0.0
        %798 = vmatprep.subr.mxu0 0.0
        %799 = vmatpush1.msra.mxu0 0.0
        %800 = vmatprep.subr.mxu0 0.0
        %801 = vmatpush1.msra.mxu0 0.0
        %802 = vmatprep.subr.mxu0 0.0
        %803 = vmatpush1.msra.mxu0 0.0
        %804 = vmatprep.subr.mxu0 0.0
        %805 = vmatpush1.msra.mxu0 0.0
        %806 = vmatprep.subr.mxu0 0.0
        %807 = vmatpush1.msra.mxu0 0.0
        %808 = vmatprep.subr.mxu0 0.0
        %809 = vmatpush1.msra.mxu0 0.0
        %810 = vmatprep.subr.mxu0 0.0
        %811 = vmatpush1.msra.mxu0 0.0
        %812 = vmatprep.subr.mxu0 0.0
        %813 = vmatpush1.msra.mxu0 0.0
        %814 = vmatprep.subr.mxu0 0.0
        %815 = vmatpush1.msra.mxu0 0.0
        %816 = vmatprep.subr.mxu0 0.0
        %817 = vmatpush1.msra.mxu0 0.0
        %818 = vmatprep.subr.mxu0 0.0
        %819 = vmatpush1.msra.mxu0 0.0
        %820 = vmatprep.mubr.f32.mxu0 0.0
        %821 = vmatmul.mubr.f32.gmra.mrb[0].mxu0 %v754
        %v822 = vpop.f32.mrb[0].mxu0
        %v823 = vadd.f32 %v738, %v822
        %v824 = vpop.f32.mrb[0].mxu0
        %v825 = vadd.f32 %v740, %v824
        %826 = vdwg.mxu0
        %v827 = vld [vmem:[#allocation2 + $0x8] sm:$0xff]
        %v828 = vld [vmem:[#allocation2 + $0x10] sm:$0xff]
        %v829 = vld [vmem:[#allocation2 + $0x18] sm:$0xff]
        %s830 = scalar_lea.vmem %s5, 48
        %v831 = vld [vmem:[%s830] sm:$0xff]
        %835 = vrot.lane.b32.xlu0 %v827, 113
        %v836 = vpop.permute.xlu0 %835
        %837 = vrot.lane.b32.xlu0 %v828, 113
        %v838 = vpop.permute.xlu0 %837
        %839 = vrot.lane.b32.xlu0 %v829, 113
        %v840 = vpop.permute.xlu0 %839
        %vm841 = vcmask 924672
        %v842 = vsel %vm841, %v836, %v838
        %v843 = vsel %vm841, %v838, %v840
        %v847 = vsel %vm667, %v831, 0
        %849 = vmatprep.subr.mxu0 %v843
        %850 = vmatpush1.msra.mxu0 %v842
        %851 = vmatprep.subr.mxu0 0.0
        %852 = vmatpush1.msra.mxu0 0.0
        %853 = vmatprep.subr.mxu0 0.0
        %854 = vmatpush1.msra.mxu0 0.0
        %855 = vmatprep.subr.mxu0 0.0
        %856 = vmatpush1.msra.mxu0 0.0
        %857 = vmatprep.subr.mxu0 0.0
        %858 = vmatpush1.msra.mxu0 0.0
        %859 = vmatprep.subr.mxu0 0.0
        %860 = vmatpush1.msra.mxu0 0.0
        %861 = vmatprep.subr.mxu0 0.0
        %862 = vmatpush1.msra.mxu0 0.0
        %863 = vmatprep.subr.mxu0 0.0
        %864 = vmatpush1.msra.mxu0 0.0
        %865 = vmatprep.subr.mxu0 0.0
        %866 = vmatpush1.msra.mxu0 0.0
        %867 = vmatprep.subr.mxu0 0.0
        %868 = vmatpush1.msra.mxu0 0.0
        %869 = vmatprep.subr.mxu0 0.0
        %870 = vmatpush1.msra.mxu0 0.0
        %871 = vmatprep.subr.mxu0 0.0
        %872 = vmatpush1.msra.mxu0 0.0
        %873 = vmatprep.subr.mxu0 0.0
        %874 = vmatpush1.msra.mxu0 0.0
        %875 = vmatprep.subr.mxu0 0.0
        %876 = vmatpush1.msra.mxu0 0.0
        %877 = vmatprep.subr.mxu0 0.0
        %878 = vmatpush1.msra.mxu0 0.0
        %879 = vmatprep.subr.mxu0 0.0
        %880 = vmatpush1.msra.mxu0 0.0
        %881 = vmatprep.subr.mxu0 0.0
        %882 = vmatpush1.msra.mxu0 0.0
        %883 = vmatprep.subr.mxu0 0.0
        %884 = vmatpush1.msra.mxu0 0.0
        %885 = vmatprep.subr.mxu0 0.0
        %886 = vmatpush1.msra.mxu0 0.0
        %887 = vmatprep.subr.mxu0 0.0
        %888 = vmatpush1.msra.mxu0 0.0
        %889 = vmatprep.subr.mxu0 0.0
        %890 = vmatpush1.msra.mxu0 0.0
        %891 = vmatprep.subr.mxu0 0.0
        %892 = vmatpush1.msra.mxu0 0.0
        %893 = vmatprep.subr.mxu0 0.0
        %894 = vmatpush1.msra.mxu0 0.0
        %895 = vmatprep.subr.mxu0 0.0
        %896 = vmatpush1.msra.mxu0 0.0
        %897 = vmatprep.subr.mxu0 0.0
        %898 = vmatpush1.msra.mxu0 0.0
        %899 = vmatprep.subr.mxu0 0.0
        %900 = vmatpush1.msra.mxu0 0.0
        %901 = vmatprep.subr.mxu0 0.0
        %902 = vmatpush1.msra.mxu0 0.0
        %903 = vmatprep.subr.mxu0 0.0
        %904 = vmatpush1.msra.mxu0 0.0
        %905 = vmatprep.subr.mxu0 0.0
        %906 = vmatpush1.msra.mxu0 0.0
        %907 = vmatprep.subr.mxu0 0.0
        %908 = vmatpush1.msra.mxu0 0.0
        %909 = vmatprep.subr.mxu0 0.0
        %910 = vmatpush1.msra.mxu0 0.0
        %911 = vmatprep.subr.mxu0 0.0
        %912 = vmatpush1.msra.mxu0 0.0
        %913 = vmatprep.mubr.f32.mxu0 0.0
        %914 = vmatmul.mubr.f32.gmra.mrb[0].mxu0 %v847
        %v915 = vpop.f32.mrb[0].mxu0
        %v916 = vadd.f32 0.0, %v915
        %v917 = vpop.f32.mrb[0].mxu0
        %v918 = vadd.f32 0.0, %v917
        %919 = vdwg.mxu0
        %v920 = vadd.f32 %v823, %v916
        %v921 = vadd.f32 %v825, %v918
        %v922 = vmul.f32 %v920, %v633
        %v923 = vmul.f32 %v921, %v634
        %v924 = vadd.f32 %v922, 0.0
        %v925 = vadd.f32 %v923, 0.0
        %s926 = scalar_lea.vmem %s5, 8
        %v927 = vld [vmem:[%s926] sm:$0xff]
        %s928 = scalar_lea.vmem %s5, 32
        %v929 = vld [vmem:[%s928] sm:$0xff]
        %v931 = vsel %vm667, %v929, 0
        %933 = vmatprep.subr.mxu0 %v649
        %934 = vmatpush1.msra.mxu0 %v648
        %935 = vmatprep.subr.mxu0 0.0
        %936 = vmatpush1.msra.mxu0 0.0
        %937 = vmatprep.subr.mxu0 0.0
        %938 = vmatpush1.msra.mxu0 0.0
        %939 = vmatprep.subr.mxu0 0.0
        %940 = vmatpush1.msra.mxu0 0.0
        %941 = vmatprep.subr.mxu0 0.0
        %942 = vmatpush1.msra.mxu0 0.0
        %943 = vmatprep.subr.mxu0 0.0
        %944 = vmatpush1.msra.mxu0 0.0
        %945 = vmatprep.subr.mxu0 0.0
        %946 = vmatpush1.msra.mxu0 0.0
        %947 = vmatprep.subr.mxu0 0.0
        %948 = vmatpush1.msra.mxu0 0.0
        %949 = vmatprep.subr.mxu0 0.0
        %950 = vmatpush1.msra.mxu0 0.0
        %951 = vmatprep.subr.mxu0 0.0
        %952 = vmatpush1.msra.mxu0 0.0
        %953 = vmatprep.subr.mxu0 0.0
        %954 = vmatpush1.msra.mxu0 0.0
        %955 = vmatprep.subr.mxu0 0.0
        %956 = vmatpush1.msra.mxu0 0.0
        %957 = vmatprep.subr.mxu0 0.0
        %958 = vmatpush1.msra.mxu0 0.0
        %959 = vmatprep.subr.mxu0 0.0
        %960 = vmatpush1.msra.mxu0 0.0
        %961 = vmatprep.subr.mxu0 0.0
        %962 = vmatpush1.msra.mxu0 0.0
        %963 = vmatprep.subr.mxu0 0.0
        %964 = vmatpush1.msra.mxu0 0.0
        %965 = vmatprep.subr.mxu0 0.0
        %966 = vmatpush1.msra.mxu0 0.0
        %967 = vmatprep.subr.mxu0 0.0
        %968 = vmatpush1.msra.mxu0 0.0
        %969 = vmatprep.subr.mxu0 0.0
        %970 = vmatpush1.msra.mxu0 0.0
        %971 = vmatprep.subr.mxu0 0.0
        %972 = vmatpush1.msra.mxu0 0.0
        %973 = vmatprep.subr.mxu0 0.0
        %974 = vmatpush1.msra.mxu0 0.0
        %975 = vmatprep.subr.mxu0 0.0
        %976 = vmatpush1.msra.mxu0 0.0
        %977 = vmatprep.subr.mxu0 0.0
        %978 = vmatpush1.msra.mxu0 0.0
        %979 = vmatprep.subr.mxu0 0.0
        %980 = vmatpush1.msra.mxu0 0.0
        %981 = vmatprep.subr.mxu0 0.0
        %982 = vmatpush1.msra.mxu0 0.0
        %983 = vmatprep.subr.mxu0 0.0
        %984 = vmatpush1.msra.mxu0 0.0
        %985 = vmatprep.subr.mxu0 0.0
        %986 = vmatpush1.msra.mxu0 0.0
        %987 = vmatprep.subr.mxu0 0.0
        %988 = vmatpush1.msra.mxu0 0.0
        %989 = vmatprep.subr.mxu0 0.0
        %990 = vmatpush1.msra.mxu0 0.0
        %991 = vmatprep.subr.mxu0 0.0
        %992 = vmatpush1.msra.mxu0 0.0
        %993 = vmatprep.subr.mxu0 0.0
        %994 = vmatpush1.msra.mxu0 0.0
        %995 = vmatprep.subr.mxu0 0.0
        %996 = vmatpush1.msra.mxu0 0.0
        %997 = vmatprep.mubr.f32.mxu0 0.0
        %998 = vmatmul.mubr.f32.gmra.mrb[0].mxu0 %v931
        %v999 = vpop.f32.mrb[0].mxu0
        %v1000 = vadd.f32 0.0, %v999
        %v1001 = vpop.f32.mrb[0].mxu0
        %v1002 = vadd.f32 0.0, %v1001
        %1003 = vdwg.mxu0
        %1004 = vrot.lane.b32.xlu0 %v647, 16
        %v1005 = vpop.permute.xlu0 %1004
        %1006 = vrot.lane.b32.xlu0 %v648, 16
        %v1007 = vpop.permute.xlu0 %1006
        %1008 = vrot.lane.b32.xlu0 %v649, 16
        %v1009 = vpop.permute.xlu0 %1008
        %vm1010 = vcmask 130048
        %v1011 = vsel %vm1010, %v1005, %v1007
        %v1012 = vsel %vm1010, %v1007, %v1009
        %v1016 = vsel %vm667, %v927, 0
        %1018 = vmatprep.subr.mxu0 %v1012
        %1019 = vmatpush1.msra.mxu0 %v1011
        %1020 = vmatprep.subr.mxu0 0.0
        %1021 = vmatpush1.msra.mxu0 0.0
        %1022 = vmatprep.subr.mxu0 0.0
        %1023 = vmatpush1.msra.mxu0 0.0
        %1024 = vmatprep.subr.mxu0 0.0
        %1025 = vmatpush1.msra.mxu0 0.0
        %1026 = vmatprep.subr.mxu0 0.0
        %1027 = vmatpush1.msra.mxu0 0.0
        %1028 = vmatprep.subr.mxu0 0.0
        %1029 = vmatpush1.msra.mxu0 0.0
        %1030 = vmatprep.subr.mxu0 0.0
        %1031 = vmatpush1.msra.mxu0 0.0
        %1032 = vmatprep.subr.mxu0 0.0
        %1033 = vmatpush1.msra.mxu0 0.0
        %1034 = vmatprep.subr.mxu0 0.0
        %1035 = vmatpush1.msra.mxu0 0.0
        %1036 = vmatprep.subr.mxu0 0.0
        %1037 = vmatpush1.msra.mxu0 0.0
        %1038 = vmatprep.subr.mxu0 0.0
        %1039 = vmatpush1.msra.mxu0 0.0
        %1040 = vmatprep.subr.mxu0 0.0
        %1041 = vmatpush1.msra.mxu0 0.0
        %1042 = vmatprep.subr.mxu0 0.0
        %1043 = vmatpush1.msra.mxu0 0.0
        %1044 = vmatprep.subr.mxu0 0.0
        %1045 = vmatpush1.msra.mxu0 0.0
        %1046 = vmatprep.subr.mxu0 0.0
        %1047 = vmatpush1.msra.mxu0 0.0
        %1048 = vmatprep.subr.mxu0 0.0
        %1049 = vmatpush1.msra.mxu0 0.0
        %1050 = vmatprep.subr.mxu0 0.0
        %1051 = vmatpush1.msra.mxu0 0.0
        %1052 = vmatprep.subr.mxu0 0.0
        %1053 = vmatpush1.msra.mxu0 0.0
        %1054 = vmatprep.subr.mxu0 0.0
        %1055 = vmatpush1.msra.mxu0 0.0
        %1056 = vmatprep.subr.mxu0 0.0
        %1057 = vmatpush1.msra.mxu0 0.0
        %1058 = vmatprep.subr.mxu0 0.0
        %1059 = vmatpush1.msra.mxu0 0.0
        %1060 = vmatprep.subr.mxu0 0.0
        %1061 = vmatpush1.msra.mxu0 0.0
        %1062 = vmatprep.subr.mxu0 0.0
        %1063 = vmatpush1.msra.mxu0 0.0
        %1064 = vmatprep.subr.mxu0 0.0
        %1065 = vmatpush1.msra.mxu0 0.0
        %1066 = vmatprep.subr.mxu0 0.0
        %1067 = vmatpush1.msra.mxu0 0.0
        %1068 = vmatprep.subr.mxu0 0.0
        %1069 = vmatpush1.msra.mxu0 0.0
        %1070 = vmatprep.subr.mxu0 0.0
        %1071 = vmatpush1.msra.mxu0 0.0
        %1072 = vmatprep.subr.mxu0 0.0
        %1073 = vmatpush1.msra.mxu0 0.0
        %1074 = vmatprep.subr.mxu0 0.0
        %1075 = vmatpush1.msra.mxu0 0.0
        %1076 = vmatprep.subr.mxu0 0.0
        %1077 = vmatpush1.msra.mxu0 0.0
        %1078 = vmatprep.subr.mxu0 0.0
        %1079 = vmatpush1.msra.mxu0 0.0
        %1080 = vmatprep.subr.mxu0 0.0
        %1081 = vmatpush1.msra.mxu0 0.0
        %1082 = vmatprep.mubr.f32.mxu0 0.0
        %1083 = vmatmul.mubr.f32.gmra.mrb[0].mxu0 %v1016
        %v1084 = vpop.f32.mrb[0].mxu0
        %v1085 = vadd.f32 %v1000, %v1084
        %v1086 = vpop.f32.mrb[0].mxu0
        %v1087 = vadd.f32 %v1002, %v1086
        %1088 = vdwg.mxu0
        %s1089 = scalar_lea.vmem %s5, 56
        %v1090 = vld [vmem:[%s1089] sm:$0xff]
        %1091 = vrot.lane.b32.xlu0 %v827, 112
        %v1092 = vpop.permute.xlu0 %1091
        %1093 = vrot.lane.b32.xlu0 %v828, 112
        %v1094 = vpop.permute.xlu0 %1093
        %1095 = vrot.lane.b32.xlu0 %v829, 112
        %v1096 = vpop.permute.xlu0 %1095
        %vm1097 = vcmask 916480
        %v1098 = vsel %vm1097, %v1092, %v1094
        %v1099 = vsel %vm1097, %v1094, %v1096
        %v1103 = vsel %vm667, %v1090, 0
        %1105 = vmatprep.subr.mxu0 %v1099
        %1106 = vmatpush1.msra.mxu0 %v1098
        %1107 = vmatprep.subr.mxu0 0.0
        %1108 = vmatpush1.msra.mxu0 0.0
        %1109 = vmatprep.subr.mxu0 0.0
        %1110 = vmatpush1.msra.mxu0 0.0
        %1111 = vmatprep.subr.mxu0 0.0
        %1112 = vmatpush1.msra.mxu0 0.0
        %1113 = vmatprep.subr.mxu0 0.0
        %1114 = vmatpush1.msra.mxu0 0.0
        %1115 = vmatprep.subr.mxu0 0.0
        %1116 = vmatpush1.msra.mxu0 0.0
        %1117 = vmatprep.subr.mxu0 0.0
        %1118 = vmatpush1.msra.mxu0 0.0
        %1119 = vmatprep.subr.mxu0 0.0
        %1120 = vmatpush1.msra.mxu0 0.0
        %1121 = vmatprep.subr.mxu0 0.0
        %1122 = vmatpush1.msra.mxu0 0.0
        %1123 = vmatprep.subr.mxu0 0.0
        %1124 = vmatpush1.msra.mxu0 0.0
        %1125 = vmatprep.subr.mxu0 0.0
        %1126 = vmatpush1.msra.mxu0 0.0
        %1127 = vmatprep.subr.mxu0 0.0
        %1128 = vmatpush1.msra.mxu0 0.0
        %1129 = vmatprep.subr.mxu0 0.0
        %1130 = vmatpush1.msra.mxu0 0.0
        %1131 = vmatprep.subr.mxu0 0.0
        %1132 = vmatpush1.msra.mxu0 0.0
        %1133 = vmatprep.subr.mxu0 0.0
        %1134 = vmatpush1.msra.mxu0 0.0
        %1135 = vmatprep.subr.mxu0 0.0
        %1136 = vmatpush1.msra.mxu0 0.0
        %1137 = vmatprep.subr.mxu0 0.0
        %1138 = vmatpush1.msra.mxu0 0.0
        %1139 = vmatprep.subr.mxu0 0.0
        %1140 = vmatpush1.msra.mxu0 0.0
        %1141 = vmatprep.subr.mxu0 0.0
        %1142 = vmatpush1.msra.mxu0 0.0
        %1143 = vmatprep.subr.mxu0 0.0
        %1144 = vmatpush1.msra.mxu0 0.0
        %1145 = vmatprep.subr.mxu0 0.0
        %1146 = vmatpush1.msra.mxu0 0.0
        %1147 = vmatprep.subr.mxu0 0.0
        %1148 = vmatpush1.msra.mxu0 0.0
        %1149 = vmatprep.subr.mxu0 0.0
        %1150 = vmatpush1.msra.mxu0 0.0
        %1151 = vmatprep.subr.mxu0 0.0
        %1152 = vmatpush1.msra.mxu0 0.0
        %1153 = vmatprep.subr.mxu0 0.0
        %1154 = vmatpush1.msra.mxu0 0.0
        %1155 = vmatprep.subr.mxu0 0.0
        %1156 = vmatpush1.msra.mxu0 0.0
        %1157 = vmatprep.subr.mxu0 0.0
        %1158 = vmatpush1.msra.mxu0 0.0
        %1159 = vmatprep.subr.mxu0 0.0
        %1160 = vmatpush1.msra.mxu0 0.0
        %1161 = vmatprep.subr.mxu0 0.0
        %1162 = vmatpush1.msra.mxu0 0.0
        %1163 = vmatprep.subr.mxu0 0.0
        %1164 = vmatpush1.msra.mxu0 0.0
        %1165 = vmatprep.subr.mxu0 0.0
        %1166 = vmatpush1.msra.mxu0 0.0
        %1167 = vmatprep.subr.mxu0 0.0
        %1168 = vmatpush1.msra.mxu0 0.0
        %1169 = vmatprep.mubr.f32.mxu0 0.0
        %1170 = vmatmul.mubr.f32.gmra.mrb[0].mxu0 %v1103
        %v1171 = vpop.f32.mrb[0].mxu0
        %v1172 = vadd.f32 0.0, %v1171
        %v1173 = vpop.f32.mrb[0].mxu0
        %v1174 = vadd.f32 0.0, %v1173
        %1175 = vdwg.mxu0
        %v1176 = vadd.f32 %v1085, %v1172
        %v1177 = vadd.f32 %v1087, %v1174
        %v1178 = vadd.f32 %v924, %v1176
        %v1179 = vadd.f32 %v925, %v1177
        %s1180 = scalar_lea.vmem %s5, 16
        %v1181 = vld [vmem:[%s1180] sm:$0xff]
        %s1182 = scalar_lea.vmem %s5, 40
        %v1183 = vld [vmem:[%s1182] sm:$0xff]
        %1184 = vrot.lane.b32.xlu0 %v827, 127
        %v1185 = vpop.permute.xlu0 %1184
        %1186 = vrot.lane.b32.xlu0 %v828, 127
        %v1187 = vpop.permute.xlu0 %1186
        %1188 = vrot.lane.b32.xlu0 %v829, 127
        %v1189 = vpop.permute.xlu0 %1188
        %vm1190 = vcmask 1039360
        %v1191 = vsel %vm1190, %v1185, %v1187
        %v1192 = vsel %vm1190, %v1187, %v1189
        %v1196 = vsel %vm667, %v1183, 0
        %1198 = vmatprep.subr.mxu0 %v1192
        %1199 = vmatpush1.msra.mxu0 %v1191
        %1200 = vmatprep.subr.mxu0 0.0
        %1201 = vmatpush1.msra.mxu0 0.0
        %1202 = vmatprep.subr.mxu0 0.0
        %1203 = vmatpush1.msra.mxu0 0.0
        %1204 = vmatprep.subr.mxu0 0.0
        %1205 = vmatpush1.msra.mxu0 0.0
        %1206 = vmatprep.subr.mxu0 0.0
        %1207 = vmatpush1.msra.mxu0 0.0
        %1208 = vmatprep.subr.mxu0 0.0
        %1209 = vmatpush1.msra.mxu0 0.0
        %1210 = vmatprep.subr.mxu0 0.0
        %1211 = vmatpush1.msra.mxu0 0.0
        %1212 = vmatprep.subr.mxu0 0.0
        %1213 = vmatpush1.msra.mxu0 0.0
        %1214 = vmatprep.subr.mxu0 0.0
        %1215 = vmatpush1.msra.mxu0 0.0
        %1216 = vmatprep.subr.mxu0 0.0
        %1217 = vmatpush1.msra.mxu0 0.0
        %1218 = vmatprep.subr.mxu0 0.0
        %1219 = vmatpush1.msra.mxu0 0.0
        %1220 = vmatprep.subr.mxu0 0.0
        %1221 = vmatpush1.msra.mxu0 0.0
        %1222 = vmatprep.subr.mxu0 0.0
        %1223 = vmatpush1.msra.mxu0 0.0
        %1224 = vmatprep.subr.mxu0 0.0
        %1225 = vmatpush1.msra.mxu0 0.0
        %1226 = vmatprep.subr.mxu0 0.0
        %1227 = vmatpush1.msra.mxu0 0.0
        %1228 = vmatprep.subr.mxu0 0.0
        %1229 = vmatpush1.msra.mxu0 0.0
        %1230 = vmatprep.subr.mxu0 0.0
        %1231 = vmatpush1.msra.mxu0 0.0
        %1232 = vmatprep.subr.mxu0 0.0
        %1233 = vmatpush1.msra.mxu0 0.0
        %1234 = vmatprep.subr.mxu0 0.0
        %1235 = vmatpush1.msra.mxu0 0.0
        %1236 = vmatprep.subr.mxu0 0.0
        %1237 = vmatpush1.msra.mxu0 0.0
        %1238 = vmatprep.subr.mxu0 0.0
        %1239 = vmatpush1.msra.mxu0 0.0
        %1240 = vmatprep.subr.mxu0 0.0
        %1241 = vmatpush1.msra.mxu0 0.0
        %1242 = vmatprep.subr.mxu0 0.0
        %1243 = vmatpush1.msra.mxu0 0.0
        %1244 = vmatprep.subr.mxu0 0.0
        %1245 = vmatpush1.msra.mxu0 0.0
        %1246 = vmatprep.subr.mxu0 0.0
        %1247 = vmatpush1.msra.mxu0 0.0
        %1248 = vmatprep.subr.mxu0 0.0
        %1249 = vmatpush1.msra.mxu0 0.0
        %1250 = vmatprep.subr.mxu0 0.0
        %1251 = vmatpush1.msra.mxu0 0.0
        %1252 = vmatprep.subr.mxu0 0.0
        %1253 = vmatpush1.msra.mxu0 0.0
        %1254 = vmatprep.subr.mxu0 0.0
        %1255 = vmatpush1.msra.mxu0 0.0
        %1256 = vmatprep.subr.mxu0 0.0
        %1257 = vmatpush1.msra.mxu0 0.0
        %1258 = vmatprep.subr.mxu0 0.0
        %1259 = vmatpush1.msra.mxu0 0.0
        %1260 = vmatprep.subr.mxu0 0.0
        %1261 = vmatpush1.msra.mxu0 0.0
        %1262 = vmatprep.mubr.f32.mxu0 0.0
        %1263 = vmatmul.mubr.f32.gmra.mrb[0].mxu0 %v1196
        %v1264 = vpop.f32.mrb[0].mxu0
        %v1265 = vadd.f32 0.0, %v1264
        %v1266 = vpop.f32.mrb[0].mxu0
        %v1267 = vadd.f32 0.0, %v1266
        %1268 = vdwg.mxu0
        %1269 = vrot.lane.b32.xlu0 %v647, 15
        %v1270 = vpop.permute.xlu0 %1269
        %1271 = vrot.lane.b32.xlu0 %v648, 15
        %v1272 = vpop.permute.xlu0 %1271
        %1273 = vrot.lane.b32.xlu0 %v649, 15
        %v1274 = vpop.permute.xlu0 %1273
        %vm1275 = vcmask 121856
        %v1276 = vsel %vm1275, %v1270, %v1272
        %v1277 = vsel %vm1275, %v1272, %v1274
        %v1281 = vsel %vm667, %v1181, 0
        %1283 = vmatprep.subr.mxu0 %v1277
        %1284 = vmatpush1.msra.mxu0 %v1276
        %1285 = vmatprep.subr.mxu0 0.0
        %1286 = vmatpush1.msra.mxu0 0.0
        %1287 = vmatprep.subr.mxu0 0.0
        %1288 = vmatpush1.msra.mxu0 0.0
        %1289 = vmatprep.subr.mxu0 0.0
        %1290 = vmatpush1.msra.mxu0 0.0
        %1291 = vmatprep.subr.mxu0 0.0
        %1292 = vmatpush1.msra.mxu0 0.0
        %1293 = vmatprep.subr.mxu0 0.0
        %1294 = vmatpush1.msra.mxu0 0.0
        %1295 = vmatprep.subr.mxu0 0.0
        %1296 = vmatpush1.msra.mxu0 0.0
        %1297 = vmatprep.subr.mxu0 0.0
        %1298 = vmatpush1.msra.mxu0 0.0
        %1299 = vmatprep.subr.mxu0 0.0
        %1300 = vmatpush1.msra.mxu0 0.0
        %1301 = vmatprep.subr.mxu0 0.0
        %1302 = vmatpush1.msra.mxu0 0.0
        %1303 = vmatprep.subr.mxu0 0.0
        %1304 = vmatpush1.msra.mxu0 0.0
        %1305 = vmatprep.subr.mxu0 0.0
        %1306 = vmatpush1.msra.mxu0 0.0
        %1307 = vmatprep.subr.mxu0 0.0
        %1308 = vmatpush1.msra.mxu0 0.0
        %1309 = vmatprep.subr.mxu0 0.0
        %1310 = vmatpush1.msra.mxu0 0.0
        %1311 = vmatprep.subr.mxu0 0.0
        %1312 = vmatpush1.msra.mxu0 0.0
        %1313 = vmatprep.subr.mxu0 0.0
        %1314 = vmatpush1.msra.mxu0 0.0
        %1315 = vmatprep.subr.mxu0 0.0
        %1316 = vmatpush1.msra.mxu0 0.0
        %1317 = vmatprep.subr.mxu0 0.0
        %1318 = vmatpush1.msra.mxu0 0.0
        %1319 = vmatprep.subr.mxu0 0.0
        %1320 = vmatpush1.msra.mxu0 0.0
        %1321 = vmatprep.subr.mxu0 0.0
        %1322 = vmatpush1.msra.mxu0 0.0
        %1323 = vmatprep.subr.mxu0 0.0
        %1324 = vmatpush1.msra.mxu0 0.0
        %1325 = vmatprep.subr.mxu0 0.0
        %1326 = vmatpush1.msra.mxu0 0.0
        %1327 = vmatprep.subr.mxu0 0.0
        %1328 = vmatpush1.msra.mxu0 0.0
        %1329 = vmatprep.subr.mxu0 0.0
        %1330 = vmatpush1.msra.mxu0 0.0
        %1331 = vmatprep.subr.mxu0 0.0
        %1332 = vmatpush1.msra.mxu0 0.0
        %1333 = vmatprep.subr.mxu0 0.0
        %1334 = vmatpush1.msra.mxu0 0.0
        %1335 = vmatprep.subr.mxu0 0.0
        %1336 = vmatpush1.msra.mxu0 0.0
        %1337 = vmatprep.subr.mxu0 0.0
        %1338 = vmatpush1.msra.mxu0 0.0
        %1339 = vmatprep.subr.mxu0 0.0
        %1340 = vmatpush1.msra.mxu0 0.0
        %1341 = vmatprep.subr.mxu0 0.0
        %1342 = vmatpush1.msra.mxu0 0.0
        %1343 = vmatprep.subr.mxu0 0.0
        %1344 = vmatpush1.msra.mxu0 0.0
        %1345 = vmatprep.subr.mxu0 0.0
        %1346 = vmatpush1.msra.mxu0 0.0
        %1347 = vmatprep.mubr.f32.mxu0 0.0
        %1348 = vmatmul.mubr.f32.gmra.mrb[0].mxu0 %v1281
        %v1349 = vpop.f32.mrb[0].mxu0
        %v1350 = vadd.f32 %v1265, %v1349
        %v1351 = vpop.f32.mrb[0].mxu0
        %v1352 = vadd.f32 %v1267, %v1351
        %1353 = vdwg.mxu0
        %s1354 = scalar_lea.vmem %s5, 64
        %v1355 = vld [vmem:[%s1354] sm:$0xff]
        %1356 = vrot.lane.b32.xlu0 %v827, 111
        %v1357 = vpop.permute.xlu0 %1356
        %1358 = vrot.lane.b32.xlu0 %v828, 111
        %v1359 = vpop.permute.xlu0 %1358
        %1360 = vrot.lane.b32.xlu0 %v829, 111
        %v1361 = vpop.permute.xlu0 %1360
        %vm1362 = vcmask 908288
        %v1363 = vsel %vm1362, %v1357, %v1359
        %v1364 = vsel %vm1362, %v1359, %v1361
        %v1368 = vsel %vm667, %v1355, 0
        %1370 = vmatprep.subr.mxu0 %v1364
        %1371 = vmatpush1.msra.mxu0 %v1363
        %1372 = vmatprep.subr.mxu0 0.0
        %1373 = vmatpush1.msra.mxu0 0.0
        %1374 = vmatprep.subr.mxu0 0.0
        %1375 = vmatpush1.msra.mxu0 0.0
        %1376 = vmatprep.subr.mxu0 0.0
        %1377 = vmatpush1.msra.mxu0 0.0
        %1378 = vmatprep.subr.mxu0 0.0
        %1379 = vmatpush1.msra.mxu0 0.0
        %1380 = vmatprep.subr.mxu0 0.0
        %1381 = vmatpush1.msra.mxu0 0.0
        %1382 = vmatprep.subr.mxu0 0.0
        %1383 = vmatpush1.msra.mxu0 0.0
        %1384 = vmatprep.subr.mxu0 0.0
        %1385 = vmatpush1.msra.mxu0 0.0
        %1386 = vmatprep.subr.mxu0 0.0
        %1387 = vmatpush1.msra.mxu0 0.0
        %1388 = vmatprep.subr.mxu0 0.0
        %1389 = vmatpush1.msra.mxu0 0.0
        %1390 = vmatprep.subr.mxu0 0.0
        %1391 = vmatpush1.msra.mxu0 0.0
        %1392 = vmatprep.subr.mxu0 0.0
        %1393 = vmatpush1.msra.mxu0 0.0
        %1394 = vmatprep.subr.mxu0 0.0
        %1395 = vmatpush1.msra.mxu0 0.0
        %1396 = vmatprep.subr.mxu0 0.0
        %1397 = vmatpush1.msra.mxu0 0.0
        %1398 = vmatprep.subr.mxu0 0.0
        %1399 = vmatpush1.msra.mxu0 0.0
        %1400 = vmatprep.subr.mxu0 0.0
        %1401 = vmatpush1.msra.mxu0 0.0
        %1402 = vmatprep.subr.mxu0 0.0
        %1403 = vmatpush1.msra.mxu0 0.0
        %1404 = vmatprep.subr.mxu0 0.0
        %1405 = vmatpush1.msra.mxu0 0.0
        %1406 = vmatprep.subr.mxu0 0.0
        %1407 = vmatpush1.msra.mxu0 0.0
        %1408 = vmatprep.subr.mxu0 0.0
        %1409 = vmatpush1.msra.mxu0 0.0
        %1410 = vmatprep.subr.mxu0 0.0
        %1411 = vmatpush1.msra.mxu0 0.0
        %1412 = vmatprep.subr.mxu0 0.0
        %1413 = vmatpush1.msra.mxu0 0.0
        %1414 = vmatprep.subr.mxu0 0.0
        %1415 = vmatpush1.msra.mxu0 0.0
        %1416 = vmatprep.subr.mxu0 0.0
        %1417 = vmatpush1.msra.mxu0 0.0
        %1418 = vmatprep.subr.mxu0 0.0
        %1419 = vmatpush1.msra.mxu0 0.0
        %1420 = vmatprep.subr.mxu0 0.0
        %1421 = vmatpush1.msra.mxu0 0.0
        %1422 = vmatprep.subr.mxu0 0.0
        %1423 = vmatpush1.msra.mxu0 0.0
        %1424 = vmatprep.subr.mxu0 0.0
        %1425 = vmatpush1.msra.mxu0 0.0
        %1426 = vmatprep.subr.mxu0 0.0
        %1427 = vmatpush1.msra.mxu0 0.0
        %1428 = vmatprep.subr.mxu0 0.0
        %1429 = vmatpush1.msra.mxu0 0.0
        %1430 = vmatprep.subr.mxu0 0.0
        %1431 = vmatpush1.msra.mxu0 0.0
        %1432 = vmatprep.subr.mxu0 0.0
        %1433 = vmatpush1.msra.mxu0 0.0
        %1434 = vmatprep.mubr.f32.mxu0 0.0
        %1435 = vmatmul.mubr.f32.gmra.mrb[0].mxu0 %v1368
        %v1436 = vpop.f32.mrb[0].mxu0
        %v1437 = vadd.f32 0.0, %v1436
        %v1438 = vpop.f32.mrb[0].mxu0
        %v1439 = vadd.f32 0.0, %v1438
        %1440 = vdwg.mxu0
        %v1441 = vadd.f32 %v1350, %v1437
        %v1442 = vadd.f32 %v1352, %v1439
        %v1443 = vmul.f32 %v1441, %v639
        %v1444 = vmul.f32 %v1442, %v640
        %v1445 = vadd.f32 %v1178, %v1443
        %v1446 = vadd.f32 %v1179, %v1444
        %v1447 = vld [vmem:[%s6] sm:$0xff]
        %1449 = vset.pattern.permute.xlu0 0
        %1450 = vperm.xlu0 %1449, %v1447
        %v1451 = vpop.permute.xlu0 %1450
        %v1453 = vadd.f32 %v1445, %v1451
        %v1454 = vadd.f32 %v1446, %v1451
        %v1455 = vxor.u32 %v1453, 2147483648
        %v1456 = vxor.u32 %v1454, 2147483648
        %v1457 = vmul.f32 %v1455, 1.442695
        %v1458 = vpow.pop %v1457
        %v1459 = vmul.f32 %v1456, 1.442695
        %v1460 = vpow.pop %v1459
        %v1461 = vadd.f32 %v1458, 1.0
        %v1462 = vadd.f32 %v1460, 1.0
        %v1463 = vrcp.pop %v1461
        %v1464 = vmul.f32 1.0, %v1463
        %v1465 = vrcp.pop %v1462
        %v1466 = vmul.f32 1.0, %v1465
        %v1467 = vmul.f32 %v1453, %v1464
        %v1468 = vmul.f32 %v1454, %v1466
        %1469 = vst [vmem:[#allocation2 + $0x8] sm:$0xff] %v1467
        %1470 = vst [vmem:[#allocation2 + $0x10] sm:$0xff] %v1468
        %v1471 = vld [vmem:[#allocation2] sm:$0xff]
        %v1472 = vld [vmem:[#allocation2 + $0x8] sm:$0xff]
        %v1473 = vld [vmem:[#allocation2 + $0x10] sm:$0xff]
        %v1474 = vld [vmem:[%s7] sm:$0xff]
        %s1475 = scalar_lea.vmem %s7, 24
        %v1476 = vld [vmem:[%s1475] sm:$0xff]
        %1480 = vrot.lane.b32.xlu0 %v1471, 1
        %v1481 = vpop.permute.xlu0 %1480
        %1482 = vrot.lane.b32.xlu0 %v1472, 1
        %v1483 = vpop.permute.xlu0 %1482
        %1484 = vrot.lane.b32.xlu0 %v1473, 1
        %v1485 = vpop.permute.xlu0 %1484
        %v1486 = vsel %vm662, %v1481, %v1483
        %v1487 = vsel %vm662, %v1483, %v1485
        %v1491 = vsel %vm667, %v1476, 0
        %1493 = vmatprep.subr.mxu0 %v1487
        %1494 = vmatpush1.msra.mxu0 %v1486
        %1495 = vmatprep.subr.mxu0 0.0
        %1496 = vmatpush1.msra.mxu0 0.0
        %1497 = vmatprep.subr.mxu0 0.0
        %1498 = vmatpush1.msra.mxu0 0.0
        %1499 = vmatprep.subr.mxu0 0.0
        %1500 = vmatpush1.msra.mxu0 0.0
        %1501 = vmatprep.subr.mxu0 0.0
        %1502 = vmatpush1.msra.mxu0 0.0
        %1503 = vmatprep.subr.mxu0 0.0
        %1504 = vmatpush1.msra.mxu0 0.0
        %1505 = vmatprep.subr.mxu0 0.0
        %1506 = vmatpush1.msra.mxu0 0.0
        %1507 = vmatprep.subr.mxu0 0.0
        %1508 = vmatpush1.msra.mxu0 0.0
        %1509 = vmatprep.subr.mxu0 0.0
        %1510 = vmatpush1.msra.mxu0 0.0
        %1511 = vmatprep.subr.mxu0 0.0
        %1512 = vmatpush1.msra.mxu0 0.0
        %1513 = vmatprep.subr.mxu0 0.0
        %1514 = vmatpush1.msra.mxu0 0.0
        %1515 = vmatprep.subr.mxu0 0.0
        %1516 = vmatpush1.msra.mxu0 0.0
        %1517 = vmatprep.subr.mxu0 0.0
        %1518 = vmatpush1.msra.mxu0 0.0
        %1519 = vmatprep.subr.mxu0 0.0
        %1520 = vmatpush1.msra.mxu0 0.0
        %1521 = vmatprep.subr.mxu0 0.0
        %1522 = vmatpush1.msra.mxu0 0.0
        %1523 = vmatprep.subr.mxu0 0.0
        %1524 = vmatpush1.msra.mxu0 0.0
        %1525 = vmatprep.subr.mxu0 0.0
        %1526 = vmatpush1.msra.mxu0 0.0
        %1527 = vmatprep.subr.mxu0 0.0
        %1528 = vmatpush1.msra.mxu0 0.0
        %1529 = vmatprep.subr.mxu0 0.0
        %1530 = vmatpush1.msra.mxu0 0.0
        %1531 = vmatprep.subr.mxu0 0.0
        %1532 = vmatpush1.msra.mxu0 0.0
        %1533 = vmatprep.subr.mxu0 0.0
        %1534 = vmatpush1.msra.mxu0 0.0
        %1535 = vmatprep.subr.mxu0 0.0
        %1536 = vmatpush1.msra.mxu0 0.0
        %1537 = vmatprep.subr.mxu0 0.0
        %1538 = vmatpush1.msra.mxu0 0.0
        %1539 = vmatprep.subr.mxu0 0.0
        %1540 = vmatpush1.msra.mxu0 0.0
        %1541 = vmatprep.subr.mxu0 0.0
        %1542 = vmatpush1.msra.mxu0 0.0
        %1543 = vmatprep.subr.mxu0 0.0
        %1544 = vmatpush1.msra.mxu0 0.0
        %1545 = vmatprep.subr.mxu0 0.0
        %1546 = vmatpush1.msra.mxu0 0.0
        %1547 = vmatprep.subr.mxu0 0.0
        %1548 = vmatpush1.msra.mxu0 0.0
        %1549 = vmatprep.subr.mxu0 0.0
        %1550 = vmatpush1.msra.mxu0 0.0
        %1551 = vmatprep.subr.mxu0 0.0
        %1552 = vmatpush1.msra.mxu0 0.0
        %1553 = vmatprep.subr.mxu0 0.0
        %1554 = vmatpush1.msra.mxu0 0.0
        %1555 = vmatprep.subr.mxu0 0.0
        %1556 = vmatpush1.msra.mxu0 0.0
        %1557 = vmatprep.mubr.f32.mxu0 0.0
        %1558 = vmatmul.mubr.f32.gmra.mrb[0].mxu0 %v1491
        %v1559 = vpop.f32.mrb[0].mxu0
        %v1560 = vadd.f32 0.0, %v1559
        %v1561 = vpop.f32.mrb[0].mxu0
        %v1562 = vadd.f32 0.0, %v1561
        %1563 = vdwg.mxu0
        %1564 = vrot.lane.b32.xlu0 %v1471, 17
        %v1565 = vpop.permute.xlu0 %1564
        %1566 = vrot.lane.b32.xlu0 %v1472, 17
        %v1567 = vpop.permute.xlu0 %1566
        %1568 = vrot.lane.b32.xlu0 %v1473, 17
        %v1569 = vpop.permute.xlu0 %1568
        %v1570 = vsel %vm748, %v1565, %v1567
        %v1571 = vsel %vm748, %v1567, %v1569
        %v1575 = vsel %vm667, %v1474, 0
        %1577 = vmatprep.subr.mxu0 %v1571
        %1578 = vmatpush1.msra.mxu0 %v1570
        %1579 = vmatprep.subr.mxu0 0.0
        %1580 = vmatpush1.msra.mxu0 0.0
        %1581 = vmatprep.subr.mxu0 0.0
        %1582 = vmatpush1.msra.mxu0 0.0
        %1583 = vmatprep.subr.mxu0 0.0
        %1584 = vmatpush1.msra.mxu0 0.0
        %1585 = vmatprep.subr.mxu0 0.0
        %1586 = vmatpush1.msra.mxu0 0.0
        %1587 = vmatprep.subr.mxu0 0.0
        %1588 = vmatpush1.msra.mxu0 0.0
        %1589 = vmatprep.subr.mxu0 0.0
        %1590 = vmatpush1.msra.mxu0 0.0
        %1591 = vmatprep.subr.mxu0 0.0
        %1592 = vmatpush1.msra.mxu0 0.0
        %1593 = vmatprep.subr.mxu0 0.0
        %1594 = vmatpush1.msra.mxu0 0.0
        %1595 = vmatprep.subr.mxu0 0.0
        %1596 = vmatpush1.msra.mxu0 0.0
        %1597 = vmatprep.subr.mxu0 0.0
        %1598 = vmatpush1.msra.mxu0 0.0
        %1599 = vmatprep.subr.mxu0 0.0
        %1600 = vmatpush1.msra.mxu0 0.0
        %1601 = vmatprep.subr.mxu0 0.0
        %1602 = vmatpush1.msra.mxu0 0.0
        %1603 = vmatprep.subr.mxu0 0.0
        %1604 = vmatpush1.msra.mxu0 0.0
        %1605 = vmatprep.subr.mxu0 0.0
        %1606 = vmatpush1.msra.mxu0 0.0
        %1607 = vmatprep.subr.mxu0 0.0
        %1608 = vmatpush1.msra.mxu0 0.0
        %1609 = vmatprep.subr.mxu0 0.0
        %1610 = vmatpush1.msra.mxu0 0.0
        %1611 = vmatprep.subr.mxu0 0.0
        %1612 = vmatpush1.msra.mxu0 0.0
        %1613 = vmatprep.subr.mxu0 0.0
        %1614 = vmatpush1.msra.mxu0 0.0
        %1615 = vmatprep.subr.mxu0 0.0
        %1616 = vmatpush1.msra.mxu0 0.0
        %1617 = vmatprep.subr.mxu0 0.0
        %1618 = vmatpush1.msra.mxu0 0.0
        %1619 = vmatprep.subr.mxu0 0.0
        %1620 = vmatpush1.msra.mxu0 0.0
        %1621 = vmatprep.subr.mxu0 0.0
        %1622 = vmatpush1.msra.mxu0 0.0
        %1623 = vmatprep.subr.mxu0 0.0
        %1624 = vmatpush1.msra.mxu0 0.0
        %1625 = vmatprep.subr.mxu0 0.0
        %1626 = vmatpush1.msra.mxu0 0.0
        %1627 = vmatprep.subr.mxu0 0.0
        %1628 = vmatpush1.msra.mxu0 0.0
        %1629 = vmatprep.subr.mxu0 0.0
        %1630 = vmatpush1.msra.mxu0 0.0
        %1631 = vmatprep.subr.mxu0 0.0
        %1632 = vmatpush1.msra.mxu0 0.0
        %1633 = vmatprep.subr.mxu0 0.0
        %1634 = vmatpush1.msra.mxu0 0.0
        %1635 = vmatprep.subr.mxu0 0.0
        %1636 = vmatpush1.msra.mxu0 0.0
        %1637 = vmatprep.subr.mxu0 0.0
        %1638 = vmatpush1.msra.mxu0 0.0
        %1639 = vmatprep.subr.mxu0 0.0
        %1640 = vmatpush1.msra.mxu0 0.0
        %1641 = vmatprep.mubr.f32.mxu0 0.0
        %1642 = vmatmul.mubr.f32.gmra.mrb[0].mxu0 %v1575
        %v1643 = vpop.f32.mrb[0].mxu0
        %v1644 = vadd.f32 %v1560, %v1643
        %v1645 = vpop.f32.mrb[0].mxu0
        %v1646 = vadd.f32 %v1562, %v1645
        %1647 = vdwg.mxu0
        %v1648 = vld [vmem:[#allocation2 + $0x8] sm:$0xff]
        %v1649 = vld [vmem:[#allocation2 + $0x10] sm:$0xff]
        %v1650 = vld [vmem:[#allocation2 + $0x18] sm:$0xff]
        %s1651 = scalar_lea.vmem %s7, 48
        %v1652 = vld [vmem:[%s1651] sm:$0xff]
        %1656 = vrot.lane.b32.xlu0 %v1648, 113
        %v1657 = vpop.permute.xlu0 %1656
        %1658 = vrot.lane.b32.xlu0 %v1649, 113
        %v1659 = vpop.permute.xlu0 %1658
        %1660 = vrot.lane.b32.xlu0 %v1650, 113
        %v1661 = vpop.permute.xlu0 %1660
        %v1662 = vsel %vm841, %v1657, %v1659
        %v1663 = vsel %vm841, %v1659, %v1661
        %v1667 = vsel %vm667, %v1652, 0
        %1669 = vmatprep.subr.mxu0 %v1663
        %1670 = vmatpush1.msra.mxu0 %v1662
        %1671 = vmatprep.subr.mxu0 0.0
        %1672 = vmatpush1.msra.mxu0 0.0
        %1673 = vmatprep.subr.mxu0 0.0
        %1674 = vmatpush1.msra.mxu0 0.0
        %1675 = vmatprep.subr.mxu0 0.0
        %1676 = vmatpush1.msra.mxu0 0.0
        %1677 = vmatprep.subr.mxu0 0.0
        %1678 = vmatpush1.msra.mxu0 0.0
        %1679 = vmatprep.subr.mxu0 0.0
        %1680 = vmatpush1.msra.mxu0 0.0
        %1681 = vmatprep.subr.mxu0 0.0
        %1682 = vmatpush1.msra.mxu0 0.0
        %1683 = vmatprep.subr.mxu0 0.0
        %1684 = vmatpush1.msra.mxu0 0.0
        %1685 = vmatprep.subr.mxu0 0.0
        %1686 = vmatpush1.msra.mxu0 0.0
        %1687 = vmatprep.subr.mxu0 0.0
        %1688 = vmatpush1.msra.mxu0 0.0
        %1689 = vmatprep.subr.mxu0 0.0
        %1690 = vmatpush1.msra.mxu0 0.0
        %1691 = vmatprep.subr.mxu0 0.0
        %1692 = vmatpush1.msra.mxu0 0.0
        %1693 = vmatprep.subr.mxu0 0.0
        %1694 = vmatpush1.msra.mxu0 0.0
        %1695 = vmatprep.subr.mxu0 0.0
        %1696 = vmatpush1.msra.mxu0 0.0
        %1697 = vmatprep.subr.mxu0 0.0
        %1698 = vmatpush1.msra.mxu0 0.0
        %1699 = vmatprep.subr.mxu0 0.0
        %1700 = vmatpush1.msra.mxu0 0.0
        %1701 = vmatprep.subr.mxu0 0.0
        %1702 = vmatpush1.msra.mxu0 0.0
        %1703 = vmatprep.subr.mxu0 0.0
        %1704 = vmatpush1.msra.mxu0 0.0
        %1705 = vmatprep.subr.mxu0 0.0
        %1706 = vmatpush1.msra.mxu0 0.0
        %1707 = vmatprep.subr.mxu0 0.0
        %1708 = vmatpush1.msra.mxu0 0.0
        %1709 = vmatprep.subr.mxu0 0.0
        %1710 = vmatpush1.msra.mxu0 0.0
        %1711 = vmatprep.subr.mxu0 0.0
        %1712 = vmatpush1.msra.mxu0 0.0
        %1713 = vmatprep.subr.mxu0 0.0
        %1714 = vmatpush1.msra.mxu0 0.0
        %1715 = vmatprep.subr.mxu0 0.0
        %1716 = vmatpush1.msra.mxu0 0.0
        %1717 = vmatprep.subr.mxu0 0.0
        %1718 = vmatpush1.msra.mxu0 0.0
        %1719 = vmatprep.subr.mxu0 0.0
        %1720 = vmatpush1.msra.mxu0 0.0
        %1721 = vmatprep.subr.mxu0 0.0
        %1722 = vmatpush1.msra.mxu0 0.0
        %1723 = vmatprep.subr.mxu0 0.0
        %1724 = vmatpush1.msra.mxu0 0.0
        %1725 = vmatprep.subr.mxu0 0.0
        %1726 = vmatpush1.msra.mxu0 0.0
        %1727 = vmatprep.subr.mxu0 0.0
        %1728 = vmatpush1.msra.mxu0 0.0
        %1729 = vmatprep.subr.mxu0 0.0
        %1730 = vmatpush1.msra.mxu0 0.0
        %1731 = vmatprep.subr.mxu0 0.0
        %1732 = vmatpush1.msra.mxu0 0.0
        %1733 = vmatprep.mubr.f32.mxu0 0.0
        %1734 = vmatmul.mubr.f32.gmra.mrb[0].mxu0 %v1667
        %v1735 = vpop.f32.mrb[0].mxu0
        %v1736 = vadd.f32 0.0, %v1735
        %v1737 = vpop.f32.mrb[0].mxu0
        %v1738 = vadd.f32 0.0, %v1737
        %1739 = vdwg.mxu0
        %v1740 = vadd.f32 %v1644, %v1736
        %v1741 = vadd.f32 %v1646, %v1738
        %v1742 = vmul.f32 %v1740, %v633
        %v1743 = vmul.f32 %v1741, %v634
        %v1744 = vadd.f32 %v1742, 0.0
        %v1745 = vadd.f32 %v1743, 0.0
        %s1746 = scalar_lea.vmem %s7, 8
        %v1747 = vld [vmem:[%s1746] sm:$0xff]
        %s1748 = scalar_lea.vmem %s7, 32
        %v1749 = vld [vmem:[%s1748] sm:$0xff]
        %v1751 = vsel %vm667, %v1749, 0
        %1753 = vmatprep.subr.mxu0 %v1473
        %1754 = vmatpush1.msra.mxu0 %v1472
        %1755 = vmatprep.subr.mxu0 0.0
        %1756 = vmatpush1.msra.mxu0 0.0
        %1757 = vmatprep.subr.mxu0 0.0
        %1758 = vmatpush1.msra.mxu0 0.0
        %1759 = vmatprep.subr.mxu0 0.0
        %1760 = vmatpush1.msra.mxu0 0.0
        %1761 = vmatprep.subr.mxu0 0.0
        %1762 = vmatpush1.msra.mxu0 0.0
        %1763 = vmatprep.subr.mxu0 0.0
        %1764 = vmatpush1.msra.mxu0 0.0
        %1765 = vmatprep.subr.mxu0 0.0
        %1766 = vmatpush1.msra.mxu0 0.0
        %1767 = vmatprep.subr.mxu0 0.0
        %1768 = vmatpush1.msra.mxu0 0.0
        %1769 = vmatprep.subr.mxu0 0.0
        %1770 = vmatpush1.msra.mxu0 0.0
        %1771 = vmatprep.subr.mxu0 0.0
        %1772 = vmatpush1.msra.mxu0 0.0
        %1773 = vmatprep.subr.mxu0 0.0
        %1774 = vmatpush1.msra.mxu0 0.0
        %1775 = vmatprep.subr.mxu0 0.0
        %1776 = vmatpush1.msra.mxu0 0.0
        %1777 = vmatprep.subr.mxu0 0.0
        %1778 = vmatpush1.msra.mxu0 0.0
        %1779 = vmatprep.subr.mxu0 0.0
        %1780 = vmatpush1.msra.mxu0 0.0
        %1781 = vmatprep.subr.mxu0 0.0
        %1782 = vmatpush1.msra.mxu0 0.0
        %1783 = vmatprep.subr.mxu0 0.0
        %1784 = vmatpush1.msra.mxu0 0.0
        %1785 = vmatprep.subr.mxu0 0.0
        %1786 = vmatpush1.msra.mxu0 0.0
        %1787 = vmatprep.subr.mxu0 0.0
        %1788 = vmatpush1.msra.mxu0 0.0
        %1789 = vmatprep.subr.mxu0 0.0
        %1790 = vmatpush1.msra.mxu0 0.0
        %1791 = vmatprep.subr.mxu0 0.0
        %1792 = vmatpush1.msra.mxu0 0.0
        %1793 = vmatprep.subr.mxu0 0.0
        %1794 = vmatpush1.msra.mxu0 0.0
        %1795 = vmatprep.subr.mxu0 0.0
        %1796 = vmatpush1.msra.mxu0 0.0
        %1797 = vmatprep.subr.mxu0 0.0
        %1798 = vmatpush1.msra.mxu0 0.0
        %1799 = vmatprep.subr.mxu0 0.0
        %1800 = vmatpush1.msra.mxu0 0.0
        %1801 = vmatprep.subr.mxu0 0.0
        %1802 = vmatpush1.msra.mxu0 0.0
        %1803 = vmatprep.subr.mxu0 0.0
        %1804 = vmatpush1.msra.mxu0 0.0
        %1805 = vmatprep.subr.mxu0 0.0
        %1806 = vmatpush1.msra.mxu0 0.0
        %1807 = vmatprep.subr.mxu0 0.0
        %1808 = vmatpush1.msra.mxu0 0.0
        %1809 = vmatprep.subr.mxu0 0.0
        %1810 = vmatpush1.msra.mxu0 0.0
        %1811 = vmatprep.subr.mxu0 0.0
        %1812 = vmatpush1.msra.mxu0 0.0
        %1813 = vmatprep.subr.mxu0 0.0
        %1814 = vmatpush1.msra.mxu0 0.0
        %1815 = vmatprep.subr.mxu0 0.0
        %1816 = vmatpush1.msra.mxu0 0.0
        %1817 = vmatprep.mubr.f32.mxu0 0.0
        %1818 = vmatmul.mubr.f32.gmra.mrb[0].mxu0 %v1751
        %v1819 = vpop.f32.mrb[0].mxu0
        %v1820 = vadd.f32 0.0, %v1819
        %v1821 = vpop.f32.mrb[0].mxu0
        %v1822 = vadd.f32 0.0, %v1821
        %1823 = vdwg.mxu0
        %1824 = vrot.lane.b32.xlu0 %v1471, 16
        %v1825 = vpop.permute.xlu0 %1824
        %1826 = vrot.lane.b32.xlu0 %v1472, 16
        %v1827 = vpop.permute.xlu0 %1826
        %1828 = vrot.lane.b32.xlu0 %v1473, 16
        %v1829 = vpop.permute.xlu0 %1828
        %v1830 = vsel %vm1010, %v1825, %v1827
        %v1831 = vsel %vm1010, %v1827, %v1829
        %v1835 = vsel %vm667, %v1747, 0
        %1837 = vmatprep.subr.mxu0 %v1831
        %1838 = vmatpush1.msra.mxu0 %v1830
        %1839 = vmatprep.subr.mxu0 0.0
        %1840 = vmatpush1.msra.mxu0 0.0
        %1841 = vmatprep.subr.mxu0 0.0
        %1842 = vmatpush1.msra.mxu0 0.0
        %1843 = vmatprep.subr.mxu0 0.0
        %1844 = vmatpush1.msra.mxu0 0.0
        %1845 = vmatprep.subr.mxu0 0.0
        %1846 = vmatpush1.msra.mxu0 0.0
        %1847 = vmatprep.subr.mxu0 0.0
        %1848 = vmatpush1.msra.mxu0 0.0
        %1849 = vmatprep.subr.mxu0 0.0
        %1850 = vmatpush1.msra.mxu0 0.0
        %1851 = vmatprep.subr.mxu0 0.0
        %1852 = vmatpush1.msra.mxu0 0.0
        %1853 = vmatprep.subr.mxu0 0.0
        %1854 = vmatpush1.msra.mxu0 0.0
        %1855 = vmatprep.subr.mxu0 0.0
        %1856 = vmatpush1.msra.mxu0 0.0
        %1857 = vmatprep.subr.mxu0 0.0
        %1858 = vmatpush1.msra.mxu0 0.0
        %1859 = vmatprep.subr.mxu0 0.0
        %1860 = vmatpush1.msra.mxu0 0.0
        %1861 = vmatprep.subr.mxu0 0.0
        %1862 = vmatpush1.msra.mxu0 0.0
        %1863 = vmatprep.subr.mxu0 0.0
        %1864 = vmatpush1.msra.mxu0 0.0
        %1865 = vmatprep.subr.mxu0 0.0
        %1866 = vmatpush1.msra.mxu0 0.0
        %1867 = vmatprep.subr.mxu0 0.0
        %1868 = vmatpush1.msra.mxu0 0.0
        %1869 = vmatprep.subr.mxu0 0.0
        %1870 = vmatpush1.msra.mxu0 0.0
        %1871 = vmatprep.subr.mxu0 0.0
        %1872 = vmatpush1.msra.mxu0 0.0
        %1873 = vmatprep.subr.mxu0 0.0
        %1874 = vmatpush1.msra.mxu0 0.0
        %1875 = vmatprep.subr.mxu0 0.0
        %1876 = vmatpush1.msra.mxu0 0.0
        %1877 = vmatprep.subr.mxu0 0.0
        %1878 = vmatpush1.msra.mxu0 0.0
        %1879 = vmatprep.subr.mxu0 0.0
        %1880 = vmatpush1.msra.mxu0 0.0
        %1881 = vmatprep.subr.mxu0 0.0
        %1882 = vmatpush1.msra.mxu0 0.0
        %1883 = vmatprep.subr.mxu0 0.0
        %1884 = vmatpush1.msra.mxu0 0.0
        %1885 = vmatprep.subr.mxu0 0.0
        %1886 = vmatpush1.msra.mxu0 0.0
        %1887 = vmatprep.subr.mxu0 0.0
        %1888 = vmatpush1.msra.mxu0 0.0
        %1889 = vmatprep.subr.mxu0 0.0
        %1890 = vmatpush1.msra.mxu0 0.0
        %1891 = vmatprep.subr.mxu0 0.0
        %1892 = vmatpush1.msra.mxu0 0.0
        %1893 = vmatprep.subr.mxu0 0.0
        %1894 = vmatpush1.msra.mxu0 0.0
        %1895 = vmatprep.subr.mxu0 0.0
        %1896 = vmatpush1.msra.mxu0 0.0
        %1897 = vmatprep.subr.mxu0 0.0
        %1898 = vmatpush1.msra.mxu0 0.0
        %1899 = vmatprep.subr.mxu0 0.0
        %1900 = vmatpush1.msra.mxu0 0.0
        %1901 = vmatprep.mubr.f32.mxu0 0.0
        %1902 = vmatmul.mubr.f32.gmra.mrb[0].mxu0 %v1835
        %v1903 = vpop.f32.mrb[0].mxu0
        %v1904 = vadd.f32 %v1820, %v1903
        %v1905 = vpop.f32.mrb[0].mxu0
        %v1906 = vadd.f32 %v1822, %v1905
        %1907 = vdwg.mxu0
        %s1908 = scalar_lea.vmem %s7, 56
        %v1909 = vld [vmem:[%s1908] sm:$0xff]
        %1910 = vrot.lane.b32.xlu0 %v1648, 112
        %v1911 = vpop.permute.xlu0 %1910
        %1912 = vrot.lane.b32.xlu0 %v1649, 112
        %v1913 = vpop.permute.xlu0 %1912
        %1914 = vrot.lane.b32.xlu0 %v1650, 112
        %v1915 = vpop.permute.xlu0 %1914
        %v1916 = vsel %vm1097, %v1911, %v1913
        %v1917 = vsel %vm1097, %v1913, %v1915
        %v1921 = vsel %vm667, %v1909, 0
        %1923 = vmatprep.subr.mxu0 %v1917
        %1924 = vmatpush1.msra.mxu0 %v1916
        %1925 = vmatprep.subr.mxu0 0.0
        %1926 = vmatpush1.msra.mxu0 0.0
        %1927 = vmatprep.subr.mxu0 0.0
        %1928 = vmatpush1.msra.mxu0 0.0
        %1929 = vmatprep.subr.mxu0 0.0
        %1930 = vmatpush1.msra.mxu0 0.0
        %1931 = vmatprep.subr.mxu0 0.0
        %1932 = vmatpush1.msra.mxu0 0.0
        %1933 = vmatprep.subr.mxu0 0.0
        %1934 = vmatpush1.msra.mxu0 0.0
        %1935 = vmatprep.subr.mxu0 0.0
        %1936 = vmatpush1.msra.mxu0 0.0
        %1937 = vmatprep.subr.mxu0 0.0
        %1938 = vmatpush1.msra.mxu0 0.0
        %1939 = vmatprep.subr.mxu0 0.0
        %1940 = vmatpush1.msra.mxu0 0.0
        %1941 = vmatprep.subr.mxu0 0.0
        %1942 = vmatpush1.msra.mxu0 0.0
        %1943 = vmatprep.subr.mxu0 0.0
        %1944 = vmatpush1.msra.mxu0 0.0
        %1945 = vmatprep.subr.mxu0 0.0
        %1946 = vmatpush1.msra.mxu0 0.0
        %1947 = vmatprep.subr.mxu0 0.0
        %1948 = vmatpush1.msra.mxu0 0.0
        %1949 = vmatprep.subr.mxu0 0.0
        %1950 = vmatpush1.msra.mxu0 0.0
        %1951 = vmatprep.subr.mxu0 0.0
        %1952 = vmatpush1.msra.mxu0 0.0
        %1953 = vmatprep.subr.mxu0 0.0
        %1954 = vmatpush1.msra.mxu0 0.0
        %1955 = vmatprep.subr.mxu0 0.0
        %1956 = vmatpush1.msra.mxu0 0.0
        %1957 = vmatprep.subr.mxu0 0.0
        %1958 = vmatpush1.msra.mxu0 0.0
        %1959 = vmatprep.subr.mxu0 0.0
        %1960 = vmatpush1.msra.mxu0 0.0
        %1961 = vmatprep.subr.mxu0 0.0
        %1962 = vmatpush1.msra.mxu0 0.0
        %1963 = vmatprep.subr.mxu0 0.0
        %1964 = vmatpush1.msra.mxu0 0.0
        %1965 = vmatprep.subr.mxu0 0.0
        %1966 = vmatpush1.msra.mxu0 0.0
        %1967 = vmatprep.subr.mxu0 0.0
        %1968 = vmatpush1.msra.mxu0 0.0
        %1969 = vmatprep.subr.mxu0 0.0
        %1970 = vmatpush1.msra.mxu0 0.0
        %1971 = vmatprep.subr.mxu0 0.0
        %1972 = vmatpush1.msra.mxu0 0.0
        %1973 = vmatprep.subr.mxu0 0.0
        %1974 = vmatpush1.msra.mxu0 0.0
        %1975 = vmatprep.subr.mxu0 0.0
        %1976 = vmatpush1.msra.mxu0 0.0
        %1977 = vmatprep.subr.mxu0 0.0
        %1978 = vmatpush1.msra.mxu0 0.0
        %1979 = vmatprep.subr.mxu0 0.0
        %1980 = vmatpush1.msra.mxu0 0.0
        %1981 = vmatprep.subr.mxu0 0.0
        %1982 = vmatpush1.msra.mxu0 0.0
        %1983 = vmatprep.subr.mxu0 0.0
        %1984 = vmatpush1.msra.mxu0 0.0
        %1985 = vmatprep.subr.mxu0 0.0
        %1986 = vmatpush1.msra.mxu0 0.0
        %1987 = vmatprep.mubr.f32.mxu0 0.0
        %1988 = vmatmul.mubr.f32.gmra.mrb[0].mxu0 %v1921
        %v1989 = vpop.f32.mrb[0].mxu0
        %v1990 = vadd.f32 0.0, %v1989
        %v1991 = vpop.f32.mrb[0].mxu0
        %v1992 = vadd.f32 0.0, %v1991
        %1993 = vdwg.mxu0
        %v1994 = vadd.f32 %v1904, %v1990
        %v1995 = vadd.f32 %v1906, %v1992
        %v1996 = vadd.f32 %v1744, %v1994
        %v1997 = vadd.f32 %v1745, %v1995
        %s1998 = scalar_lea.vmem %s7, 16
        %v1999 = vld [vmem:[%s1998] sm:$0xff]
        %s2000 = scalar_lea.vmem %s7, 40
        %v2001 = vld [vmem:[%s2000] sm:$0xff]
        %2002 = vrot.lane.b32.xlu0 %v1648, 127
        %v2003 = vpop.permute.xlu0 %2002
        %2004 = vrot.lane.b32.xlu0 %v1649, 127
        %v2005 = vpop.permute.xlu0 %2004
        %2006 = vrot.lane.b32.xlu0 %v1650, 127
        %v2007 = vpop.permute.xlu0 %2006
        %v2008 = vsel %vm1190, %v2003, %v2005
        %v2009 = vsel %vm1190, %v2005, %v2007
        %v2013 = vsel %vm667, %v2001, 0
        %2015 = vmatprep.subr.mxu0 %v2009
        %2016 = vmatpush1.msra.mxu0 %v2008
        %2017 = vmatprep.subr.mxu0 0.0
        %2018 = vmatpush1.msra.mxu0 0.0
        %2019 = vmatprep.subr.mxu0 0.0
        %2020 = vmatpush1.msra.mxu0 0.0
        %2021 = vmatprep.subr.mxu0 0.0
        %2022 = vmatpush1.msra.mxu0 0.0
        %2023 = vmatprep.subr.mxu0 0.0
        %2024 = vmatpush1.msra.mxu0 0.0
        %2025 = vmatprep.subr.mxu0 0.0
        %2026 = vmatpush1.msra.mxu0 0.0
        %2027 = vmatprep.subr.mxu0 0.0
        %2028 = vmatpush1.msra.mxu0 0.0
        %2029 = vmatprep.subr.mxu0 0.0
        %2030 = vmatpush1.msra.mxu0 0.0
        %2031 = vmatprep.subr.mxu0 0.0
        %2032 = vmatpush1.msra.mxu0 0.0
        %2033 = vmatprep.subr.mxu0 0.0
        %2034 = vmatpush1.msra.mxu0 0.0
        %2035 = vmatprep.subr.mxu0 0.0
        %2036 = vmatpush1.msra.mxu0 0.0
        %2037 = vmatprep.subr.mxu0 0.0
        %2038 = vmatpush1.msra.mxu0 0.0
        %2039 = vmatprep.subr.mxu0 0.0
        %2040 = vmatpush1.msra.mxu0 0.0
        %2041 = vmatprep.subr.mxu0 0.0
        %2042 = vmatpush1.msra.mxu0 0.0
        %2043 = vmatprep.subr.mxu0 0.0
        %2044 = vmatpush1.msra.mxu0 0.0
        %2045 = vmatprep.subr.mxu0 0.0
        %2046 = vmatpush1.msra.mxu0 0.0
        %2047 = vmatprep.subr.mxu0 0.0
        %2048 = vmatpush1.msra.mxu0 0.0
        %2049 = vmatprep.subr.mxu0 0.0
        %2050 = vmatpush1.msra.mxu0 0.0
        %2051 = vmatprep.subr.mxu0 0.0
        %2052 = vmatpush1.msra.mxu0 0.0
        %2053 = vmatprep.subr.mxu0 0.0
        %2054 = vmatpush1.msra.mxu0 0.0
        %2055 = vmatprep.subr.mxu0 0.0
        %2056 = vmatpush1.msra.mxu0 0.0
        %2057 = vmatprep.subr.mxu0 0.0
        %2058 = vmatpush1.msra.mxu0 0.0
        %2059 = vmatprep.subr.mxu0 0.0
        %2060 = vmatpush1.msra.mxu0 0.0
        %2061 = vmatprep.subr.mxu0 0.0
        %2062 = vmatpush1.msra.mxu0 0.0
        %2063 = vmatprep.subr.mxu0 0.0
        %2064 = vmatpush1.msra.mxu0 0.0
        %2065 = vmatprep.subr.mxu0 0.0
        %2066 = vmatpush1.msra.mxu0 0.0
        %2067 = vmatprep.subr.mxu0 0.0
        %2068 = vmatpush1.msra.mxu0 0.0
        %2069 = vmatprep.subr.mxu0 0.0
        %2070 = vmatpush1.msra.mxu0 0.0
        %2071 = vmatprep.subr.mxu0 0.0
        %2072 = vmatpush1.msra.mxu0 0.0
        %2073 = vmatprep.subr.mxu0 0.0
        %2074 = vmatpush1.msra.mxu0 0.0
        %2075 = vmatprep.subr.mxu0 0.0
        %2076 = vmatpush1.msra.mxu0 0.0
        %2077 = vmatprep.subr.mxu0 0.0
        %2078 = vmatpush1.msra.mxu0 0.0
        %2079 = vmatprep.mubr.f32.mxu0 0.0
        %2080 = vmatmul.mubr.f32.gmra.mrb[0].mxu0 %v2013
        %v2081 = vpop.f32.mrb[0].mxu0
        %v2082 = vadd.f32 0.0, %v2081
        %v2083 = vpop.f32.mrb[0].mxu0
        %v2084 = vadd.f32 0.0, %v2083
        %2085 = vdwg.mxu0
        %2086 = vrot.lane.b32.xlu0 %v1471, 15
        %v2087 = vpop.permute.xlu0 %2086
        %2088 = vrot.lane.b32.xlu0 %v1472, 15
        %v2089 = vpop.permute.xlu0 %2088
        %2090 = vrot.lane.b32.xlu0 %v1473, 15
        %v2091 = vpop.permute.xlu0 %2090
        %v2092 = vsel %vm1275, %v2087, %v2089
        %v2093 = vsel %vm1275, %v2089, %v2091
        %v2097 = vsel %vm667, %v1999, 0
        %2099 = vmatprep.subr.mxu0 %v2093
        %2100 = vmatpush1.msra.mxu0 %v2092
        %2101 = vmatprep.subr.mxu0 0.0
        %2102 = vmatpush1.msra.mxu0 0.0
        %2103 = vmatprep.subr.mxu0 0.0
        %2104 = vmatpush1.msra.mxu0 0.0
        %2105 = vmatprep.subr.mxu0 0.0
        %2106 = vmatpush1.msra.mxu0 0.0
        %2107 = vmatprep.subr.mxu0 0.0
        %2108 = vmatpush1.msra.mxu0 0.0
        %2109 = vmatprep.subr.mxu0 0.0
        %2110 = vmatpush1.msra.mxu0 0.0
        %2111 = vmatprep.subr.mxu0 0.0
        %2112 = vmatpush1.msra.mxu0 0.0
        %2113 = vmatprep.subr.mxu0 0.0
        %2114 = vmatpush1.msra.mxu0 0.0
        %2115 = vmatprep.subr.mxu0 0.0
        %2116 = vmatpush1.msra.mxu0 0.0
        %2117 = vmatprep.subr.mxu0 0.0
        %2118 = vmatpush1.msra.mxu0 0.0
        %2119 = vmatprep.subr.mxu0 0.0
        %2120 = vmatpush1.msra.mxu0 0.0
        %2121 = vmatprep.subr.mxu0 0.0
        %2122 = vmatpush1.msra.mxu0 0.0
        %2123 = vmatprep.subr.mxu0 0.0
        %2124 = vmatpush1.msra.mxu0 0.0
        %2125 = vmatprep.subr.mxu0 0.0
        %2126 = vmatpush1.msra.mxu0 0.0
        %2127 = vmatprep.subr.mxu0 0.0
        %2128 = vmatpush1.msra.mxu0 0.0
        %2129 = vmatprep.subr.mxu0 0.0
        %2130 = vmatpush1.msra.mxu0 0.0
        %2131 = vmatprep.subr.mxu0 0.0
        %2132 = vmatpush1.msra.mxu0 0.0
        %2133 = vmatprep.subr.mxu0 0.0
        %2134 = vmatpush1.msra.mxu0 0.0
        %2135 = vmatprep.subr.mxu0 0.0
        %2136 = vmatpush1.msra.mxu0 0.0
        %2137 = vmatprep.subr.mxu0 0.0
        %2138 = vmatpush1.msra.mxu0 0.0
        %2139 = vmatprep.subr.mxu0 0.0
        %2140 = vmatpush1.msra.mxu0 0.0
        %2141 = vmatprep.subr.mxu0 0.0
        %2142 = vmatpush1.msra.mxu0 0.0
        %2143 = vmatprep.subr.mxu0 0.0
        %2144 = vmatpush1.msra.mxu0 0.0
        %2145 = vmatprep.subr.mxu0 0.0
        %2146 = vmatpush1.msra.mxu0 0.0
        %2147 = vmatprep.subr.mxu0 0.0
        %2148 = vmatpush1.msra.mxu0 0.0
        %2149 = vmatprep.subr.mxu0 0.0
        %2150 = vmatpush1.msra.mxu0 0.0
        %2151 = vmatprep.subr.mxu0 0.0
        %2152 = vmatpush1.msra.mxu0 0.0
        %2153 = vmatprep.subr.mxu0 0.0
        %2154 = vmatpush1.msra.mxu0 0.0
        %2155 = vmatprep.subr.mxu0 0.0
        %2156 = vmatpush1.msra.mxu0 0.0
        %2157 = vmatprep.subr.mxu0 0.0
        %2158 = vmatpush1.msra.mxu0 0.0
        %2159 = vmatprep.subr.mxu0 0.0
        %2160 = vmatpush1.msra.mxu0 0.0
        %2161 = vmatprep.subr.mxu0 0.0
        %2162 = vmatpush1.msra.mxu0 0.0
        %2163 = vmatprep.mubr.f32.mxu0 0.0
        %2164 = vmatmul.mubr.f32.gmra.mrb[0].mxu0 %v2097
        %v2165 = vpop.f32.mrb[0].mxu0
        %v2166 = vadd.f32 %v2082, %v2165
        %v2167 = vpop.f32.mrb[0].mxu0
        %v2168 = vadd.f32 %v2084, %v2167
        %2169 = vdwg.mxu0
        %s2170 = scalar_lea.vmem %s7, 64
        %v2171 = vld [vmem:[%s2170] sm:$0xff]
        %2172 = vrot.lane.b32.xlu0 %v1648, 111
        %v2173 = vpop.permute.xlu0 %2172
        %2174 = vrot.lane.b32.xlu0 %v1649, 111
        %v2175 = vpop.permute.xlu0 %2174
        %2176 = vrot.lane.b32.xlu0 %v1650, 111
        %v2177 = vpop.permute.xlu0 %2176
        %v2178 = vsel %vm1362, %v2173, %v2175
        %v2179 = vsel %vm1362, %v2175, %v2177
        %v2183 = vsel %vm667, %v2171, 0
        %2185 = vmatprep.subr.mxu0 %v2179
        %2186 = vmatpush1.msra.mxu0 %v2178
        %2187 = vmatprep.subr.mxu0 0.0
        %2188 = vmatpush1.msra.mxu0 0.0
        %2189 = vmatprep.subr.mxu0 0.0
        %2190 = vmatpush1.msra.mxu0 0.0
        %2191 = vmatprep.subr.mxu0 0.0
        %2192 = vmatpush1.msra.mxu0 0.0
        %2193 = vmatprep.subr.mxu0 0.0
        %2194 = vmatpush1.msra.mxu0 0.0
        %2195 = vmatprep.subr.mxu0 0.0
        %2196 = vmatpush1.msra.mxu0 0.0
        %2197 = vmatprep.subr.mxu0 0.0
        %2198 = vmatpush1.msra.mxu0 0.0
        %2199 = vmatprep.subr.mxu0 0.0
        %2200 = vmatpush1.msra.mxu0 0.0
        %2201 = vmatprep.subr.mxu0 0.0
        %2202 = vmatpush1.msra.mxu0 0.0
        %2203 = vmatprep.subr.mxu0 0.0
        %2204 = vmatpush1.msra.mxu0 0.0
        %2205 = vmatprep.subr.mxu0 0.0
        %2206 = vmatpush1.msra.mxu0 0.0
        %2207 = vmatprep.subr.mxu0 0.0
        %2208 = vmatpush1.msra.mxu0 0.0
        %2209 = vmatprep.subr.mxu0 0.0
        %2210 = vmatpush1.msra.mxu0 0.0
        %2211 = vmatprep.subr.mxu0 0.0
        %2212 = vmatpush1.msra.mxu0 0.0
        %2213 = vmatprep.subr.mxu0 0.0
        %2214 = vmatpush1.msra.mxu0 0.0
        %2215 = vmatprep.subr.mxu0 0.0
        %2216 = vmatpush1.msra.mxu0 0.0
        %2217 = vmatprep.subr.mxu0 0.0
        %2218 = vmatpush1.msra.mxu0 0.0
        %2219 = vmatprep.subr.mxu0 0.0
        %2220 = vmatpush1.msra.mxu0 0.0
        %2221 = vmatprep.subr.mxu0 0.0
        %2222 = vmatpush1.msra.mxu0 0.0
        %2223 = vmatprep.subr.mxu0 0.0
        %2224 = vmatpush1.msra.mxu0 0.0
        %2225 = vmatprep.subr.mxu0 0.0
        %2226 = vmatpush1.msra.mxu0 0.0
        %2227 = vmatprep.subr.mxu0 0.0
        %2228 = vmatpush1.msra.mxu0 0.0
        %2229 = vmatprep.subr.mxu0 0.0
        %2230 = vmatpush1.msra.mxu0 0.0
        %2231 = vmatprep.subr.mxu0 0.0
        %2232 = vmatpush1.msra.mxu0 0.0
        %2233 = vmatprep.subr.mxu0 0.0
        %2234 = vmatpush1.msra.mxu0 0.0
        %2235 = vmatprep.subr.mxu0 0.0
        %2236 = vmatpush1.msra.mxu0 0.0
        %2237 = vmatprep.subr.mxu0 0.0
        %2238 = vmatpush1.msra.mxu0 0.0
        %2239 = vmatprep.subr.mxu0 0.0
        %2240 = vmatpush1.msra.mxu0 0.0
        %2241 = vmatprep.subr.mxu0 0.0
        %2242 = vmatpush1.msra.mxu0 0.0
        %2243 = vmatprep.subr.mxu0 0.0
        %2244 = vmatpush1.msra.mxu0 0.0
        %2245 = vmatprep.subr.mxu0 0.0
        %2246 = vmatpush1.msra.mxu0 0.0
        %2247 = vmatprep.subr.mxu0 0.0
        %2248 = vmatpush1.msra.mxu0 0.0
        %2249 = vmatprep.mubr.f32.mxu0 0.0
        %2250 = vmatmul.mubr.f32.gmra.mrb[0].mxu0 %v2183
        %v2251 = vpop.f32.mrb[0].mxu0
        %v2252 = vadd.f32 0.0, %v2251
        %v2253 = vpop.f32.mrb[0].mxu0
        %v2254 = vadd.f32 0.0, %v2253
        %2255 = vdwg.mxu0
        %v2256 = vadd.f32 %v2166, %v2252
        %v2257 = vadd.f32 %v2168, %v2254
        %v2258 = vmul.f32 %v2256, %v639
        %v2259 = vmul.f32 %v2257, %v640
        %v2260 = vadd.f32 %v1996, %v2258
        %v2261 = vadd.f32 %v1997, %v2259
        %v2262 = vld [vmem:[%s8] sm:$0xff]
        %2264 = vset.pattern.permute.xlu0 0
        %2265 = vperm.xlu0 %2264, %v2262
        %v2266 = vpop.permute.xlu0 %2265
        %v2268 = vadd.f32 %v2260, %v2266
        %v2269 = vadd.f32 %v2261, %v2266
        %v2270 = vxor.u32 %v2268, 2147483648
        %v2271 = vxor.u32 %v2269, 2147483648
        %v2272 = vmul.f32 %v2270, 1.442695
        %v2273 = vpow.pop %v2272
        %v2274 = vmul.f32 %v2271, 1.442695
        %v2275 = vpow.pop %v2274
        %v2276 = vadd.f32 %v2273, 1.0
        %v2277 = vadd.f32 %v2275, 1.0
        %v2278 = vrcp.pop %v2276
        %v2279 = vmul.f32 1.0, %v2278
        %v2280 = vrcp.pop %v2277
        %v2281 = vmul.f32 1.0, %v2280
        %v2282 = vmul.f32 %v2268, %v2279
        %v2283 = vmul.f32 %v2269, %v2281
        %v2284 = vld [vmem:[%s9] sm:$0xff]
        %v2285 = vld [vmem:[%s9 + $0x8] sm:$0xff]
        %s2286 = scalar_lea.vmem %s9, 16
        %v2287 = vld [vmem:[%s2286] sm:$0xff]
        %v2288 = vld [vmem:[%s2286 + $0x8] sm:$0xff]
        %v2290 = vsel %vm667, %v2287, 0
        %v2293 = vsel %vm667, %v2288, 0
        %2295 = vmatprep.subr.mxu0 %v601
        %2296 = vmatpush1.msra.mxu0 %v600
        %2297 = vmatprep.subr.mxu0 0.0
        %2298 = vmatpush1.msra.mxu0 0.0
        %2299 = vmatprep.subr.mxu0 0.0
        %2300 = vmatpush1.msra.mxu0 0.0
        %2301 = vmatprep.subr.mxu0 0.0
        %2302 = vmatpush1.msra.mxu0 0.0
        %2303 = vmatprep.subr.mxu0 0.0
        %2304 = vmatpush1.msra.mxu0 0.0
        %2305 = vmatprep.subr.mxu0 0.0
        %2306 = vmatpush1.msra.mxu0 0.0
        %2307 = vmatprep.subr.mxu0 0.0
        %2308 = vmatpush1.msra.mxu0 0.0
        %2309 = vmatprep.subr.mxu0 0.0
        %2310 = vmatpush1.msra.mxu0 0.0
        %2311 = vmatprep.subr.mxu0 0.0
        %2312 = vmatpush1.msra.mxu0 0.0
        %2313 = vmatprep.subr.mxu0 0.0
        %2314 = vmatpush1.msra.mxu0 0.0
        %2315 = vmatprep.subr.mxu0 0.0
        %2316 = vmatpush1.msra.mxu0 0.0
        %2317 = vmatprep.subr.mxu0 0.0
        %2318 = vmatpush1.msra.mxu0 0.0
        %2319 = vmatprep.subr.mxu0 0.0
        %2320 = vmatpush1.msra.mxu0 0.0
        %2321 = vmatprep.subr.mxu0 0.0
        %2322 = vmatpush1.msra.mxu0 0.0
        %2323 = vmatprep.subr.mxu0 0.0
        %2324 = vmatpush1.msra.mxu0 0.0
        %2325 = vmatprep.subr.mxu0 0.0
        %2326 = vmatpush1.msra.mxu0 0.0
        %2327 = vmatprep.subr.mxu0 0.0
        %2328 = vmatpush1.msra.mxu0 0.0
        %2329 = vmatprep.subr.mxu0 0.0
        %2330 = vmatpush1.msra.mxu0 0.0
        %2331 = vmatprep.subr.mxu0 0.0
        %2332 = vmatpush1.msra.mxu0 0.0
        %2333 = vmatprep.subr.mxu0 0.0
        %2334 = vmatpush1.msra.mxu0 0.0
        %2335 = vmatprep.subr.mxu0 0.0
        %2336 = vmatpush1.msra.mxu0 0.0
        %2337 = vmatprep.subr.mxu0 0.0
        %2338 = vmatpush1.msra.mxu0 0.0
        %2339 = vmatprep.subr.mxu0 0.0
        %2340 = vmatpush1.msra.mxu0 0.0
        %2341 = vmatprep.subr.mxu0 0.0
        %2342 = vmatpush1.msra.mxu0 0.0
        %2343 = vmatprep.subr.mxu0 0.0
        %2344 = vmatpush1.msra.mxu0 0.0
        %2345 = vmatprep.subr.mxu0 0.0
        %2346 = vmatpush1.msra.mxu0 0.0
        %2347 = vmatprep.subr.mxu0 0.0
        %2348 = vmatpush1.msra.mxu0 0.0
        %2349 = vmatprep.subr.mxu0 0.0
        %2350 = vmatpush1.msra.mxu0 0.0
        %2351 = vmatprep.subr.mxu0 0.0
        %2352 = vmatpush1.msra.mxu0 0.0
        %2353 = vmatprep.subr.mxu0 0.0
        %2354 = vmatpush1.msra.mxu0 0.0
        %2355 = vmatprep.subr.mxu0 0.0
        %2356 = vmatpush1.msra.mxu0 0.0
        %2357 = vmatprep.subr.mxu0 0.0
        %2358 = vmatpush1.msra.mxu0 0.0
        %2359 = vmatprep.mubr.f32.mxu0 0.0
        %2360 = vmatmul.mubr.f32.gmra.mrb[0].mxu0 %v2290
        %v2361 = vpop.f32.mrb[0].mxu0
        %v2362 = vadd.f32 0.0, %v2361
        %v2363 = vpop.f32.mrb[0].mxu0
        %v2364 = vadd.f32 0.0, %v2363
        %2365 = vmatprep.mubr.f32.mxu0 0.0
        %2366 = vmatmul.mubr.f32.gmra.mrb[0].mxu0 %v2293
        %v2367 = vpop.f32.mrb[0].mxu0
        %v2368 = vadd.f32 0.0, %v2367
        %v2369 = vpop.f32.mrb[0].mxu0
        %v2370 = vadd.f32 0.0, %v2369
        %2371 = vdwg.mxu0
        %v2373 = vsel %vm667, %v2284, 0
        %v2376 = vsel %vm667, %v2285, 0
        %2378 = vmatprep.subr.mxu0 %v506
        %2379 = vmatpush1.msra.mxu0 %v505
        %2380 = vmatprep.subr.mxu0 0.0
        %2381 = vmatpush1.msra.mxu0 0.0
        %2382 = vmatprep.subr.mxu0 0.0
        %2383 = vmatpush1.msra.mxu0 0.0
        %2384 = vmatprep.subr.mxu0 0.0
        %2385 = vmatpush1.msra.mxu0 0.0
        %2386 = vmatprep.subr.mxu0 0.0
        %2387 = vmatpush1.msra.mxu0 0.0
        %2388 = vmatprep.subr.mxu0 0.0
        %2389 = vmatpush1.msra.mxu0 0.0
        %2390 = vmatprep.subr.mxu0 0.0
        %2391 = vmatpush1.msra.mxu0 0.0
        %2392 = vmatprep.subr.mxu0 0.0
        %2393 = vmatpush1.msra.mxu0 0.0
        %2394 = vmatprep.subr.mxu0 0.0
        %2395 = vmatpush1.msra.mxu0 0.0
        %2396 = vmatprep.subr.mxu0 0.0
        %2397 = vmatpush1.msra.mxu0 0.0
        %2398 = vmatprep.subr.mxu0 0.0
        %2399 = vmatpush1.msra.mxu0 0.0
        %2400 = vmatprep.subr.mxu0 0.0
        %2401 = vmatpush1.msra.mxu0 0.0
        %2402 = vmatprep.subr.mxu0 0.0
        %2403 = vmatpush1.msra.mxu0 0.0
        %2404 = vmatprep.subr.mxu0 0.0
        %2405 = vmatpush1.msra.mxu0 0.0
        %2406 = vmatprep.subr.mxu0 0.0
        %2407 = vmatpush1.msra.mxu0 0.0
        %2408 = vmatprep.subr.mxu0 0.0
        %2409 = vmatpush1.msra.mxu0 0.0
        %2410 = vmatprep.subr.mxu0 0.0
        %2411 = vmatpush1.msra.mxu0 0.0
        %2412 = vmatprep.subr.mxu0 0.0
        %2413 = vmatpush1.msra.mxu0 0.0
        %2414 = vmatprep.subr.mxu0 0.0
        %2415 = vmatpush1.msra.mxu0 0.0
        %2416 = vmatprep.subr.mxu0 0.0
        %2417 = vmatpush1.msra.mxu0 0.0
        %2418 = vmatprep.subr.mxu0 0.0
        %2419 = vmatpush1.msra.mxu0 0.0
        %2420 = vmatprep.subr.mxu0 0.0
        %2421 = vmatpush1.msra.mxu0 0.0
        %2422 = vmatprep.subr.mxu0 0.0
        %2423 = vmatpush1.msra.mxu0 0.0
        %2424 = vmatprep.subr.mxu0 0.0
        %2425 = vmatpush1.msra.mxu0 0.0
        %2426 = vmatprep.subr.mxu0 0.0
        %2427 = vmatpush1.msra.mxu0 0.0
        %2428 = vmatprep.subr.mxu0 0.0
        %2429 = vmatpush1.msra.mxu0 0.0
        %2430 = vmatprep.subr.mxu0 0.0
        %2431 = vmatpush1.msra.mxu0 0.0
        %2432 = vmatprep.subr.mxu0 0.0
        %2433 = vmatpush1.msra.mxu0 0.0
        %2434 = vmatprep.subr.mxu0 0.0
        %2435 = vmatpush1.msra.mxu0 0.0
        %2436 = vmatprep.subr.mxu0 0.0
        %2437 = vmatpush1.msra.mxu0 0.0
        %2438 = vmatprep.subr.mxu0 0.0
        %2439 = vmatpush1.msra.mxu0 0.0
        %2440 = vmatprep.subr.mxu0 0.0
        %2441 = vmatpush1.msra.mxu0 0.0
        %2442 = vmatprep.mubr.f32.mxu0 0.0
        %2443 = vmatmul.mubr.f32.gmra.mrb[0].mxu0 %v2373
        %v2444 = vpop.f32.mrb[0].mxu0
        %v2445 = vadd.f32 %v2362, %v2444
        %v2446 = vpop.f32.mrb[0].mxu0
        %v2447 = vadd.f32 %v2364, %v2446
        %2448 = vmatprep.mubr.f32.mxu0 0.0
        %2449 = vmatmul.mubr.f32.gmra.mrb[0].mxu0 %v2376
        %v2450 = vpop.f32.mrb[0].mxu0
        %v2451 = vadd.f32 %v2368, %v2450
        %v2452 = vpop.f32.mrb[0].mxu0
        %v2453 = vadd.f32 %v2370, %v2452
        %2454 = vdwg.mxu0
        %s2455 = scalar_lea.vmem %s9, 32
        %v2456 = vld [vmem:[%s2455] sm:$0xff]
        %v2457 = vld [vmem:[%s2455 + $0x8] sm:$0xff]
        %v2459 = vsel %vm667, %v2456, 0
        %v2462 = vsel %vm667, %v2457, 0
        %2464 = vmatprep.subr.mxu0 %v1468
        %2465 = vmatpush1.msra.mxu0 %v1467
        %2466 = vmatprep.subr.mxu0 0.0
        %2467 = vmatpush1.msra.mxu0 0.0
        %2468 = vmatprep.subr.mxu0 0.0
        %2469 = vmatpush1.msra.mxu0 0.0
        %2470 = vmatprep.subr.mxu0 0.0
        %2471 = vmatpush1.msra.mxu0 0.0
        %2472 = vmatprep.subr.mxu0 0.0
        %2473 = vmatpush1.msra.mxu0 0.0
        %2474 = vmatprep.subr.mxu0 0.0
        %2475 = vmatpush1.msra.mxu0 0.0
        %2476 = vmatprep.subr.mxu0 0.0
        %2477 = vmatpush1.msra.mxu0 0.0
        %2478 = vmatprep.subr.mxu0 0.0
        %2479 = vmatpush1.msra.mxu0 0.0
        %2480 = vmatprep.subr.mxu0 0.0
        %2481 = vmatpush1.msra.mxu0 0.0
        %2482 = vmatprep.subr.mxu0 0.0
        %2483 = vmatpush1.msra.mxu0 0.0
        %2484 = vmatprep.subr.mxu0 0.0
        %2485 = vmatpush1.msra.mxu0 0.0
        %2486 = vmatprep.subr.mxu0 0.0
        %2487 = vmatpush1.msra.mxu0 0.0
        %2488 = vmatprep.subr.mxu0 0.0
        %2489 = vmatpush1.msra.mxu0 0.0
        %2490 = vmatprep.subr.mxu0 0.0
        %2491 = vmatpush1.msra.mxu0 0.0
        %2492 = vmatprep.subr.mxu0 0.0
        %2493 = vmatpush1.msra.mxu0 0.0
        %2494 = vmatprep.subr.mxu0 0.0
        %2495 = vmatpush1.msra.mxu0 0.0
        %2496 = vmatprep.subr.mxu0 0.0
        %2497 = vmatpush1.msra.mxu0 0.0
        %2498 = vmatprep.subr.mxu0 0.0
        %2499 = vmatpush1.msra.mxu0 0.0
        %2500 = vmatprep.subr.mxu0 0.0
        %2501 = vmatpush1.msra.mxu0 0.0
        %2502 = vmatprep.subr.mxu0 0.0
        %2503 = vmatpush1.msra.mxu0 0.0
        %2504 = vmatprep.subr.mxu0 0.0
        %2505 = vmatpush1.msra.mxu0 0.0
        %2506 = vmatprep.subr.mxu0 0.0
        %2507 = vmatpush1.msra.mxu0 0.0
        %2508 = vmatprep.subr.mxu0 0.0
        %2509 = vmatpush1.msra.mxu0 0.0
        %2510 = vmatprep.subr.mxu0 0.0
        %2511 = vmatpush1.msra.mxu0 0.0
        %2512 = vmatprep.subr.mxu0 0.0
        %2513 = vmatpush1.msra.mxu0 0.0
        %2514 = vmatprep.subr.mxu0 0.0
        %2515 = vmatpush1.msra.mxu0 0.0
        %2516 = vmatprep.subr.mxu0 0.0
        %2517 = vmatpush1.msra.mxu0 0.0
        %2518 = vmatprep.subr.mxu0 0.0
        %2519 = vmatpush1.msra.mxu0 0.0
        %2520 = vmatprep.subr.mxu0 0.0
        %2521 = vmatpush1.msra.mxu0 0.0
        %2522 = vmatprep.subr.mxu0 0.0
        %2523 = vmatpush1.msra.mxu0 0.0
        %2524 = vmatprep.subr.mxu0 0.0
        %2525 = vmatpush1.msra.mxu0 0.0
        %2526 = vmatprep.subr.mxu0 0.0
        %2527 = vmatpush1.msra.mxu0 0.0
        %2528 = vmatprep.mubr.f32.mxu0 0.0
        %2529 = vmatmul.mubr.f32.gmra.mrb[0].mxu0 %v2459
        %v2530 = vpop.f32.mrb[0].mxu0
        %v2531 = vadd.f32 0.0, %v2530
        %v2532 = vpop.f32.mrb[0].mxu0
        %v2533 = vadd.f32 0.0, %v2532
        %2534 = vmatprep.mubr.f32.mxu0 0.0
        %2535 = vmatmul.mubr.f32.gmra.mrb[0].mxu0 %v2462
        %v2536 = vpop.f32.mrb[0].mxu0
        %v2537 = vadd.f32 0.0, %v2536
        %v2538 = vpop.f32.mrb[0].mxu0
        %v2539 = vadd.f32 0.0, %v2538
        %2540 = vdwg.mxu0
        %v2541 = vadd.f32 %v2445, %v2531
        %v2542 = vadd.f32 %v2447, %v2533
        %v2543 = vadd.f32 %v2451, %v2537
        %v2544 = vadd.f32 %v2453, %v2539
        %s2545 = scalar_lea.vmem %s9, 48
        %v2546 = vld [vmem:[%s2545] sm:$0xff]
        %v2547 = vld [vmem:[%s2545 + $0x8] sm:$0xff]
        %v2549 = vsel %vm667, %v2546, 0
        %v2552 = vsel %vm667, %v2547, 0
        %2554 = vmatprep.subr.mxu0 %v2283
        %2555 = vmatpush1.msra.mxu0 %v2282
        %2556 = vmatprep.subr.mxu0 0.0
        %2557 = vmatpush1.msra.mxu0 0.0
        %2558 = vmatprep.subr.mxu0 0.0
        %2559 = vmatpush1.msra.mxu0 0.0
        %2560 = vmatprep.subr.mxu0 0.0
        %2561 = vmatpush1.msra.mxu0 0.0
        %2562 = vmatprep.subr.mxu0 0.0
        %2563 = vmatpush1.msra.mxu0 0.0
        %2564 = vmatprep.subr.mxu0 0.0
        %2565 = vmatpush1.msra.mxu0 0.0
        %2566 = vmatprep.subr.mxu0 0.0
        %2567 = vmatpush1.msra.mxu0 0.0
        %2568 = vmatprep.subr.mxu0 0.0
        %2569 = vmatpush1.msra.mxu0 0.0
        %2570 = vmatprep.subr.mxu0 0.0
        %2571 = vmatpush1.msra.mxu0 0.0
        %2572 = vmatprep.subr.mxu0 0.0
        %2573 = vmatpush1.msra.mxu0 0.0
        %2574 = vmatprep.subr.mxu0 0.0
        %2575 = vmatpush1.msra.mxu0 0.0
        %2576 = vmatprep.subr.mxu0 0.0
        %2577 = vmatpush1.msra.mxu0 0.0
        %2578 = vmatprep.subr.mxu0 0.0
        %2579 = vmatpush1.msra.mxu0 0.0
        %2580 = vmatprep.subr.mxu0 0.0
        %2581 = vmatpush1.msra.mxu0 0.0
        %2582 = vmatprep.subr.mxu0 0.0
        %2583 = vmatpush1.msra.mxu0 0.0
        %2584 = vmatprep.subr.mxu0 0.0
        %2585 = vmatpush1.msra.mxu0 0.0
        %2586 = vmatprep.subr.mxu0 0.0
        %2587 = vmatpush1.msra.mxu0 0.0
        %2588 = vmatprep.subr.mxu0 0.0
        %2589 = vmatpush1.msra.mxu0 0.0
        %2590 = vmatprep.subr.mxu0 0.0
        %2591 = vmatpush1.msra.mxu0 0.0
        %2592 = vmatprep.subr.mxu0 0.0
        %2593 = vmatpush1.msra.mxu0 0.0
        %2594 = vmatprep.subr.mxu0 0.0
        %2595 = vmatpush1.msra.mxu0 0.0
        %2596 = vmatprep.subr.mxu0 0.0
        %2597 = vmatpush1.msra.mxu0 0.0
        %2598 = vmatprep.subr.mxu0 0.0
        %2599 = vmatpush1.msra.mxu0 0.0
        %2600 = vmatprep.subr.mxu0 0.0
        %2601 = vmatpush1.msra.mxu0 0.0
        %2602 = vmatprep.subr.mxu0 0.0
        %2603 = vmatpush1.msra.mxu0 0.0
        %2604 = vmatprep.subr.mxu0 0.0
        %2605 = vmatpush1.msra.mxu0 0.0
        %2606 = vmatprep.subr.mxu0 0.0
        %2607 = vmatpush1.msra.mxu0 0.0
        %2608 = vmatprep.subr.mxu0 0.0
        %2609 = vmatpush1.msra.mxu0 0.0
        %2610 = vmatprep.subr.mxu0 0.0
        %2611 = vmatpush1.msra.mxu0 0.0
        %2612 = vmatprep.subr.mxu0 0.0
        %2613 = vmatpush1.msra.mxu0 0.0
        %2614 = vmatprep.subr.mxu0 0.0
        %2615 = vmatpush1.msra.mxu0 0.0
        %2616 = vmatprep.subr.mxu0 0.0
        %2617 = vmatpush1.msra.mxu0 0.0
        %2618 = vmatprep.mubr.f32.mxu0 0.0
        %2619 = vmatmul.mubr.f32.gmra.mrb[0].mxu0 %v2549
        %v2620 = vpop.f32.mrb[0].mxu0
        %v2621 = vadd.f32 0.0, %v2620
        %v2622 = vpop.f32.mrb[0].mxu0
        %v2623 = vadd.f32 0.0, %v2622
        %2624 = vmatprep.mubr.f32.mxu0 0.0
        %2625 = vmatmul.mubr.f32.gmra.mrb[0].mxu0 %v2552
        %v2626 = vpop.f32.mrb[0].mxu0
        %v2627 = vadd.f32 0.0, %v2626
        %v2628 = vpop.f32.mrb[0].mxu0
        %v2629 = vadd.f32 0.0, %v2628
        %2630 = vdwg.mxu0
        %v2631 = vadd.f32 %v2541, %v2621
        %v2632 = vadd.f32 %v2542, %v2623
        %v2633 = vadd.f32 %v2543, %v2627
        %v2634 = vadd.f32 %v2544, %v2629
        %v2635 = vld [vmem:[%s10] sm:$0xff]
        %v2636 = vld [vmem:[%s10 + $0x8] sm:$0xff]
        %2638 = vset.pattern.permute.xlu0 0
        %2639 = vperm.xlu0 %2638, %v2635
        %v2640 = vpop.permute.xlu0 %2639
        %2643 = vset.pattern.permute.xlu0 0
        %2644 = vperm.xlu0 %2643, %v2636
        %v2645 = vpop.permute.xlu0 %2644
        %v2647 = vadd.f32 %v2631, %v2640
        %v2648 = vadd.f32 %v2632, %v2640
        %v2649 = vadd.f32 %v2633, %v2645
        %v2650 = vadd.f32 %v2634, %v2645
        %v2651 = vxor.u32 %v2647, 2147483648
        %v2652 = vxor.u32 %v2648, 2147483648
        %v2653 = vxor.u32 %v2649, 2147483648
        %v2654 = vxor.u32 %v2650, 2147483648
        %v2655 = vmul.f32 %v2651, 1.442695
        %v2656 = vpow.pop %v2655
        %v2657 = vmul.f32 %v2652, 1.442695
        %v2658 = vpow.pop %v2657
        %v2659 = vmul.f32 %v2653, 1.442695
        %v2660 = vpow.pop %v2659
        %v2661 = vmul.f32 %v2654, 1.442695
        %v2662 = vpow.pop %v2661
        %v2663 = vadd.f32 %v2656, 1.0
        %v2664 = vadd.f32 %v2658, 1.0
        %v2665 = vadd.f32 %v2660, 1.0
        %v2666 = vadd.f32 %v2662, 1.0
        %v2667 = vrcp.pop %v2663
        %v2668 = vmul.f32 1.0, %v2667
        %v2669 = vrcp.pop %v2664
        %v2670 = vmul.f32 1.0, %v2669
        %v2671 = vrcp.pop %v2665
        %v2672 = vmul.f32 1.0, %v2671
        %v2673 = vrcp.pop %v2666
        %v2674 = vmul.f32 1.0, %v2673
        %v2675 = vmul.f32 %v2647, %v2668
        %v2676 = vmul.f32 %v2648, %v2670
        %v2677 = vmul.f32 %v2649, %v2672
        %v2678 = vmul.f32 %v2650, %v2674
        %2679 = vst [vmem:[%s402] sm:$0xff] %v2675
        %2680 = vst [vmem:[%s402 + $0x8] sm:$0xff] %v2676
        %2681 = vst [vmem:[%s402 + $0x10] sm:$0xff] %v2677
        %2682 = vst [vmem:[%s402 + $0x18] sm:$0xff] %v2678
        %s2683 = sand.u32 %s272, 1
        %s2684 = scalar_lea.sflag [#allocation5], %s2683
        %s2685 = sand.u32 %s272, 1
        %s2686 = smul.addr %s2685, 32
        %s2687 = scalar_lea.vmem [#allocation6], %s2686
        // Predicated region
        $region69: #{tpu_custom_call.1} parent=63 // pred_check
          %p2688 = pneg %p282
        $region70: #{tpu_custom_call.1} parent=63 // pred_check_branch
          %2690 = sbr.rel (%p2688) target = $region72
        $region71: #{tpu_custom_call.1} parent=63 // pred_region
          %s2692 = ssub.s32 512, 512
          %2693 = vsyncadd %s2684, %s2692
          %s2694 = smul.addr %s28, 4
          %s2695 = smul.addr %s2694, 128
          %s2696 = scalar_lea.hbm %s11, %s2695
          %s2697 = sshll.u32 %s2687, 4
          %s2698 = int_to_ptr.vmem [resolvable:$true] %s2697
          %2703 = dma.vmem_to_hbm [thread:$0]  %s2698, 512, %s2696, %s2684, 256, 256, 16
        $region72: #{tpu_custom_call.1} parent=63 // pred_fallthru
          _
      $region64: #{tpu_custom_call.1} parent=5 // pred_fallthru
        _
      %p2704 = scmp.le.s32.totalorder 2, %s23
      // Predicated region
      $region73: #{tpu_custom_call.1} parent=5 // pred_check
        %p2705 = pneg %p2704
      $region74: #{tpu_custom_call.1} parent=5 // pred_check_branch
        %2707 = sbr.rel (%p2705) target = $region76
      $region75: #{tpu_custom_call.1} parent=5 // pred_region
        %s2708 = ssub.s32 %s23, 2
        // Predicated region
        $region77: #{tpu_custom_call.1} parent=75 // pred_check
          %p2709 = pneg %p288
        $region78: #{tpu_custom_call.1} parent=75 // pred_check_branch
          %2711 = sbr.rel (%p2709) target = $region80
        $region79: #{tpu_custom_call.1} parent=75 // pred_region
          %s2712 = sand.u32 %s273, 1
          %s2713 = scalar_lea.sflag [#allocation5], %s2712
          %s2714 = sand.u32 %s273, 1
          %s2715 = smul.addr %s2714, 32
          %s2716 = scalar_lea.vmem [#allocation6], %s2715
          %2717 = dma.done %s2713, 512
        $region80: #{tpu_custom_call.1} parent=75 // pred_fallthru
          _
      $region76: #{tpu_custom_call.1} parent=5 // pred_fallthru
        _
    $region6: #{tpu_custom_call.1} parent=1 // loop_footer
      %s27 = sadd.s32 1, %s23
    $region7: #{tpu_custom_call.1} parent=1 // loop_footer_branch
      %22 = sbr.rel target = $region3
    $region8: #{tpu_custom_call.1} parent=1 // loop_exit
      _
    %2718 = vsyncpa [#allocation4], 1
    %s2719 = scalar_lea.sflag [#allocation4], 1
    %2720 = vsyncpa %s2719, 1
    %2721 = vsyncpa [#allocation5], 1
    %s2722 = scalar_lea.sflag [#allocation5], 1
    %2723 = vsyncpa %s2722, 1

</llo_original>
